<compile_context>
chip_gen: v6e
topology: v6e:2x2x1
jax: 0.10.0
libtpu: 0.0.40
codegen_flags: <defaults>
</compile_context>

<pallas_src>
import functools

import jax
import jax.numpy as jnp
from jax.experimental import pallas as pl
from jax.experimental.pallas import tpu as pltpu


LANE = 128
_VMEM_LIMIT = 32 * 1024 * 1024   # explicit scoped-VMEM cap (safe on v5e/v6e/v7x)


def _round_up(x, m):
    return (x + m - 1) // m * m


# -----------------------------------------------------------------------------
# Tiled dense projection:  y = x @ w + b
# Used for (a) the hoisted per-layer input projection over ALL timesteps and
# (b) the final class projection.  Output last dim is a multiple of 128 lanes.
# -----------------------------------------------------------------------------
def _linear_kernel(x_ref, w_ref, b_ref, o_ref):
    o_ref[...] = (
        jnp.dot(x_ref[...], w_ref[...], preferred_element_type=jnp.float32)
        + b_ref[...]
    )


def linear_pallas(x2d, w_t, b_row):
    """x2d: (N, K)   w_t: (K, Cp)   b_row: (1, Cp)   ->  (N, Cp), Cp % 128 == 0."""
    N, K = x2d.shape
    Cp = w_t.shape[1]
    tn = N if N <= 512 else 512            # row tile: full array or 512 (8-aligned)
    grid = (pl.cdiv(N, tn),)
    return pl.pallas_call(
        _linear_kernel,
        out_shape=jax.ShapeDtypeStruct((N, Cp), jnp.float32),
        grid_spec=pltpu.PrefetchScalarGridSpec(
            num_scalar_prefetch=0,
            grid=grid,
            in_specs=[
                pl.BlockSpec((tn, K), lambda i: (i, 0)),     # activations (row tiles)
                pl.BlockSpec((K, Cp), lambda i: (0, 0)),     # weights (resident)
                pl.BlockSpec((1, Cp), lambda i: (0, 0)),     # bias (resident)
            ],
            out_specs=pl.BlockSpec((tn, Cp), lambda i: (i, 0)),
        ),
        compiler_params=pltpu.CompilerParams(
            dimension_semantics=("parallel",),
            vmem_limit_bytes=_VMEM_LIMIT,
        ),
    )(x2d, w_t, b_row)


# -----------------------------------------------------------------------------
# LSTM recurrence kernel: consumes precomputed gates_x = x @ W_ih^T + b and
# runs the sequential time loop internally with loop-carried h/c.
# -----------------------------------------------------------------------------
def _lstm_rec_kernel(gx_ref, w_hh_ref, h_out_ref, h_sc, c_sc):
    """One (batch-chunk, seq-chunk) block.

    gx_ref:    (Ts, Bt, 4*Hp)  precomputed input-gate contributions (time-major)
    w_hh_ref:  (Hp, 4*Hp)      recurrent weights, gate order i|f|g|o, lane-padded
    h_out_ref: (Ts, Bt, Hp)    hidden states for this chunk (lane-dense writes)
    h_sc/c_sc: (Bt, Hp)        state carried across seq-chunks (persistent scratch)
    """
    Hp = h_sc.shape[-1]
    Ts = gx_ref.shape[0]

    @pl.when(pl.program_id(1) == 0)            # first seq-chunk of this batch-chunk
    def _():
        h_sc[...] = jnp.zeros_like(h_sc)       # h0 = 0
        c_sc[...] = jnp.zeros_like(c_sc)       # c0 = 0

    w_hh = w_hh_ref[...]                       # resident for the whole chunk

    def step(t, carry):
        h, c = carry                           # loop-carried in vregs (no per-step scratch I/O)
        gates = gx_ref[t] + jnp.dot(h, w_hh, preferred_element_type=jnp.float32)
        # lane-aligned gate slices (each gate occupies whole 128-lane blocks)
        i_g = jax.nn.sigmoid(gates[:, 0 * Hp:1 * Hp])
        f_g = jax.nn.sigmoid(gates[:, 1 * Hp:2 * Hp])
        g_g = jnp.tanh(gates[:, 2 * Hp:3 * Hp])
        o_g = jax.nn.sigmoid(gates[:, 3 * Hp:4 * Hp])
        c_new = f_g * c + i_g * g_g
        h_new = o_g * jnp.tanh(c_new)
        h_out_ref[t] = h_new                   # lane-dense (Hp = 128) unmasked store
        return h_new, c_new

    h_f, c_f = jax.lax.fori_loop(
        0, Ts, step, (h_sc[...], c_sc[...]),
        unroll=True if Ts <= 32 else 4)
    h_sc[...] = h_f                            # carry state to the next seq-chunk
    c_sc[...] = c_f


def lstm_recurrence(gates_x, w_hh_t):
    """gates_x: (S, B, 4*Hp) time-major; w_hh_t: (Hp, 4*Hp)  ->  (S, B, Hp)."""
    S, B, G4 = gates_x.shape
    Hp = w_hh_t.shape[0]
    assert G4 == 4 * Hp
    # Batch tile: full batch when small; multiples of 8 when large enough to shard
    # across cores via the "parallel" grid axis (megacore / v7x second TensorCore).
    bt = 8 if (B > 8 and B % 8 == 0) else B
    # Seq chunk kept resident in VMEM; the time loop runs inside the kernel.
    ts = S if S <= 256 else 256
    grid = (pl.cdiv(B, bt), pl.cdiv(S, ts))
    return pl.pallas_call(
        _lstm_rec_kernel,
        out_shape=jax.ShapeDtypeStruct((S, B, Hp), jnp.float32),
        grid_spec=pltpu.PrefetchScalarGridSpec(
            num_scalar_prefetch=0,
            grid=grid,
            in_specs=[
                pl.BlockSpec((ts, bt, 4 * Hp), lambda b, s: (s, b, 0)),  # gates_x chunk
                pl.BlockSpec((Hp, 4 * Hp), lambda b, s: (0, 0)),          # W_hh^T resident
            ],
            out_specs=pl.BlockSpec((ts, bt, Hp), lambda b, s: (s, b, 0)),
            scratch_shapes=[
                pltpu.VMEM((bt, Hp), jnp.float32),   # h carry across seq-chunks
                pltpu.VMEM((bt, Hp), jnp.float32),   # c carry across seq-chunks
            ],
        ),
        compiler_params=pltpu.CompilerParams(
            dimension_semantics=("parallel", "arbitrary"),
            vmem_limit_bytes=_VMEM_LIMIT,
        ),
    )(gates_x, w_hh_t)


# -----------------------------------------------------------------------------
# Parameters: PyTorch-style init (U(-1/sqrt(H), 1/sqrt(H))), stored pre-transposed
# and lane-padded (hidden -> Hp, class -> Cp, multiples of 128). Padded weight
# rows/columns are ZERO so padded activation lanes stay exactly zero.
# -----------------------------------------------------------------------------
def _pad_gate_cols(w_t, H, Hp):
    # (rows, 4H) -> (rows, 4Hp): zero-pad each gate's column block independently
    rows = w_t.shape[0]
    return jnp.pad(w_t.reshape(rows, 4, H),
                   ((0, 0), (0, 0), (0, Hp - H))).reshape(rows, 4 * Hp)


def init_params(key, input_size, hidden_size, num_layers, class_size):
    H, Hp = hidden_size, _round_up(hidden_size, LANE)
    C, Cp = class_size, _round_up(class_size, LANE)
    k = 1.0 / float(hidden_size) ** 0.5
    keys = jax.random.split(key, num_layers * 4 + 2)
    layers = []
    idx = 0
    for layer in range(num_layers):
        in_size = input_size if layer == 0 else hidden_size
        in_pad = input_size if layer == 0 else Hp
        w_ih = jax.random.uniform(keys[idx], (4 * H, in_size), minval=-k, maxval=k,
                                  dtype=jnp.float32); idx += 1
        w_hh = jax.random.uniform(keys[idx], (4 * H, H), minval=-k, maxval=k,
                                  dtype=jnp.float32); idx += 1
        b_ih = jax.random.uniform(keys[idx], (4 * H,), minval=-k, maxval=k,
                                  dtype=jnp.float32); idx += 1
        b_hh = jax.random.uniform(keys[idx], (4 * H,), minval=-k, maxval=k,
                                  dtype=jnp.float32); idx += 1
        w_ih_t = _pad_gate_cols(w_ih.T, H, Hp)                       # (in, 4Hp)
        w_ih_t = jnp.pad(w_ih_t, ((0, in_pad - in_size), (0, 0)))    # (in_pad, 4Hp)
        w_hh_t = _pad_gate_cols(w_hh.T, H, Hp)                       # (H, 4Hp)
        w_hh_t = jnp.pad(w_hh_t, ((0, Hp - H), (0, 0)))              # (Hp, 4Hp)
        b = _pad_gate_cols((b_ih + b_hh)[None, :], H, Hp)            # (1, 4Hp)
        layers.append({"w_ih_t": w_ih_t, "w_hh_t": w_hh_t, "b": b})
    w_out = jax.random.uniform(keys[idx], (C, H), minval=-k, maxval=k,
                               dtype=jnp.float32); idx += 1
    b_out = jax.random.uniform(keys[idx], (C,), minval=-k, maxval=k, dtype=jnp.float32)
    w_out_t = jnp.pad(w_out.T, ((0, Hp - H), (0, Cp - C)))           # (Hp, Cp)
    b_out_p = jnp.pad(b_out[None, :], ((0, 0), (0, Cp - C)))         # (1, Cp)
    return {"layers": layers, "out": {"w_t": w_out_t, "b": b_out_p}}


# -----------------------------------------------------------------------------
# Forward pass
# -----------------------------------------------------------------------------
@functools.partial(jax.jit, static_argnames=("class_size",))
def rnn_forward(x, params, *, class_size):
    # x: (B, S, input_size) — PyTorch batch_first layout
    B, S, _ = x.shape
    # Single small transpose of the raw input to time-major; all layer activations
    # stay time-major so no further transposes are needed until the final output.
    h = jnp.transpose(x.astype(jnp.float32), (1, 0, 2))      # (S, B, I)
    for lp in params["layers"]:
        S_, B_, D = h.shape
        # Hoisted input projection for ALL timesteps: one (S*B, D) x (D, 4Hp) matmul.
        gx = linear_pallas(h.reshape(S_ * B_, D), lp["w_ih_t"], lp["b"])
        gx = gx.reshape(S_, B_, -1)                           # (S, B, 4Hp)
        h = lstm_recurrence(gx, lp["w_hh_t"])                 # (S, B, Hp)
    Hp = h.shape[-1]
    logits = linear_pallas(h.reshape(S * B, Hp), params["out"]["w_t"],
                           params["out"]["b"])                # (S*B, Cp) lane-dense
    logits = logits[:, :class_size].reshape(S, B, class_size)
    return jnp.transpose(logits, (1, 0, 2))                   # (B, S, class_size)


if __name__ == "__main__":
    # Module config: RNN(input_size=16, hidden_size=32, num_layers=2, class_size=8,
    #                    dropout=0.5, rnn_type='lstm', dropout_bool=False), eval mode.
    input_size, hidden_size, num_layers, class_size = 16, 32, 2, 8
    B, S = 2, 8

    key = jax.random.PRNGKey(0)
    pkey, xkey = jax.random.split(key)
    params = init_params(pkey, input_size, hidden_size, num_layers, class_size)
    x = jax.random.normal(xkey, (B, S, input_size), dtype=jnp.float32)

    out = rnn_forward(x, params, class_size=class_size)
    jax.block_until_ready(out)
    assert out.shape == (B, S, class_size), out.shape
    assert out.dtype == jnp.float32
    assert bool(jnp.isfinite(out).all())
    print("KERNEL_OK")
</pallas_src>

<mosaic_0001>
module attributes {stable_mosaic.version = 11 : i64} {
  func.func @_linear_kernel(%arg0: i32, %arg1: memref<16x16xf32, #tpu.memory_space<vmem>>, %arg2: memref<16x512xf32, #tpu.memory_space<vmem>>, %arg3: memref<1x512xf32, #tpu.memory_space<vmem>>, %arg4: memref<16x512xf32, #tpu.memory_space<vmem>>) attributes {dimension_semantics = [#tpu.dimension_semantics<parallel>], iteration_bounds = array<i64: 1>, scalar_prefetch = 0 : i64, scratch_operands = 0 : i64, tpu.core_type = #tpu.core_type<tc>, window_params = [{transform_indices = @transform_0, window_bounds = array<i64: 16, 16>}, {pipeline_mode = #tpu.pipeline_mode<synchronous>, transform_indices = @transform_1, window_bounds = array<i64: 16, 512>}, {pipeline_mode = #tpu.pipeline_mode<synchronous>, transform_indices = @transform_2, window_bounds = array<i64: 1, 512>}, {transform_indices = @transform_3, window_bounds = array<i64: 16, 512>}]} {
    %c0 = arith.constant 0 : index
    %c0_0 = arith.constant 0 : index
    %0 = vector.load %arg1[%c0, %c0_0] : memref<16x16xf32, #tpu.memory_space<vmem>>, vector<16x16xf32>
    %c0_1 = arith.constant 0 : index
    %c0_2 = arith.constant 0 : index
    %1 = vector.load %arg2[%c0_1, %c0_2] : memref<16x512xf32, #tpu.memory_space<vmem>>, vector<16x512xf32>
    %cst = arith.constant dense<0.000000e+00> : vector<16x512xf32>
    %2 = tpu.matmul %0, %1, %cst {dimension_numbers = #tpu.dot_dimension_numbers<[1], [0], [0], [1], [0, 0, 1, 1], [], []>} : vector<16x16xf32>, vector<16x512xf32>, vector<16x512xf32> -> vector<16x512xf32>
    %c0_3 = arith.constant 0 : index
    %c0_4 = arith.constant 0 : index
    %3 = vector.load %arg3[%c0_3, %c0_4] : memref<1x512xf32, #tpu.memory_space<vmem>>, vector<1x512xf32>
    %4 = vector.broadcast %3 : vector<1x512xf32> to vector<16x512xf32>
    %5 = arith.addf %2, %4 : vector<16x512xf32>
    %c0_5 = arith.constant 0 : index
    %c0_6 = arith.constant 0 : index
    %6 = vector.load %arg4[%c0_5, %c0_6] : memref<16x512xf32, #tpu.memory_space<vmem>>, vector<16x512xf32>
    tpu.vector_store %arg4[%c0_5, %c0_6], %5 {strides = array<i32>} : memref<16x512xf32, #tpu.memory_space<vmem>>, vector<16x512xf32>,
    return
  }
  func.func @transform_0(%arg0: i32) -> (i32, i32) {
    %c0_i32 = arith.constant 0 : i32
    %c0_i32_0 = arith.constant 0 : i32
    return %arg0, %c0_i32 : i32, i32
  }
  func.func @transform_1(%arg0: i32) -> (i32, i32) {
    %c0_i32 = arith.constant 0 : i32
    %c0_i32_0 = arith.constant 0 : i32
    %c0_i32_1 = arith.constant 0 : i32
    return %c0_i32, %c0_i32_0 : i32, i32
  }
  func.func @transform_2(%arg0: i32) -> (i32, i32) {
    %c0_i32 = arith.constant 0 : i32
    %c0_i32_0 = arith.constant 0 : i32
    %c0_i32_1 = arith.constant 0 : i32
    return %c0_i32, %c0_i32_0 : i32, i32
  }
  func.func @transform_3(%arg0: i32) -> (i32, i32) {
    %c0_i32 = arith.constant 0 : i32
    %c0_i32_0 = arith.constant 0 : i32
    return %arg0, %c0_i32 : i32, i32
  }
}

module attributes {stable_mosaic.version = 11 : i64} {
  func.func @_lstm_rec_kernel(%arg0: i32, %arg1: i32, %arg2: memref<8x2x512xf32, #tpu.memory_space<vmem>>, %arg3: memref<128x512xf32, #tpu.memory_space<vmem>>, %arg4: memref<8x2x128xf32, #tpu.memory_space<vmem>>, %arg5: memref<2x128xf32, #tpu.memory_space<vmem>>, %arg6: memref<2x128xf32, #tpu.memory_space<vmem>>) attributes {dimension_semantics = [#tpu.dimension_semantics<parallel>, #tpu.dimension_semantics<arbitrary>], iteration_bounds = array<i64: 1, 1>, scalar_prefetch = 0 : i64, scratch_operands = 2 : i64, tpu.core_type = #tpu.core_type<tc>, window_params = [{transform_indices = @transform_0, window_bounds = array<i64: 8, 2, 512>}, {pipeline_mode = #tpu.pipeline_mode<synchronous>, transform_indices = @transform_1, window_bounds = array<i64: 128, 512>}, {transform_indices = @transform_2, window_bounds = array<i64: 8, 2, 128>}]} {
    %c0_i32 = arith.constant 0 : i32
    %0 = arith.cmpi eq, %arg1, %c0_i32 : i32
    %1 = arith.extui %0 : i1 to i32
    %c0_i32_0 = arith.constant 0 : i32
    %2 = arith.cmpi ne, %1, %c0_i32_0 : i32
    scf.if %2 {
      %cst_74 = arith.constant 0.000000e+00 : f32
      %280 = vector.broadcast %cst_74 : f32 to vector<2x128xf32>
      %c0_75 = arith.constant 0 : index
      %c0_76 = arith.constant 0 : index
      %281 = vector.load %arg5[%c0_75, %c0_76] : memref<2x128xf32, #tpu.memory_space<vmem>>, vector<2x128xf32>
      tpu.vector_store %arg5[%c0_75, %c0_76], %280 {strides = array<i32>} : memref<2x128xf32, #tpu.memory_space<vmem>>, vector<2x128xf32>,
      %cst_77 = arith.constant 0.000000e+00 : f32
      %282 = vector.broadcast %cst_77 : f32 to vector<2x128xf32>
      %c0_78 = arith.constant 0 : index
      %c0_79 = arith.constant 0 : index
      %283 = vector.load %arg6[%c0_78, %c0_79] : memref<2x128xf32, #tpu.memory_space<vmem>>, vector<2x128xf32>
      tpu.vector_store %arg6[%c0_78, %c0_79], %282 {strides = array<i32>} : memref<2x128xf32, #tpu.memory_space<vmem>>, vector<2x128xf32>,
    } else {
    }
    %c0 = arith.constant 0 : index
    %c0_1 = arith.constant 0 : index
    %3 = vector.load %arg3[%c0, %c0_1] : memref<128x512xf32, #tpu.memory_space<vmem>>, vector<128x512xf32>
    %c0_2 = arith.constant 0 : index
    %c0_3 = arith.constant 0 : index
    %4 = vector.load %arg5[%c0_2, %c0_3] : memref<2x128xf32, #tpu.memory_space<vmem>>, vector<2x128xf32>
    %c0_4 = arith.constant 0 : index
    %c0_5 = arith.constant 0 : index
    %5 = vector.load %arg6[%c0_4, %c0_5] : memref<2x128xf32, #tpu.memory_space<vmem>>, vector<2x128xf32>
    %c0_i32_6 = arith.constant 0 : i32
    %6 = arith.index_cast %c0_i32_6 : i32 to index
    %c0_7 = arith.constant 0 : index
    %c0_8 = arith.constant 0 : index
    %7 = vector.load %arg2[%6, %c0_7, %c0_8] : memref<8x2x512xf32, #tpu.memory_space<vmem>>, vector<1x2x512xf32>
    %8 = vector.shape_cast %7 : vector<1x2x512xf32> to vector<2x512xf32>
    %cst = arith.constant dense<0.000000e+00> : vector<2x512xf32>
    %9 = tpu.matmul %4, %3, %cst {dimension_numbers = #tpu.dot_dimension_numbers<[1], [0], [0], [1], [0, 0, 1, 1], [], []>} : vector<2x128xf32>, vector<128x512xf32>, vector<2x512xf32> -> vector<2x512xf32>
    %10 = arith.addf %8, %9 : vector<2x512xf32>
    %11 = vector.extract_strided_slice %10 {offsets = [0, 0], sizes = [2, 128], strides = [1, 1]} : vector<2x512xf32> to vector<2x128xf32>
    %12 = arith.negf %11 : vector<2x128xf32>
    %13 = math.exp %12 : vector<2x128xf32>
    %cst_9 = arith.constant 1.000000e+00 : f32
    %14 = vector.broadcast %cst_9 : f32 to vector<2x128xf32>
    %15 = arith.addf %14, %13 : vector<2x128xf32>
    %16 = arith.divf %14, %15 : vector<2x128xf32>
    %17 = vector.extract_strided_slice %10 {offsets = [0, 128], sizes = [2, 128], strides = [1, 1]} : vector<2x512xf32> to vector<2x128xf32>
    %18 = arith.negf %17 : vector<2x128xf32>
    %19 = math.exp %18 : vector<2x128xf32>
    %cst_10 = arith.constant 1.000000e+00 : f32
    %20 = vector.broadcast %cst_10 : f32 to vector<2x128xf32>
    %21 = arith.addf %20, %19 : vector<2x128xf32>
    %22 = arith.divf %20, %21 : vector<2x128xf32>
    %23 = vector.extract_strided_slice %10 {offsets = [0, 256], sizes = [2, 128], strides = [1, 1]} : vector<2x512xf32> to vector<2x128xf32>
    %24 = math.tanh %23 : vector<2x128xf32>
    %25 = vector.extract_strided_slice %10 {offsets = [0, 384], sizes = [2, 128], strides = [1, 1]} : vector<2x512xf32> to vector<2x128xf32>
    %26 = arith.negf %25 : vector<2x128xf32>
    %27 = math.exp %26 : vector<2x128xf32>
    %cst_11 = arith.constant 1.000000e+00 : f32
    %28 = vector.broadcast %cst_11 : f32 to vector<2x128xf32>
    %29 = arith.addf %28, %27 : vector<2x128xf32>
    %30 = arith.divf %28, %29 : vector<2x128xf32>
    %31 = arith.mulf %22, %5 : vector<2x128xf32>
    %32 = arith.mulf %16, %24 : vector<2x128xf32>
    %33 = arith.addf %31, %32 : vector<2x128xf32>
    %34 = math.tanh %33 : vector<2x128xf32>
    %35 = arith.mulf %30, %34 : vector<2x128xf32>
    %36 = arith.index_cast %c0_i32_6 : i32 to index
    %c0_12 = arith.constant 0 : index
    %c0_13 = arith.constant 0 : index
    %37 = vector.load %arg4[%36, %c0_12, %c0_13] : memref<8x2x128xf32, #tpu.memory_space<vmem>>, vector<1x2x128xf32>
    %38 = vector.shape_cast %37 : vector<1x2x128xf32> to vector<2x128xf32>
    %39 = vector.shape_cast %35 : vector<2x128xf32> to vector<1x2x128xf32>
    tpu.vector_store %arg4[%36, %c0_12, %c0_13], %39 {strides = array<i32>} : memref<8x2x128xf32, #tpu.memory_space<vmem>>, vector<1x2x128xf32>,
    %c1_i32 = arith.constant 1 : i32
    %40 = arith.index_cast %c1_i32 : i32 to index
    %c0_14 = arith.constant 0 : index
    %c0_15 = arith.constant 0 : index
    %41 = vector.load %arg2[%40, %c0_14, %c0_15] : memref<8x2x512xf32, #tpu.memory_space<vmem>>, vector<1x2x512xf32>
    %42 = vector.shape_cast %41 : vector<1x2x512xf32> to vector<2x512xf32>
    %cst_16 = arith.constant dense<0.000000e+00> : vector<2x512xf32>
    %43 = tpu.matmul %35, %3, %cst_16 {dimension_numbers = #tpu.dot_dimension_numbers<[1], [0], [0], [1], [0, 0, 1, 1], [], []>} : vector<2x128xf32>, vector<128x512xf32>, vector<2x512xf32> -> vector<2x512xf32>
    %44 = arith.addf %42, %43 : vector<2x512xf32>
    %45 = vector.extract_strided_slice %44 {offsets = [0, 0], sizes = [2, 128], strides = [1, 1]} : vector<2x512xf32> to vector<2x128xf32>
    %46 = arith.negf %45 : vector<2x128xf32>
    %47 = math.exp %46 : vector<2x128xf32>
    %cst_17 = arith.constant 1.000000e+00 : f32
    %48 = vector.broadcast %cst_17 : f32 to vector<2x128xf32>
    %49 = arith.addf %48, %47 : vector<2x128xf32>
    %50 = arith.divf %48, %49 : vector<2x128xf32>
    %51 = vector.extract_strided_slice %44 {offsets = [0, 128], sizes = [2, 128], strides = [1, 1]} : vector<2x512xf32> to vector<2x128xf32>
    %52 = arith.negf %51 : vector<2x128xf32>
    %53 = math.exp %52 : vector<2x128xf32>
    %cst_18 = arith.constant 1.000000e+00 : f32
    %54 = vector.broadcast %cst_18 : f32 to vector<2x128xf32>
    %55 = arith.addf %54, %53 : vector<2x128xf32>
    %56 = arith.divf %54, %55 : vector<2x128xf32>
    %57 = vector.extract_strided_slice %44 {offsets = [0, 256], sizes = [2, 128], strides = [1, 1]} : vector<2x512xf32> to vector<2x128xf32>
    %58 = math.tanh %57 : vector<2x128xf32>
    %59 = vector.extract_strided_slice %44 {offsets = [0, 384], sizes = [2, 128], strides = [1, 1]} : vector<2x512xf32> to vector<2x128xf32>
    %60 = arith.negf %59 : vector<2x128xf32>
    %61 = math.exp %60 : vector<2x128xf32>
    %cst_19 = arith.constant 1.000000e+00 : f32
    %62 = vector.broadcast %cst_19 : f32 to vector<2x128xf32>
    %63 = arith.addf %62, %61 : vector<2x128xf32>
    %64 = arith.divf %62, %63 : vector<2x128xf32>
    %65 = arith.mulf %56, %33 : vector<2x128xf32>
    %66 = arith.mulf %50, %58 : vector<2x128xf32>
    %67 = arith.addf %65, %66 : vector<2x128xf32>
    %68 = math.tanh %67 : vector<2x128xf32>
    %69 = arith.mulf %64, %68 : vector<2x128xf32>
    %70 = arith.index_cast %c1_i32 : i32 to index
    %c0_20 = arith.constant 0 : index
    %c0_21 = arith.constant 0 : index
    %71 = vector.load %arg4[%70, %c0_20, %c0_21] : memref<8x2x128xf32, #tpu.memory_space<vmem>>, vector<1x2x128xf32>
    %72 = vector.shape_cast %71 : vector<1x2x128xf32> to vector<2x128xf32>
    %73 = vector.shape_cast %69 : vector<2x128xf32> to vector<1x2x128xf32>
    tpu.vector_store %arg4[%70, %c0_20, %c0_21], %73 {strides = array<i32>} : memref<8x2x128xf32, #tpu.memory_space<vmem>>, vector<1x2x128xf32>,
    %c2_i32 = arith.constant 2 : i32
    %74 = arith.index_cast %c2_i32 : i32 to index
    %c0_22 = arith.constant 0 : index
    %c0_23 = arith.constant 0 : index
    %75 = vector.load %arg2[%74, %c0_22, %c0_23] : memref<8x2x512xf32, #tpu.memory_space<vmem>>, vector<1x2x512xf32>
    %76 = vector.shape_cast %75 : vector<1x2x512xf32> to vector<2x512xf32>
    %cst_24 = arith.constant dense<0.000000e+00> : vector<2x512xf32>
    %77 = tpu.matmul %69, %3, %cst_24 {dimension_numbers = #tpu.dot_dimension_numbers<[1], [0], [0], [1], [0, 0, 1, 1], [], []>} : vector<2x128xf32>, vector<128x512xf32>, vector<2x512xf32> -> vector<2x512xf32>
    %78 = arith.addf %76, %77 : vector<2x512xf32>
    %79 = vector.extract_strided_slice %78 {offsets = [0, 0], sizes = [2, 128], strides = [1, 1]} : vector<2x512xf32> to vector<2x128xf32>
    %80 = arith.negf %79 : vector<2x128xf32>
    %81 = math.exp %80 : vector<2x128xf32>
    %cst_25 = arith.constant 1.000000e+00 : f32
    %82 = vector.broadcast %cst_25 : f32 to vector<2x128xf32>
    %83 = arith.addf %82, %81 : vector<2x128xf32>
    %84 = arith.divf %82, %83 : vector<2x128xf32>
    %85 = vector.extract_strided_slice %78 {offsets = [0, 128], sizes = [2, 128], strides = [1, 1]} : vector<2x512xf32> to vector<2x128xf32>
    %86 = arith.negf %85 : vector<2x128xf32>
    %87 = math.exp %86 : vector<2x128xf32>
    %cst_26 = arith.constant 1.000000e+00 : f32
    %88 = vector.broadcast %cst_26 : f32 to vector<2x128xf32>
    %89 = arith.addf %88, %87 : vector<2x128xf32>
    %90 = arith.divf %88, %89 : vector<2x128xf32>
    %91 = vector.extract_strided_slice %78 {offsets = [0, 256], sizes = [2, 128], strides = [1, 1]} : vector<2x512xf32> to vector<2x128xf32>
    %92 = math.tanh %91 : vector<2x128xf32>
    %93 = vector.extract_strided_slice %78 {offsets = [0, 384], sizes = [2, 128], strides = [1, 1]} : vector<2x512xf32> to vector<2x128xf32>
    %94 = arith.negf %93 : vector<2x128xf32>
    %95 = math.exp %94 : vector<2x128xf32>
    %cst_27 = arith.constant 1.000000e+00 : f32
    %96 = vector.broadcast %cst_27 : f32 to vector<2x128xf32>
    %97 = arith.addf %96, %95 : vector<2x128xf32>
    %98 = arith.divf %96, %97 : vector<2x128xf32>
    %99 = arith.mulf %90, %67 : vector<2x128xf32>
    %100 = arith.mulf %84, %92 : vector<2x128xf32>
    %101 = arith.addf %99, %100 : vector<2x128xf32>
    %102 = math.tanh %101 : vector<2x128xf32>
    %103 = arith.mulf %98, %102 : vector<2x128xf32>
    %104 = arith.index_cast %c2_i32 : i32 to index
    %c0_28 = arith.constant 0 : index
    %c0_29 = arith.constant 0 : index
    %105 = vector.load %arg4[%104, %c0_28, %c0_29] : memref<8x2x128xf32, #tpu.memory_space<vmem>>, vector<1x2x128xf32>
    %106 = vector.shape_cast %105 : vector<1x2x128xf32> to vector<2x128xf32>
    %107 = vector.shape_cast %103 : vector<2x128xf32> to vector<1x2x128xf32>
    tpu.vector_store %arg4[%104, %c0_28, %c0_29], %107 {strides = array<i32>} : memref<8x2x128xf32, #tpu.memory_space<vmem>>, vector<1x2x128xf32>,
    %c3_i32 = arith.constant 3 : i32
    %108 = arith.index_cast %c3_i32 : i32 to index
    %c0_30 = arith.constant 0 : index
    %c0_31 = arith.constant 0 : index
    %109 = vector.load %arg2[%108, %c0_30, %c0_31] : memref<8x2x512xf32, #tpu.memory_space<vmem>>, vector<1x2x512xf32>
    %110 = vector.shape_cast %109 : vector<1x2x512xf32> to vector<2x512xf32>
    %cst_32 = arith.constant dense<0.000000e+00> : vector<2x512xf32>
    %111 = tpu.matmul %103, %3, %cst_32 {dimension_numbers = #tpu.dot_dimension_numbers<[1], [0], [0], [1], [0, 0, 1, 1], [], []>} : vector<2x128xf32>, vector<128x512xf32>, vector<2x512xf32> -> vector<2x512xf32>
    %112 = arith.addf %110, %111 : vector<2x512xf32>
    %113 = vector.extract_strided_slice %112 {offsets = [0, 0], sizes = [2, 128], strides = [1, 1]} : vector<2x512xf32> to vector<2x128xf32>
    %114 = arith.negf %113 : vector<2x128xf32>
    %115 = math.exp %114 : vector<2x128xf32>
    %cst_33 = arith.constant 1.000000e+00 : f32
    %116 = vector.broadcast %cst_33 : f32 to vector<2x128xf32>
    %117 = arith.addf %116, %115 : vector<2x128xf32>
    %118 = arith.divf %116, %117 : vector<2x128xf32>
    %119 = vector.extract_strided_slice %112 {offsets = [0, 128], sizes = [2, 128], strides = [1, 1]} : vector<2x512xf32> to vector<2x128xf32>
    %120 = arith.negf %119 : vector<2x128xf32>
    %121 = math.exp %120 : vector<2x128xf32>
    %cst_34 = arith.constant 1.000000e+00 : f32
    %122 = vector.broadcast %cst_34 : f32 to vector<2x128xf32>
    %123 = arith.addf %122, %121 : vector<2x128xf32>
    %124 = arith.divf %122, %123 : vector<2x128xf32>
    %125 = vector.extract_strided_slice %112 {offsets = [0, 256], sizes = [2, 128], strides = [1, 1]} : vector<2x512xf32> to vector<2x128xf32>
    %126 = math.tanh %125 : vector<2x128xf32>
    %127 = vector.extract_strided_slice %112 {offsets = [0, 384], sizes = [2, 128], strides = [1, 1]} : vector<2x512xf32> to vector<2x128xf32>
    %128 = arith.negf %127 : vector<2x128xf32>
    %129 = math.exp %128 : vector<2x128xf32>
    %cst_35 = arith.constant 1.000000e+00 : f32
    %130 = vector.broadcast %cst_35 : f32 to vector<2x128xf32>
    %131 = arith.addf %130, %129 : vector<2x128xf32>
    %132 = arith.divf %130, %131 : vector<2x128xf32>
    %133 = arith.mulf %124, %101 : vector<2x128xf32>
    %134 = arith.mulf %118, %126 : vector<2x128xf32>
    %135 = arith.addf %133, %134 : vector<2x128xf32>
    %136 = math.tanh %135 : vector<2x128xf32>
    %137 = arith.mulf %132, %136 : vector<2x128xf32>
    %138 = arith.index_cast %c3_i32 : i32 to index
    %c0_36 = arith.constant 0 : index
    %c0_37 = arith.constant 0 : index
    %139 = vector.load %arg4[%138, %c0_36, %c0_37] : memref<8x2x128xf32, #tpu.memory_space<vmem>>, vector<1x2x128xf32>
    %140 = vector.shape_cast %139 : vector<1x2x128xf32> to vector<2x128xf32>
    %141 = vector.shape_cast %137 : vector<2x128xf32> to vector<1x2x128xf32>
    tpu.vector_store %arg4[%138, %c0_36, %c0_37], %141 {strides = array<i32>} : memref<8x2x128xf32, #tpu.memory_space<vmem>>, vector<1x2x128xf32>,
    %c4_i32 = arith.constant 4 : i32
    %142 = arith.index_cast %c4_i32 : i32 to index
    %c0_38 = arith.constant 0 : index
    %c0_39 = arith.constant 0 : index
    %143 = vector.load %arg2[%142, %c0_38, %c0_39] : memref<8x2x512xf32, #tpu.memory_space<vmem>>, vector<1x2x512xf32>
    %144 = vector.shape_cast %143 : vector<1x2x512xf32> to vector<2x512xf32>
    %cst_40 = arith.constant dense<0.000000e+00> : vector<2x512xf32>
    %145 = tpu.matmul %137, %3, %cst_40 {dimension_numbers = #tpu.dot_dimension_numbers<[1], [0], [0], [1], [0, 0, 1, 1], [], []>} : vector<2x128xf32>, vector<128x512xf32>, vector<2x512xf32> -> vector<2x512xf32>
    %146 = arith.addf %144, %145 : vector<2x512xf32>
    %147 = vector.extract_strided_slice %146 {offsets = [0, 0], sizes = [2, 128], strides = [1, 1]} : vector<2x512xf32> to vector<2x128xf32>
    %148 = arith.negf %147 : vector<2x128xf32>
    %149 = math.exp %148 : vector<2x128xf32>
    %cst_41 = arith.constant 1.000000e+00 : f32
    %150 = vector.broadcast %cst_41 : f32 to vector<2x128xf32>
    %151 = arith.addf %150, %149 : vector<2x128xf32>
    %152 = arith.divf %150, %151 : vector<2x128xf32>
    %153 = vector.extract_strided_slice %146 {offsets = [0, 128], sizes = [2, 128], strides = [1, 1]} : vector<2x512xf32> to vector<2x128xf32>
    %154 = arith.negf %153 : vector<2x128xf32>
    %155 = math.exp %154 : vector<2x128xf32>
    %cst_42 = arith.constant 1.000000e+00 : f32
    %156 = vector.broadcast %cst_42 : f32 to vector<2x128xf32>
    %157 = arith.addf %156, %155 : vector<2x128xf32>
    %158 = arith.divf %156, %157 : vector<2x128xf32>
    %159 = vector.extract_strided_slice %146 {offsets = [0, 256], sizes = [2, 128], strides = [1, 1]} : vector<2x512xf32> to vector<2x128xf32>
    %160 = math.tanh %159 : vector<2x128xf32>
    %161 = vector.extract_strided_slice %146 {offsets = [0, 384], sizes = [2, 128], strides = [1, 1]} : vector<2x512xf32> to vector<2x128xf32>
    %162 = arith.negf %161 : vector<2x128xf32>
    %163 = math.exp %162 : vector<2x128xf32>
    %cst_43 = arith.constant 1.000000e+00 : f32
    %164 = vector.broadcast %cst_43 : f32 to vector<2x128xf32>
    %165 = arith.addf %164, %163 : vector<2x128xf32>
    %166 = arith.divf %164, %165 : vector<2x128xf32>
    %167 = arith.mulf %158, %135 : vector<2x128xf32>
    %168 = arith.mulf %152, %160 : vector<2x128xf32>
    %169 = arith.addf %167, %168 : vector<2x128xf32>
    %170 = math.tanh %169 : vector<2x128xf32>
    %171 = arith.mulf %166, %170 : vector<2x128xf32>
    %172 = arith.index_cast %c4_i32 : i32 to index
    %c0_44 = arith.constant 0 : index
    %c0_45 = arith.constant 0 : index
    %173 = vector.load %arg4[%172, %c0_44, %c0_45] : memref<8x2x128xf32, #tpu.memory_space<vmem>>, vector<1x2x128xf32>
    %174 = vector.shape_cast %173 : vector<1x2x128xf32> to vector<2x128xf32>
    %175 = vector.shape_cast %171 : vector<2x128xf32> to vector<1x2x128xf32>
    tpu.vector_store %arg4[%172, %c0_44, %c0_45], %175 {strides = array<i32>} : memref<8x2x128xf32, #tpu.memory_space<vmem>>, vector<1x2x128xf32>,
    %c5_i32 = arith.constant 5 : i32
    %176 = arith.index_cast %c5_i32 : i32 to index
    %c0_46 = arith.constant 0 : index
    %c0_47 = arith.constant 0 : index
    %177 = vector.load %arg2[%176, %c0_46, %c0_47] : memref<8x2x512xf32, #tpu.memory_space<vmem>>, vector<1x2x512xf32>
    %178 = vector.shape_cast %177 : vector<1x2x512xf32> to vector<2x512xf32>
    %cst_48 = arith.constant dense<0.000000e+00> : vector<2x512xf32>
    %179 = tpu.matmul %171, %3, %cst_48 {dimension_numbers = #tpu.dot_dimension_numbers<[1], [0], [0], [1], [0, 0, 1, 1], [], []>} : vector<2x128xf32>, vector<128x512xf32>, vector<2x512xf32> -> vector<2x512xf32>
    %180 = arith.addf %178, %179 : vector<2x512xf32>
    %181 = vector.extract_strided_slice %180 {offsets = [0, 0], sizes = [2, 128], strides = [1, 1]} : vector<2x512xf32> to vector<2x128xf32>
    %182 = arith.negf %181 : vector<2x128xf32>
    %183 = math.exp %182 : vector<2x128xf32>
    %cst_49 = arith.constant 1.000000e+00 : f32
    %184 = vector.broadcast %cst_49 : f32 to vector<2x128xf32>
    %185 = arith.addf %184, %183 : vector<2x128xf32>
    %186 = arith.divf %184, %185 : vector<2x128xf32>
    %187 = vector.extract_strided_slice %180 {offsets = [0, 128], sizes = [2, 128], strides = [1, 1]} : vector<2x512xf32> to vector<2x128xf32>
    %188 = arith.negf %187 : vector<2x128xf32>
    %189 = math.exp %188 : vector<2x128xf32>
    %cst_50 = arith.constant 1.000000e+00 : f32
    %190 = vector.broadcast %cst_50 : f32 to vector<2x128xf32>
    %191 = arith.addf %190, %189 : vector<2x128xf32>
    %192 = arith.divf %190, %191 : vector<2x128xf32>
    %193 = vector.extract_strided_slice %180 {offsets = [0, 256], sizes = [2, 128], strides = [1, 1]} : vector<2x512xf32> to vector<2x128xf32>
    %194 = math.tanh %193 : vector<2x128xf32>
    %195 = vector.extract_strided_slice %180 {offsets = [0, 384], sizes = [2, 128], strides = [1, 1]} : vector<2x512xf32> to vector<2x128xf32>
    %196 = arith.negf %195 : vector<2x128xf32>
    %197 = math.exp %196 : vector<2x128xf32>
    %cst_51 = arith.constant 1.000000e+00 : f32
    %198 = vector.broadcast %cst_51 : f32 to vector<2x128xf32>
    %199 = arith.addf %198, %197 : vector<2x128xf32>
    %200 = arith.divf %198, %199 : vector<2x128xf32>
    %201 = arith.mulf %192, %169 : vector<2x128xf32>
    %202 = arith.mulf %186, %194 : vector<2x128xf32>
    %203 = arith.addf %201, %202 : vector<2x128xf32>
    %204 = math.tanh %203 : vector<2x128xf32>
    %205 = arith.mulf %200, %204 : vector<2x128xf32>
    %206 = arith.index_cast %c5_i32 : i32 to index
    %c0_52 = arith.constant 0 : index
    %c0_53 = arith.constant 0 : index
    %207 = vector.load %arg4[%206, %c0_52, %c0_53] : memref<8x2x128xf32, #tpu.memory_space<vmem>>, vector<1x2x128xf32>
    %208 = vector.shape_cast %207 : vector<1x2x128xf32> to vector<2x128xf32>
    %209 = vector.shape_cast %205 : vector<2x128xf32> to vector<1x2x128xf32>
    tpu.vector_store %arg4[%206, %c0_52, %c0_53], %209 {strides = array<i32>} : memref<8x2x128xf32, #tpu.memory_space<vmem>>, vector<1x2x128xf32>,
    %c6_i32 = arith.constant 6 : i32
    %210 = arith.index_cast %c6_i32 : i32 to index
    %c0_54 = arith.constant 0 : index
    %c0_55 = arith.constant 0 : index
    %211 = vector.load %arg2[%210, %c0_54, %c0_55] : memref<8x2x512xf32, #tpu.memory_space<vmem>>, vector<1x2x512xf32>
    %212 = vector.shape_cast %211 : vector<1x2x512xf32> to vector<2x512xf32>
    %cst_56 = arith.constant dense<0.000000e+00> : vector<2x512xf32>
    %213 = tpu.matmul %205, %3, %cst_56 {dimension_numbers = #tpu.dot_dimension_numbers<[1], [0], [0], [1], [0, 0, 1, 1], [], []>} : vector<2x128xf32>, vector<128x512xf32>, vector<2x512xf32> -> vector<2x512xf32>
    %214 = arith.addf %212, %213 : vector<2x512xf32>
    %215 = vector.extract_strided_slice %214 {offsets = [0, 0], sizes = [2, 128], strides = [1, 1]} : vector<2x512xf32> to vector<2x128xf32>
    %216 = arith.negf %215 : vector<2x128xf32>
    %217 = math.exp %216 : vector<2x128xf32>
    %cst_57 = arith.constant 1.000000e+00 : f32
    %218 = vector.broadcast %cst_57 : f32 to vector<2x128xf32>
    %219 = arith.addf %218, %217 : vector<2x128xf32>
    %220 = arith.divf %218, %219 : vector<2x128xf32>
    %221 = vector.extract_strided_slice %214 {offsets = [0, 128], sizes = [2, 128], strides = [1, 1]} : vector<2x512xf32> to vector<2x128xf32>
    %222 = arith.negf %221 : vector<2x128xf32>
    %223 = math.exp %222 : vector<2x128xf32>
    %cst_58 = arith.constant 1.000000e+00 : f32
    %224 = vector.broadcast %cst_58 : f32 to vector<2x128xf32>
    %225 = arith.addf %224, %223 : vector<2x128xf32>
    %226 = arith.divf %224, %225 : vector<2x128xf32>
    %227 = vector.extract_strided_slice %214 {offsets = [0, 256], sizes = [2, 128], strides = [1, 1]} : vector<2x512xf32> to vector<2x128xf32>
    %228 = math.tanh %227 : vector<2x128xf32>
    %229 = vector.extract_strided_slice %214 {offsets = [0, 384], sizes = [2, 128], strides = [1, 1]} : vector<2x512xf32> to vector<2x128xf32>
    %230 = arith.negf %229 : vector<2x128xf32>
    %231 = math.exp %230 : vector<2x128xf32>
    %cst_59 = arith.constant 1.000000e+00 : f32
    %232 = vector.broadcast %cst_59 : f32 to vector<2x128xf32>
    %233 = arith.addf %232, %231 : vector<2x128xf32>
    %234 = arith.divf %232, %233 : vector<2x128xf32>
    %235 = arith.mulf %226, %203 : vector<2x128xf32>
    %236 = arith.mulf %220, %228 : vector<2x128xf32>
    %237 = arith.addf %235, %236 : vector<2x128xf32>
    %238 = math.tanh %237 : vector<2x128xf32>
    %239 = arith.mulf %234, %238 : vector<2x128xf32>
    %240 = arith.index_cast %c6_i32 : i32 to index
    %c0_60 = arith.constant 0 : index
    %c0_61 = arith.constant 0 : index
    %241 = vector.load %arg4[%240, %c0_60, %c0_61] : memref<8x2x128xf32, #tpu.memory_space<vmem>>, vector<1x2x128xf32>
    %242 = vector.shape_cast %241 : vector<1x2x128xf32> to vector<2x128xf32>
    %243 = vector.shape_cast %239 : vector<2x128xf32> to vector<1x2x128xf32>
    tpu.vector_store %arg4[%240, %c0_60, %c0_61], %243 {strides = array<i32>} : memref<8x2x128xf32, #tpu.memory_space<vmem>>, vector<1x2x128xf32>,
    %c7_i32 = arith.constant 7 : i32
    %244 = arith.index_cast %c7_i32 : i32 to index
    %c0_62 = arith.constant 0 : index
    %c0_63 = arith.constant 0 : index
    %245 = vector.load %arg2[%244, %c0_62, %c0_63] : memref<8x2x512xf32, #tpu.memory_space<vmem>>, vector<1x2x512xf32>
    %246 = vector.shape_cast %245 : vector<1x2x512xf32> to vector<2x512xf32>
    %cst_64 = arith.constant dense<0.000000e+00> : vector<2x512xf32>
    %247 = tpu.matmul %239, %3, %cst_64 {dimension_numbers = #tpu.dot_dimension_numbers<[1], [0], [0], [1], [0, 0, 1, 1], [], []>} : vector<2x128xf32>, vector<128x512xf32>, vector<2x512xf32> -> vector<2x512xf32>
    %248 = arith.addf %246, %247 : vector<2x512xf32>
    %249 = vector.extract_strided_slice %248 {offsets = [0, 0], sizes = [2, 128], strides = [1, 1]} : vector<2x512xf32> to vector<2x128xf32>
    %250 = arith.negf %249 : vector<2x128xf32>
    %251 = math.exp %250 : vector<2x128xf32>
    %cst_65 = arith.constant 1.000000e+00 : f32
    %252 = vector.broadcast %cst_65 : f32 to vector<2x128xf32>
    %253 = arith.addf %252, %251 : vector<2x128xf32>
    %254 = arith.divf %252, %253 : vector<2x128xf32>
    %255 = vector.extract_strided_slice %248 {offsets = [0, 128], sizes = [2, 128], strides = [1, 1]} : vector<2x512xf32> to vector<2x128xf32>
    %256 = arith.negf %255 : vector<2x128xf32>
    %257 = math.exp %256 : vector<2x128xf32>
    %cst_66 = arith.constant 1.000000e+00 : f32
    %258 = vector.broadcast %cst_66 : f32 to vector<2x128xf32>
    %259 = arith.addf %258, %257 : vector<2x128xf32>
    %260 = arith.divf %258, %259 : vector<2x128xf32>
    %261 = vector.extract_strided_slice %248 {offsets = [0, 256], sizes = [2, 128], strides = [1, 1]} : vector<2x512xf32> to vector<2x128xf32>
    %262 = math.tanh %261 : vector<2x128xf32>
    %263 = vector.extract_strided_slice %248 {offsets = [0, 384], sizes = [2, 128], strides = [1, 1]} : vector<2x512xf32> to vector<2x128xf32>
    %264 = arith.negf %263 : vector<2x128xf32>
    %265 = math.exp %264 : vector<2x128xf32>
    %cst_67 = arith.constant 1.000000e+00 : f32
    %266 = vector.broadcast %cst_67 : f32 to vector<2x128xf32>
    %267 = arith.addf %266, %265 : vector<2x128xf32>
    %268 = arith.divf %266, %267 : vector<2x128xf32>
    %269 = arith.mulf %260, %237 : vector<2x128xf32>
    %270 = arith.mulf %254, %262 : vector<2x128xf32>
    %271 = arith.addf %269, %270 : vector<2x128xf32>
    %272 = math.tanh %271 : vector<2x128xf32>
    %273 = arith.mulf %268, %272 : vector<2x128xf32>
    %274 = arith.index_cast %c7_i32 : i32 to index
    %c0_68 = arith.constant 0 : index
    %c0_69 = arith.constant 0 : index
    %275 = vector.load %arg4[%274, %c0_68, %c0_69] : memref<8x2x128xf32, #tpu.memory_space<vmem>>, vector<1x2x128xf32>
    %276 = vector.shape_cast %275 : vector<1x2x128xf32> to vector<2x128xf32>
    %277 = vector.shape_cast %273 : vector<2x128xf32> to vector<1x2x128xf32>
    tpu.vector_store %arg4[%274, %c0_68, %c0_69], %277 {strides = array<i32>} : memref<8x2x128xf32, #tpu.memory_space<vmem>>, vector<1x2x128xf32>,
    %c8_i32 = arith.constant 8 : i32
    %c0_70 = arith.constant 0 : index
    %c0_71 = arith.constant 0 : index
    %278 = vector.load %arg5[%c0_70, %c0_71] : memref<2x128xf32, #tpu.memory_space<vmem>>, vector<2x128xf32>
    tpu.vector_store %arg5[%c0_70, %c0_71], %273 {strides = array<i32>} : memref<2x128xf32, #tpu.memory_space<vmem>>, vector<2x128xf32>,
    %c0_72 = arith.constant 0 : index
    %c0_73 = arith.constant 0 : index
    %279 = vector.load %arg6[%c0_72, %c0_73] : memref<2x128xf32, #tpu.memory_space<vmem>>, vector<2x128xf32>
    tpu.vector_store %arg6[%c0_72, %c0_73], %271 {strides = array<i32>} : memref<2x128xf32, #tpu.memory_space<vmem>>, vector<2x128xf32>,
    return
  }
  func.func @transform_0(%arg0: i32, %arg1: i32) -> (i32, i32, i32) {
    %c0_i32 = arith.constant 0 : i32
    %c0_i32_0 = arith.constant 0 : i32
    return %arg1, %arg0, %c0_i32 : i32, i32, i32
  }
  func.func @transform_1(%arg0: i32, %arg1: i32) -> (i32, i32) {
    %c0_i32 = arith.constant 0 : i32
    %c0_i32_0 = arith.constant 0 : i32
    %c0_i32_1 = arith.constant 0 : i32
    return %c0_i32, %c0_i32_0 : i32, i32
  }
  func.func @transform_2(%arg0: i32, %arg1: i32) -> (i32, i32, i32) {
    %c0_i32 = arith.constant 0 : i32
    %c0_i32_0 = arith.constant 0 : i32
    return %arg1, %arg0, %c0_i32 : i32, i32, i32
  }
}

module attributes {stable_mosaic.version = 11 : i64} {
  func.func @_linear_kernel(%arg0: i32, %arg1: memref<16x128xf32, #tpu.memory_space<vmem>>, %arg2: memref<128x512xf32, #tpu.memory_space<vmem>>, %arg3: memref<1x512xf32, #tpu.memory_space<vmem>>, %arg4: memref<16x512xf32, #tpu.memory_space<vmem>>) attributes {dimension_semantics = [#tpu.dimension_semantics<parallel>], iteration_bounds = array<i64: 1>, scalar_prefetch = 0 : i64, scratch_operands = 0 : i64, tpu.core_type = #tpu.core_type<tc>, window_params = [{transform_indices = @transform_0, window_bounds = array<i64: 16, 128>}, {pipeline_mode = #tpu.pipeline_mode<synchronous>, transform_indices = @transform_1, window_bounds = array<i64: 128, 512>}, {pipeline_mode = #tpu.pipeline_mode<synchronous>, transform_indices = @transform_2, window_bounds = array<i64: 1, 512>}, {transform_indices = @transform_3, window_bounds = array<i64: 16, 512>}]} {
    %c0 = arith.constant 0 : index
    %c0_0 = arith.constant 0 : index
    %0 = vector.load %arg1[%c0, %c0_0] : memref<16x128xf32, #tpu.memory_space<vmem>>, vector<16x128xf32>
    %c0_1 = arith.constant 0 : index
    %c0_2 = arith.constant 0 : index
    %1 = vector.load %arg2[%c0_1, %c0_2] : memref<128x512xf32, #tpu.memory_space<vmem>>, vector<128x512xf32>
    %cst = arith.constant dense<0.000000e+00> : vector<16x512xf32>
    %2 = tpu.matmul %0, %1, %cst {dimension_numbers = #tpu.dot_dimension_numbers<[1], [0], [0], [1], [0, 0, 1, 1], [], []>} : vector<16x128xf32>, vector<128x512xf32>, vector<16x512xf32> -> vector<16x512xf32>
    %c0_3 = arith.constant 0 : index
    %c0_4 = arith.constant 0 : index
    %3 = vector.load %arg3[%c0_3, %c0_4] : memref<1x512xf32, #tpu.memory_space<vmem>>, vector<1x512xf32>
    %4 = vector.broadcast %3 : vector<1x512xf32> to vector<16x512xf32>
    %5 = arith.addf %2, %4 : vector<16x512xf32>
    %c0_5 = arith.constant 0 : index
    %c0_6 = arith.constant 0 : index
    %6 = vector.load %arg4[%c0_5, %c0_6] : memref<16x512xf32, #tpu.memory_space<vmem>>, vector<16x512xf32>
    tpu.vector_store %arg4[%c0_5, %c0_6], %5 {strides = array<i32>} : memref<16x512xf32, #tpu.memory_space<vmem>>, vector<16x512xf32>,
    return
  }
  func.func @transform_0(%arg0: i32) -> (i32, i32) {
    %c0_i32 = arith.constant 0 : i32
    %c0_i32_0 = arith.constant 0 : i32
    return %arg0, %c0_i32 : i32, i32
  }
  func.func @transform_1(%arg0: i32) -> (i32, i32) {
    %c0_i32 = arith.constant 0 : i32
    %c0_i32_0 = arith.constant 0 : i32
    %c0_i32_1 = arith.constant 0 : i32
    return %c0_i32, %c0_i32_0 : i32, i32
  }
  func.func @transform_2(%arg0: i32) -> (i32, i32) {
    %c0_i32 = arith.constant 0 : i32
    %c0_i32_0 = arith.constant 0 : i32
    %c0_i32_1 = arith.constant 0 : i32
    return %c0_i32, %c0_i32_0 : i32, i32
  }
  func.func @transform_3(%arg0: i32) -> (i32, i32) {
    %c0_i32 = arith.constant 0 : i32
    %c0_i32_0 = arith.constant 0 : i32
    return %arg0, %c0_i32 : i32, i32
  }
}

module attributes {stable_mosaic.version = 11 : i64} {
  func.func @_lstm_rec_kernel(%arg0: i32, %arg1: i32, %arg2: memref<8x2x512xf32, #tpu.memory_space<vmem>>, %arg3: memref<128x512xf32, #tpu.memory_space<vmem>>, %arg4: memref<8x2x128xf32, #tpu.memory_space<vmem>>, %arg5: memref<2x128xf32, #tpu.memory_space<vmem>>, %arg6: memref<2x128xf32, #tpu.memory_space<vmem>>) attributes {dimension_semantics = [#tpu.dimension_semantics<parallel>, #tpu.dimension_semantics<arbitrary>], iteration_bounds = array<i64: 1, 1>, scalar_prefetch = 0 : i64, scratch_operands = 2 : i64, tpu.core_type = #tpu.core_type<tc>, window_params = [{transform_indices = @transform_0, window_bounds = array<i64: 8, 2, 512>}, {pipeline_mode = #tpu.pipeline_mode<synchronous>, transform_indices = @transform_1, window_bounds = array<i64: 128, 512>}, {transform_indices = @transform_2, window_bounds = array<i64: 8, 2, 128>}]} {
    %c0_i32 = arith.constant 0 : i32
    %0 = arith.cmpi eq, %arg1, %c0_i32 : i32
    %1 = arith.extui %0 : i1 to i32
    %c0_i32_0 = arith.constant 0 : i32
    %2 = arith.cmpi ne, %1, %c0_i32_0 : i32
    scf.if %2 {
      %cst_74 = arith.constant 0.000000e+00 : f32
      %280 = vector.broadcast %cst_74 : f32 to vector<2x128xf32>
      %c0_75 = arith.constant 0 : index
      %c0_76 = arith.constant 0 : index
      %281 = vector.load %arg5[%c0_75, %c0_76] : memref<2x128xf32, #tpu.memory_space<vmem>>, vector<2x128xf32>
      tpu.vector_store %arg5[%c0_75, %c0_76], %280 {strides = array<i32>} : memref<2x128xf32, #tpu.memory_space<vmem>>, vector<2x128xf32>,
      %cst_77 = arith.constant 0.000000e+00 : f32
      %282 = vector.broadcast %cst_77 : f32 to vector<2x128xf32>
      %c0_78 = arith.constant 0 : index
      %c0_79 = arith.constant 0 : index
      %283 = vector.load %arg6[%c0_78, %c0_79] : memref<2x128xf32, #tpu.memory_space<vmem>>, vector<2x128xf32>
      tpu.vector_store %arg6[%c0_78, %c0_79], %282 {strides = array<i32>} : memref<2x128xf32, #tpu.memory_space<vmem>>, vector<2x128xf32>,
    } else {
    }
    %c0 = arith.constant 0 : index
    %c0_1 = arith.constant 0 : index
    %3 = vector.load %arg3[%c0, %c0_1] : memref<128x512xf32, #tpu.memory_space<vmem>>, vector<128x512xf32>
    %c0_2 = arith.constant 0 : index
    %c0_3 = arith.constant 0 : index
    %4 = vector.load %arg5[%c0_2, %c0_3] : memref<2x128xf32, #tpu.memory_space<vmem>>, vector<2x128xf32>
    %c0_4 = arith.constant 0 : index
    %c0_5 = arith.constant 0 : index
    %5 = vector.load %arg6[%c0_4, %c0_5] : memref<2x128xf32, #tpu.memory_space<vmem>>, vector<2x128xf32>
    %c0_i32_6 = arith.constant 0 : i32
    %6 = arith.index_cast %c0_i32_6 : i32 to index
    %c0_7 = arith.constant 0 : index
    %c0_8 = arith.constant 0 : index
    %7 = vector.load %arg2[%6, %c0_7, %c0_8] : memref<8x2x512xf32, #tpu.memory_space<vmem>>, vector<1x2x512xf32>
    %8 = vector.shape_cast %7 : vector<1x2x512xf32> to vector<2x512xf32>
    %cst = arith.constant dense<0.000000e+00> : vector<2x512xf32>
    %9 = tpu.matmul %4, %3, %cst {dimension_numbers = #tpu.dot_dimension_numbers<[1], [0], [0], [1], [0, 0, 1, 1], [], []>} : vector<2x128xf32>, vector<128x512xf32>, vector<2x512xf32> -> vector<2x512xf32>
    %10 = arith.addf %8, %9 : vector<2x512xf32>
    %11 = vector.extract_strided_slice %10 {offsets = [0, 0], sizes = [2, 128], strides = [1, 1]} : vector<2x512xf32> to vector<2x128xf32>
    %12 = arith.negf %11 : vector<2x128xf32>
    %13 = math.exp %12 : vector<2x128xf32>
    %cst_9 = arith.constant 1.000000e+00 : f32
    %14 = vector.broadcast %cst_9 : f32 to vector<2x128xf32>
    %15 = arith.addf %14, %13 : vector<2x128xf32>
    %16 = arith.divf %14, %15 : vector<2x128xf32>
    %17 = vector.extract_strided_slice %10 {offsets = [0, 128], sizes = [2, 128], strides = [1, 1]} : vector<2x512xf32> to vector<2x128xf32>
    %18 = arith.negf %17 : vector<2x128xf32>
    %19 = math.exp %18 : vector<2x128xf32>
    %cst_10 = arith.constant 1.000000e+00 : f32
    %20 = vector.broadcast %cst_10 : f32 to vector<2x128xf32>
    %21 = arith.addf %20, %19 : vector<2x128xf32>
    %22 = arith.divf %20, %21 : vector<2x128xf32>
    %23 = vector.extract_strided_slice %10 {offsets = [0, 256], sizes = [2, 128], strides = [1, 1]} : vector<2x512xf32> to vector<2x128xf32>
    %24 = math.tanh %23 : vector<2x128xf32>
    %25 = vector.extract_strided_slice %10 {offsets = [0, 384], sizes = [2, 128], strides = [1, 1]} : vector<2x512xf32> to vector<2x128xf32>
    %26 = arith.negf %25 : vector<2x128xf32>
    %27 = math.exp %26 : vector<2x128xf32>
    %cst_11 = arith.constant 1.000000e+00 : f32
    %28 = vector.broadcast %cst_11 : f32 to vector<2x128xf32>
    %29 = arith.addf %28, %27 : vector<2x128xf32>
    %30 = arith.divf %28, %29 : vector<2x128xf32>
    %31 = arith.mulf %22, %5 : vector<2x128xf32>
    %32 = arith.mulf %16, %24 : vector<2x128xf32>
    %33 = arith.addf %31, %32 : vector<2x128xf32>
    %34 = math.tanh %33 : vector<2x128xf32>
    %35 = arith.mulf %30, %34 : vector<2x128xf32>
    %36 = arith.index_cast %c0_i32_6 : i32 to index
    %c0_12 = arith.constant 0 : index
    %c0_13 = arith.constant 0 : index
    %37 = vector.load %arg4[%36, %c0_12, %c0_13] : memref<8x2x128xf32, #tpu.memory_space<vmem>>, vector<1x2x128xf32>
    %38 = vector.shape_cast %37 : vector<1x2x128xf32> to vector<2x128xf32>
    %39 = vector.shape_cast %35 : vector<2x128xf32> to vector<1x2x128xf32>
    tpu.vector_store %arg4[%36, %c0_12, %c0_13], %39 {strides = array<i32>} : memref<8x2x128xf32, #tpu.memory_space<vmem>>, vector<1x2x128xf32>,
    %c1_i32 = arith.constant 1 : i32
    %40 = arith.index_cast %c1_i32 : i32 to index
    %c0_14 = arith.constant 0 : index
    %c0_15 = arith.constant 0 : index
    %41 = vector.load %arg2[%40, %c0_14, %c0_15] : memref<8x2x512xf32, #tpu.memory_space<vmem>>, vector<1x2x512xf32>
    %42 = vector.shape_cast %41 : vector<1x2x512xf32> to vector<2x512xf32>
    %cst_16 = arith.constant dense<0.000000e+00> : vector<2x512xf32>
    %43 = tpu.matmul %35, %3, %cst_16 {dimension_numbers = #tpu.dot_dimension_numbers<[1], [0], [0], [1], [0, 0, 1, 1], [], []>} : vector<2x128xf32>, vector<128x512xf32>, vector<2x512xf32> -> vector<2x512xf32>
    %44 = arith.addf %42, %43 : vector<2x512xf32>
    %45 = vector.extract_strided_slice %44 {offsets = [0, 0], sizes = [2, 128], strides = [1, 1]} : vector<2x512xf32> to vector<2x128xf32>
    %46 = arith.negf %45 : vector<2x128xf32>
    %47 = math.exp %46 : vector<2x128xf32>
    %cst_17 = arith.constant 1.000000e+00 : f32
    %48 = vector.broadcast %cst_17 : f32 to vector<2x128xf32>
    %49 = arith.addf %48, %47 : vector<2x128xf32>
    %50 = arith.divf %48, %49 : vector<2x128xf32>
    %51 = vector.extract_strided_slice %44 {offsets = [0, 128], sizes = [2, 128], strides = [1, 1]} : vector<2x512xf32> to vector<2x128xf32>
    %52 = arith.negf %51 : vector<2x128xf32>
    %53 = math.exp %52 : vector<2x128xf32>
    %cst_18 = arith.constant 1.000000e+00 : f32
    %54 = vector.broadcast %cst_18 : f32 to vector<2x128xf32>
    %55 = arith.addf %54, %53 : vector<2x128xf32>
    %56 = arith.divf %54, %55 : vector<2x128xf32>
    %57 = vector.extract_strided_slice %44 {offsets = [0, 256], sizes = [2, 128], strides = [1, 1]} : vector<2x512xf32> to vector<2x128xf32>
    %58 = math.tanh %57 : vector<2x128xf32>
    %59 = vector.extract_strided_slice %44 {offsets = [0, 384], sizes = [2, 128], strides = [1, 1]} : vector<2x512xf32> to vector<2x128xf32>
    %60 = arith.negf %59 : vector<2x128xf32>
    %61 = math.exp %60 : vector<2x128xf32>
    %cst_19 = arith.constant 1.000000e+00 : f32
    %62 = vector.broadcast %cst_19 : f32 to vector<2x128xf32>
    %63 = arith.addf %62, %61 : vector<2x128xf32>
    %64 = arith.divf %62, %63 : vector<2x128xf32>
    %65 = arith.mulf %56, %33 : vector<2x128xf32>
    %66 = arith.mulf %50, %58 : vector<2x128xf32>
    %67 = arith.addf %65, %66 : vector<2x128xf32>
    %68 = math.tanh %67 : vector<2x128xf32>
    %69 = arith.mulf %64, %68 : vector<2x128xf32>
    %70 = arith.index_cast %c1_i32 : i32 to index
    %c0_20 = arith.constant 0 : index
    %c0_21 = arith.constant 0 : index
    %71 = vector.load %arg4[%70, %c0_20, %c0_21] : memref<8x2x128xf32, #tpu.memory_space<vmem>>, vector<1x2x128xf32>
    %72 = vector.shape_cast %71 : vector<1x2x128xf32> to vector<2x128xf32>
    %73 = vector.shape_cast %69 : vector<2x128xf32> to vector<1x2x128xf32>
    tpu.vector_store %arg4[%70, %c0_20, %c0_21], %73 {strides = array<i32>} : memref<8x2x128xf32, #tpu.memory_space<vmem>>, vector<1x2x128xf32>,
    %c2_i32 = arith.constant 2 : i32
    %74 = arith.index_cast %c2_i32 : i32 to index
    %c0_22 = arith.constant 0 : index
    %c0_23 = arith.constant 0 : index
    %75 = vector.load %arg2[%74, %c0_22, %c0_23] : memref<8x2x512xf32, #tpu.memory_space<vmem>>, vector<1x2x512xf32>
    %76 = vector.shape_cast %75 : vector<1x2x512xf32> to vector<2x512xf32>
    %cst_24 = arith.constant dense<0.000000e+00> : vector<2x512xf32>
    %77 = tpu.matmul %69, %3, %cst_24 {dimension_numbers = #tpu.dot_dimension_numbers<[1], [0], [0], [1], [0, 0, 1, 1], [], []>} : vector<2x128xf32>, vector<128x512xf32>, vector<2x512xf32> -> vector<2x512xf32>
    %78 = arith.addf %76, %77 : vector<2x512xf32>
    %79 = vector.extract_strided_slice %78 {offsets = [0, 0], sizes = [2, 128], strides = [1, 1]} : vector<2x512xf32> to vector<2x128xf32>
    %80 = arith.negf %79 : vector<2x128xf32>
    %81 = math.exp %80 : vector<2x128xf32>
    %cst_25 = arith.constant 1.000000e+00 : f32
    %82 = vector.broadcast %cst_25 : f32 to vector<2x128xf32>
    %83 = arith.addf %82, %81 : vector<2x128xf32>
    %84 = arith.divf %82, %83 : vector<2x128xf32>
    %85 = vector.extract_strided_slice %78 {offsets = [0, 128], sizes = [2, 128], strides = [1, 1]} : vector<2x512xf32> to vector<2x128xf32>
    %86 = arith.negf %85 : vector<2x128xf32>
    %87 = math.exp %86 : vector<2x128xf32>
    %cst_26 = arith.constant 1.000000e+00 : f32
    %88 = vector.broadcast %cst_26 : f32 to vector<2x128xf32>
    %89 = arith.addf %88, %87 : vector<2x128xf32>
    %90 = arith.divf %88, %89 : vector<2x128xf32>
    %91 = vector.extract_strided_slice %78 {offsets = [0, 256], sizes = [2, 128], strides = [1, 1]} : vector<2x512xf32> to vector<2x128xf32>
    %92 = math.tanh %91 : vector<2x128xf32>
    %93 = vector.extract_strided_slice %78 {offsets = [0, 384], sizes = [2, 128], strides = [1, 1]} : vector<2x512xf32> to vector<2x128xf32>
    %94 = arith.negf %93 : vector<2x128xf32>
    %95 = math.exp %94 : vector<2x128xf32>
    %cst_27 = arith.constant 1.000000e+00 : f32
    %96 = vector.broadcast %cst_27 : f32 to vector<2x128xf32>
    %97 = arith.addf %96, %95 : vector<2x128xf32>
    %98 = arith.divf %96, %97 : vector<2x128xf32>
    %99 = arith.mulf %90, %67 : vector<2x128xf32>
    %100 = arith.mulf %84, %92 : vector<2x128xf32>
    %101 = arith.addf %99, %100 : vector<2x128xf32>
    %102 = math.tanh %101 : vector<2x128xf32>
    %103 = arith.mulf %98, %102 : vector<2x128xf32>
    %104 = arith.index_cast %c2_i32 : i32 to index
    %c0_28 = arith.constant 0 : index
    %c0_29 = arith.constant 0 : index
    %105 = vector.load %arg4[%104, %c0_28, %c0_29] : memref<8x2x128xf32, #tpu.memory_space<vmem>>, vector<1x2x128xf32>
    %106 = vector.shape_cast %105 : vector<1x2x128xf32> to vector<2x128xf32>
    %107 = vector.shape_cast %103 : vector<2x128xf32> to vector<1x2x128xf32>
    tpu.vector_store %arg4[%104, %c0_28, %c0_29], %107 {strides = array<i32>} : memref<8x2x128xf32, #tpu.memory_space<vmem>>, vector<1x2x128xf32>,
    %c3_i32 = arith.constant 3 : i32
    %108 = arith.index_cast %c3_i32 : i32 to index
    %c0_30 = arith.constant 0 : index
    %c0_31 = arith.constant 0 : index
    %109 = vector.load %arg2[%108, %c0_30, %c0_31] : memref<8x2x512xf32, #tpu.memory_space<vmem>>, vector<1x2x512xf32>
    %110 = vector.shape_cast %109 : vector<1x2x512xf32> to vector<2x512xf32>
    %cst_32 = arith.constant dense<0.000000e+00> : vector<2x512xf32>
    %111 = tpu.matmul %103, %3, %cst_32 {dimension_numbers = #tpu.dot_dimension_numbers<[1], [0], [0], [1], [0, 0, 1, 1], [], []>} : vector<2x128xf32>, vector<128x512xf32>, vector<2x512xf32> -> vector<2x512xf32>
    %112 = arith.addf %110, %111 : vector<2x512xf32>
    %113 = vector.extract_strided_slice %112 {offsets = [0, 0], sizes = [2, 128], strides = [1, 1]} : vector<2x512xf32> to vector<2x128xf32>
    %114 = arith.negf %113 : vector<2x128xf32>
    %115 = math.exp %114 : vector<2x128xf32>
    %cst_33 = arith.constant 1.000000e+00 : f32
    %116 = vector.broadcast %cst_33 : f32 to vector<2x128xf32>
    %117 = arith.addf %116, %115 : vector<2x128xf32>
    %118 = arith.divf %116, %117 : vector<2x128xf32>
    %119 = vector.extract_strided_slice %112 {offsets = [0, 128], sizes = [2, 128], strides = [1, 1]} : vector<2x512xf32> to vector<2x128xf32>
    %120 = arith.negf %119 : vector<2x128xf32>
    %121 = math.exp %120 : vector<2x128xf32>
    %cst_34 = arith.constant 1.000000e+00 : f32
    %122 = vector.broadcast %cst_34 : f32 to vector<2x128xf32>
    %123 = arith.addf %122, %121 : vector<2x128xf32>
    %124 = arith.divf %122, %123 : vector<2x128xf32>
    %125 = vector.extract_strided_slice %112 {offsets = [0, 256], sizes = [2, 128], strides = [1, 1]} : vector<2x512xf32> to vector<2x128xf32>
    %126 = math.tanh %125 : vector<2x128xf32>
    %127 = vector.extract_strided_slice %112 {offsets = [0, 384], sizes = [2, 128], strides = [1, 1]} : vector<2x512xf32> to vector<2x128xf32>
    %128 = arith.negf %127 : vector<2x128xf32>
    %129 = math.exp %128 : vector<2x128xf32>
    %cst_35 = arith.constant 1.000000e+00 : f32
    %130 = vector.broadcast %cst_35 : f32 to vector<2x128xf32>
    %131 = arith.addf %130, %129 : vector<2x128xf32>
    %132 = arith.divf %130, %131 : vector<2x128xf32>
    %133 = arith.mulf %124, %101 : vector<2x128xf32>
    %134 = arith.mulf %118, %126 : vector<2x128xf32>
    %135 = arith.addf %133, %134 : vector<2x128xf32>
    %136 = math.tanh %135 : vector<2x128xf32>
    %137 = arith.mulf %132, %136 : vector<2x128xf32>
    %138 = arith.index_cast %c3_i32 : i32 to index
    %c0_36 = arith.constant 0 : index
    %c0_37 = arith.constant 0 : index
    %139 = vector.load %arg4[%138, %c0_36, %c0_37] : memref<8x2x128xf32, #tpu.memory_space<vmem>>, vector<1x2x128xf32>
    %140 = vector.shape_cast %139 : vector<1x2x128xf32> to vector<2x128xf32>
    %141 = vector.shape_cast %137 : vector<2x128xf32> to vector<1x2x128xf32>
    tpu.vector_store %arg4[%138, %c0_36, %c0_37], %141 {strides = array<i32>} : memref<8x2x128xf32, #tpu.memory_space<vmem>>, vector<1x2x128xf32>,
    %c4_i32 = arith.constant 4 : i32
    %142 = arith.index_cast %c4_i32 : i32 to index
    %c0_38 = arith.constant 0 : index
    %c0_39 = arith.constant 0 : index
    %143 = vector.load %arg2[%142, %c0_38, %c0_39] : memref<8x2x512xf32, #tpu.memory_space<vmem>>, vector<1x2x512xf32>
    %144 = vector.shape_cast %143 : vector<1x2x512xf32> to vector<2x512xf32>
    %cst_40 = arith.constant dense<0.000000e+00> : vector<2x512xf32>
    %145 = tpu.matmul %137, %3, %cst_40 {dimension_numbers = #tpu.dot_dimension_numbers<[1], [0], [0], [1], [0, 0, 1, 1], [], []>} : vector<2x128xf32>, vector<128x512xf32>, vector<2x512xf32> -> vector<2x512xf32>
    %146 = arith.addf %144, %145 : vector<2x512xf32>
    %147 = vector.extract_strided_slice %146 {offsets = [0, 0], sizes = [2, 128], strides = [1, 1]} : vector<2x512xf32> to vector<2x128xf32>
    %148 = arith.negf %147 : vector<2x128xf32>
    %149 = math.exp %148 : vector<2x128xf32>
    %cst_41 = arith.constant 1.000000e+00 : f32
    %150 = vector.broadcast %cst_41 : f32 to vector<2x128xf32>
    %151 = arith.addf %150, %149 : vector<2x128xf32>
    %152 = arith.divf %150, %151 : vector<2x128xf32>
    %153 = vector.extract_strided_slice %146 {offsets = [0, 128], sizes = [2, 128], strides = [1, 1]} : vector<2x512xf32> to vector<2x128xf32>
    %154 = arith.negf %153 : vector<2x128xf32>
    %155 = math.exp %154 : vector<2x128xf32>
    %cst_42 = arith.constant 1.000000e+00 : f32
    %156 = vector.broadcast %cst_42 : f32 to vector<2x128xf32>
    %157 = arith.addf %156, %155 : vector<2x128xf32>
    %158 = arith.divf %156, %157 : vector<2x128xf32>
    %159 = vector.extract_strided_slice %146 {offsets = [0, 256], sizes = [2, 128], strides = [1, 1]} : vector<2x512xf32> to vector<2x128xf32>
    %160 = math.tanh %159 : vector<2x128xf32>
    %161 = vector.extract_strided_slice %146 {offsets = [0, 384], sizes = [2, 128], strides = [1, 1]} : vector<2x512xf32> to vector<2x128xf32>
    %162 = arith.negf %161 : vector<2x128xf32>
    %163 = math.exp %162 : vector<2x128xf32>
    %cst_43 = arith.constant 1.000000e+00 : f32
    %164 = vector.broadcast %cst_43 : f32 to vector<2x128xf32>
    %165 = arith.addf %164, %163 : vector<2x128xf32>
    %166 = arith.divf %164, %165 : vector<2x128xf32>
    %167 = arith.mulf %158, %135 : vector<2x128xf32>
    %168 = arith.mulf %152, %160 : vector<2x128xf32>
    %169 = arith.addf %167, %168 : vector<2x128xf32>
    %170 = math.tanh %169 : vector<2x128xf32>
    %171 = arith.mulf %166, %170 : vector<2x128xf32>
    %172 = arith.index_cast %c4_i32 : i32 to index
    %c0_44 = arith.constant 0 : index
    %c0_45 = arith.constant 0 : index
    %173 = vector.load %arg4[%172, %c0_44, %c0_45] : memref<8x2x128xf32, #tpu.memory_space<vmem>>, vector<1x2x128xf32>
    %174 = vector.shape_cast %173 : vector<1x2x128xf32> to vector<2x128xf32>
    %175 = vector.shape_cast %171 : vector<2x128xf32> to vector<1x2x128xf32>
    tpu.vector_store %arg4[%172, %c0_44, %c0_45], %175 {strides = array<i32>} : memref<8x2x128xf32, #tpu.memory_space<vmem>>, vector<1x2x128xf32>,
    %c5_i32 = arith.constant 5 : i32
    %176 = arith.index_cast %c5_i32 : i32 to index
    %c0_46 = arith.constant 0 : index
    %c0_47 = arith.constant 0 : index
    %177 = vector.load %arg2[%176, %c0_46, %c0_47] : memref<8x2x512xf32, #tpu.memory_space<vmem>>, vector<1x2x512xf32>
    %178 = vector.shape_cast %177 : vector<1x2x512xf32> to vector<2x512xf32>
    %cst_48 = arith.constant dense<0.000000e+00> : vector<2x512xf32>
    %179 = tpu.matmul %171, %3, %cst_48 {dimension_numbers = #tpu.dot_dimension_numbers<[1], [0], [0], [1], [0, 0, 1, 1], [], []>} : vector<2x128xf32>, vector<128x512xf32>, vector<2x512xf32> -> vector<2x512xf32>
    %180 = arith.addf %178, %179 : vector<2x512xf32>
    %181 = vector.extract_strided_slice %180 {offsets = [0, 0], sizes = [2, 128], strides = [1, 1]} : vector<2x512xf32> to vector<2x128xf32>
    %182 = arith.negf %181 : vector<2x128xf32>
    %183 = math.exp %182 : vector<2x128xf32>
    %cst_49 = arith.constant 1.000000e+00 : f32
    %184 = vector.broadcast %cst_49 : f32 to vector<2x128xf32>
    %185 = arith.addf %184, %183 : vector<2x128xf32>
    %186 = arith.divf %184, %185 : vector<2x128xf32>
    %187 = vector.extract_strided_slice %180 {offsets = [0, 128], sizes = [2, 128], strides = [1, 1]} : vector<2x512xf32> to vector<2x128xf32>
    %188 = arith.negf %187 : vector<2x128xf32>
    %189 = math.exp %188 : vector<2x128xf32>
    %cst_50 = arith.constant 1.000000e+00 : f32
    %190 = vector.broadcast %cst_50 : f32 to vector<2x128xf32>
    %191 = arith.addf %190, %189 : vector<2x128xf32>
    %192 = arith.divf %190, %191 : vector<2x128xf32>
    %193 = vector.extract_strided_slice %180 {offsets = [0, 256], sizes = [2, 128], strides = [1, 1]} : vector<2x512xf32> to vector<2x128xf32>
    %194 = math.tanh %193 : vector<2x128xf32>
    %195 = vector.extract_strided_slice %180 {offsets = [0, 384], sizes = [2, 128], strides = [1, 1]} : vector<2x512xf32> to vector<2x128xf32>
    %196 = arith.negf %195 : vector<2x128xf32>
    %197 = math.exp %196 : vector<2x128xf32>
    %cst_51 = arith.constant 1.000000e+00 : f32
    %198 = vector.broadcast %cst_51 : f32 to vector<2x128xf32>
    %199 = arith.addf %198, %197 : vector<2x128xf32>
    %200 = arith.divf %198, %199 : vector<2x128xf32>
    %201 = arith.mulf %192, %169 : vector<2x128xf32>
    %202 = arith.mulf %186, %194 : vector<2x128xf32>
    %203 = arith.addf %201, %202 : vector<2x128xf32>
    %204 = math.tanh %203 : vector<2x128xf32>
    %205 = arith.mulf %200, %204 : vector<2x128xf32>
    %206 = arith.index_cast %c5_i32 : i32 to index
    %c0_52 = arith.constant 0 : index
    %c0_53 = arith.constant 0 : index
    %207 = vector.load %arg4[%206, %c0_52, %c0_53] : memref<8x2x128xf32, #tpu.memory_space<vmem>>, vector<1x2x128xf32>
    %208 = vector.shape_cast %207 : vector<1x2x128xf32> to vector<2x128xf32>
    %209 = vector.shape_cast %205 : vector<2x128xf32> to vector<1x2x128xf32>
    tpu.vector_store %arg4[%206, %c0_52, %c0_53], %209 {strides = array<i32>} : memref<8x2x128xf32, #tpu.memory_space<vmem>>, vector<1x2x128xf32>,
    %c6_i32 = arith.constant 6 : i32
    %210 = arith.index_cast %c6_i32 : i32 to index
    %c0_54 = arith.constant 0 : index
    %c0_55 = arith.constant 0 : index
    %211 = vector.load %arg2[%210, %c0_54, %c0_55] : memref<8x2x512xf32, #tpu.memory_space<vmem>>, vector<1x2x512xf32>
    %212 = vector.shape_cast %211 : vector<1x2x512xf32> to vector<2x512xf32>
    %cst_56 = arith.constant dense<0.000000e+00> : vector<2x512xf32>
    %213 = tpu.matmul %205, %3, %cst_56 {dimension_numbers = #tpu.dot_dimension_numbers<[1], [0], [0], [1], [0, 0, 1, 1], [], []>} : vector<2x128xf32>, vector<128x512xf32>, vector<2x512xf32> -> vector<2x512xf32>
    %214 = arith.addf %212, %213 : vector<2x512xf32>
    %215 = vector.extract_strided_slice %214 {offsets = [0, 0], sizes = [2, 128], strides = [1, 1]} : vector<2x512xf32> to vector<2x128xf32>
    %216 = arith.negf %215 : vector<2x128xf32>
    %217 = math.exp %216 : vector<2x128xf32>
    %cst_57 = arith.constant 1.000000e+00 : f32
    %218 = vector.broadcast %cst_57 : f32 to vector<2x128xf32>
    %219 = arith.addf %218, %217 : vector<2x128xf32>
    %220 = arith.divf %218, %219 : vector<2x128xf32>
    %221 = vector.extract_strided_slice %214 {offsets = [0, 128], sizes = [2, 128], strides = [1, 1]} : vector<2x512xf32> to vector<2x128xf32>
    %222 = arith.negf %221 : vector<2x128xf32>
    %223 = math.exp %222 : vector<2x128xf32>
    %cst_58 = arith.constant 1.000000e+00 : f32
    %224 = vector.broadcast %cst_58 : f32 to vector<2x128xf32>
    %225 = arith.addf %224, %223 : vector<2x128xf32>
    %226 = arith.divf %224, %225 : vector<2x128xf32>
    %227 = vector.extract_strided_slice %214 {offsets = [0, 256], sizes = [2, 128], strides = [1, 1]} : vector<2x512xf32> to vector<2x128xf32>
    %228 = math.tanh %227 : vector<2x128xf32>
    %229 = vector.extract_strided_slice %214 {offsets = [0, 384], sizes = [2, 128], strides = [1, 1]} : vector<2x512xf32> to vector<2x128xf32>
    %230 = arith.negf %229 : vector<2x128xf32>
    %231 = math.exp %230 : vector<2x128xf32>
    %cst_59 = arith.constant 1.000000e+00 : f32
    %232 = vector.broadcast %cst_59 : f32 to vector<2x128xf32>
    %233 = arith.addf %232, %231 : vector<2x128xf32>
    %234 = arith.divf %232, %233 : vector<2x128xf32>
    %235 = arith.mulf %226, %203 : vector<2x128xf32>
    %236 = arith.mulf %220, %228 : vector<2x128xf32>
    %237 = arith.addf %235, %236 : vector<2x128xf32>
    %238 = math.tanh %237 : vector<2x128xf32>
    %239 = arith.mulf %234, %238 : vector<2x128xf32>
    %240 = arith.index_cast %c6_i32 : i32 to index
    %c0_60 = arith.constant 0 : index
    %c0_61 = arith.constant 0 : index
    %241 = vector.load %arg4[%240, %c0_60, %c0_61] : memref<8x2x128xf32, #tpu.memory_space<vmem>>, vector<1x2x128xf32>
    %242 = vector.shape_cast %241 : vector<1x2x128xf32> to vector<2x128xf32>
    %243 = vector.shape_cast %239 : vector<2x128xf32> to vector<1x2x128xf32>
    tpu.vector_store %arg4[%240, %c0_60, %c0_61], %243 {strides = array<i32>} : memref<8x2x128xf32, #tpu.memory_space<vmem>>, vector<1x2x128xf32>,
    %c7_i32 = arith.constant 7 : i32
    %244 = arith.index_cast %c7_i32 : i32 to index
    %c0_62 = arith.constant 0 : index
    %c0_63 = arith.constant 0 : index
    %245 = vector.load %arg2[%244, %c0_62, %c0_63] : memref<8x2x512xf32, #tpu.memory_space<vmem>>, vector<1x2x512xf32>
    %246 = vector.shape_cast %245 : vector<1x2x512xf32> to vector<2x512xf32>
    %cst_64 = arith.constant dense<0.000000e+00> : vector<2x512xf32>
    %247 = tpu.matmul %239, %3, %cst_64 {dimension_numbers = #tpu.dot_dimension_numbers<[1], [0], [0], [1], [0, 0, 1, 1], [], []>} : vector<2x128xf32>, vector<128x512xf32>, vector<2x512xf32> -> vector<2x512xf32>
    %248 = arith.addf %246, %247 : vector<2x512xf32>
    %249 = vector.extract_strided_slice %248 {offsets = [0, 0], sizes = [2, 128], strides = [1, 1]} : vector<2x512xf32> to vector<2x128xf32>
    %250 = arith.negf %249 : vector<2x128xf32>
    %251 = math.exp %250 : vector<2x128xf32>
    %cst_65 = arith.constant 1.000000e+00 : f32
    %252 = vector.broadcast %cst_65 : f32 to vector<2x128xf32>
    %253 = arith.addf %252, %251 : vector<2x128xf32>
    %254 = arith.divf %252, %253 : vector<2x128xf32>
    %255 = vector.extract_strided_slice %248 {offsets = [0, 128], sizes = [2, 128], strides = [1, 1]} : vector<2x512xf32> to vector<2x128xf32>
    %256 = arith.negf %255 : vector<2x128xf32>
    %257 = math.exp %256 : vector<2x128xf32>
    %cst_66 = arith.constant 1.000000e+00 : f32
    %258 = vector.broadcast %cst_66 : f32 to vector<2x128xf32>
    %259 = arith.addf %258, %257 : vector<2x128xf32>
    %260 = arith.divf %258, %259 : vector<2x128xf32>
    %261 = vector.extract_strided_slice %248 {offsets = [0, 256], sizes = [2, 128], strides = [1, 1]} : vector<2x512xf32> to vector<2x128xf32>
    %262 = math.tanh %261 : vector<2x128xf32>
    %263 = vector.extract_strided_slice %248 {offsets = [0, 384], sizes = [2, 128], strides = [1, 1]} : vector<2x512xf32> to vector<2x128xf32>
    %264 = arith.negf %263 : vector<2x128xf32>
    %265 = math.exp %264 : vector<2x128xf32>
    %cst_67 = arith.constant 1.000000e+00 : f32
    %266 = vector.broadcast %cst_67 : f32 to vector<2x128xf32>
    %267 = arith.addf %266, %265 : vector<2x128xf32>
    %268 = arith.divf %266, %267 : vector<2x128xf32>
    %269 = arith.mulf %260, %237 : vector<2x128xf32>
    %270 = arith.mulf %254, %262 : vector<2x128xf32>
    %271 = arith.addf %269, %270 : vector<2x128xf32>
    %272 = math.tanh %271 : vector<2x128xf32>
    %273 = arith.mulf %268, %272 : vector<2x128xf32>
    %274 = arith.index_cast %c7_i32 : i32 to index
    %c0_68 = arith.constant 0 : index
    %c0_69 = arith.constant 0 : index
    %275 = vector.load %arg4[%274, %c0_68, %c0_69] : memref<8x2x128xf32, #tpu.memory_space<vmem>>, vector<1x2x128xf32>
    %276 = vector.shape_cast %275 : vector<1x2x128xf32> to vector<2x128xf32>
    %277 = vector.shape_cast %273 : vector<2x128xf32> to vector<1x2x128xf32>
    tpu.vector_store %arg4[%274, %c0_68, %c0_69], %277 {strides = array<i32>} : memref<8x2x128xf32, #tpu.memory_space<vmem>>, vector<1x2x128xf32>,
    %c8_i32 = arith.constant 8 : i32
    %c0_70 = arith.constant 0 : index
    %c0_71 = arith.constant 0 : index
    %278 = vector.load %arg5[%c0_70, %c0_71] : memref<2x128xf32, #tpu.memory_space<vmem>>, vector<2x128xf32>
    tpu.vector_store %arg5[%c0_70, %c0_71], %273 {strides = array<i32>} : memref<2x128xf32, #tpu.memory_space<vmem>>, vector<2x128xf32>,
    %c0_72 = arith.constant 0 : index
    %c0_73 = arith.constant 0 : index
    %279 = vector.load %arg6[%c0_72, %c0_73] : memref<2x128xf32, #tpu.memory_space<vmem>>, vector<2x128xf32>
    tpu.vector_store %arg6[%c0_72, %c0_73], %271 {strides = array<i32>} : memref<2x128xf32, #tpu.memory_space<vmem>>, vector<2x128xf32>,
    return
  }
  func.func @transform_0(%arg0: i32, %arg1: i32) -> (i32, i32, i32) {
    %c0_i32 = arith.constant 0 : i32
    %c0_i32_0 = arith.constant 0 : i32
    return %arg1, %arg0, %c0_i32 : i32, i32, i32
  }
  func.func @transform_1(%arg0: i32, %arg1: i32) -> (i32, i32) {
    %c0_i32 = arith.constant 0 : i32
    %c0_i32_0 = arith.constant 0 : i32
    %c0_i32_1 = arith.constant 0 : i32
    return %c0_i32, %c0_i32_0 : i32, i32
  }
  func.func @transform_2(%arg0: i32, %arg1: i32) -> (i32, i32, i32) {
    %c0_i32 = arith.constant 0 : i32
    %c0_i32_0 = arith.constant 0 : i32
    return %arg1, %arg0, %c0_i32 : i32, i32, i32
  }
}

module attributes {stable_mosaic.version = 11 : i64} {
  func.func @_linear_kernel(%arg0: i32, %arg1: memref<16x128xf32, #tpu.memory_space<vmem>>, %arg2: memref<128x128xf32, #tpu.memory_space<vmem>>, %arg3: memref<1x128xf32, #tpu.memory_space<vmem>>, %arg4: memref<16x128xf32, #tpu.memory_space<vmem>>) attributes {dimension_semantics = [#tpu.dimension_semantics<parallel>], iteration_bounds = array<i64: 1>, scalar_prefetch = 0 : i64, scratch_operands = 0 : i64, tpu.core_type = #tpu.core_type<tc>, window_params = [{transform_indices = @transform_0, window_bounds = array<i64: 16, 128>}, {pipeline_mode = #tpu.pipeline_mode<synchronous>, transform_indices = @transform_1, window_bounds = array<i64: 128, 128>}, {pipeline_mode = #tpu.pipeline_mode<synchronous>, transform_indices = @transform_2, window_bounds = array<i64: 1, 128>}, {transform_indices = @transform_3, window_bounds = array<i64: 16, 128>}]} {
    %c0 = arith.constant 0 : index
    %c0_0 = arith.constant 0 : index
    %0 = vector.load %arg1[%c0, %c0_0] : memref<16x128xf32, #tpu.memory_space<vmem>>, vector<16x128xf32>
    %c0_1 = arith.constant 0 : index
    %c0_2 = arith.constant 0 : index
    %1 = vector.load %arg2[%c0_1, %c0_2] : memref<128x128xf32, #tpu.memory_space<vmem>>, vector<128x128xf32>
    %cst = arith.constant dense<0.000000e+00> : vector<16x128xf32>
    %2 = tpu.matmul %0, %1, %cst {dimension_numbers = #tpu.dot_dimension_numbers<[1], [0], [0], [1], [0, 0, 1, 1], [], []>} : vector<16x128xf32>, vector<128x128xf32>, vector<16x128xf32> -> vector<16x128xf32>
    %c0_3 = arith.constant 0 : index
    %c0_4 = arith.constant 0 : index
    %3 = vector.load %arg3[%c0_3, %c0_4] : memref<1x128xf32, #tpu.memory_space<vmem>>, vector<1x128xf32>
    %4 = vector.broadcast %3 : vector<1x128xf32> to vector<16x128xf32>
    %5 = arith.addf %2, %4 : vector<16x128xf32>
    %c0_5 = arith.constant 0 : index
    %c0_6 = arith.constant 0 : index
    %6 = vector.load %arg4[%c0_5, %c0_6] : memref<16x128xf32, #tpu.memory_space<vmem>>, vector<16x128xf32>
    tpu.vector_store %arg4[%c0_5, %c0_6], %5 {strides = array<i32>} : memref<16x128xf32, #tpu.memory_space<vmem>>, vector<16x128xf32>,
    return
  }
  func.func @transform_0(%arg0: i32) -> (i32, i32) {
    %c0_i32 = arith.constant 0 : i32
    %c0_i32_0 = arith.constant 0 : i32
    return %arg0, %c0_i32 : i32, i32
  }
  func.func @transform_1(%arg0: i32) -> (i32, i32) {
    %c0_i32 = arith.constant 0 : i32
    %c0_i32_0 = arith.constant 0 : i32
    %c0_i32_1 = arith.constant 0 : i32
    return %c0_i32, %c0_i32_0 : i32, i32
  }
  func.func @transform_2(%arg0: i32) -> (i32, i32) {
    %c0_i32 = arith.constant 0 : i32
    %c0_i32_0 = arith.constant 0 : i32
    %c0_i32_1 = arith.constant 0 : i32
    return %c0_i32, %c0_i32_0 : i32, i32
  }
  func.func @transform_3(%arg0: i32) -> (i32, i32) {
    %c0_i32 = arith.constant 0 : i32
    %c0_i32_0 = arith.constant 0 : i32
    return %arg0, %c0_i32 : i32, i32
  }
}

</mosaic_0001>

<llo_original>
// kernel: rnn_forward.7
$region0: #{rnn_forward.7}
  #allocation0 [shape = 'u32[]', space=smem, size = 0x4, offset = 0x4, fixed_abs, tag = 'smem constant byte address 0x4 - core index']
  #allocation1 [shape = 'u32[144,128]{1,0:T(1,128)}', space=vmem, size = 0x12000, scoped, tag = 'internal scratch']
  %s0 = inlined_call_operand.vmem [shape: f32[16,128], index: 0, kind: input, shape index: {}]
  %s1 = inlined_call_operand.vmem [shape: f32[128,512], index: 1, kind: input, shape index: {}]
  %s2 = inlined_call_operand.vmem [shape: f32[1,512], index: 2, kind: input, shape index: {}]
  %s3 = inlined_call_operand.vmem [shape: f32[16,512], index: 3, kind: output, shape index: {}]
  %s4 = sld [smem:[#allocation0]]
  $region22: #{rnn_forward.7} parent=0
    _
  %s6 = ssub.s32 1, %s4
  %s7 = scalar_select 0, %s6, %s4
  // Predicated region
  $region2: #{rnn_forward.7} parent=0 // pred_check
    _
  $region3: #{rnn_forward.7} parent=0 // pred_check_branch
    %9 = sbr.rel (0) target = $region5
  $region4: #{rnn_forward.7} parent=0 // pred_region
    _
  $region5: #{rnn_forward.7} parent=0 // pred_fallthru
    _
  // Predicated region
  $region6: #{rnn_forward.7} parent=0 // pred_check
    _
  $region7: #{rnn_forward.7} parent=0 // pred_check_branch
    %11 = sbr.rel (0) target = $region9
  $region8: #{rnn_forward.7} parent=0 // pred_region
    _
  $region9: #{rnn_forward.7} parent=0 // pred_fallthru
    _
  // Predicated region
  $region10: #{rnn_forward.7} parent=0 // pred_check
    _
  $region11: #{rnn_forward.7} parent=0 // pred_check_branch
    %13 = sbr.rel (0) target = $region13
  $region12: #{rnn_forward.7} parent=0 // pred_region
    _
  $region13: #{rnn_forward.7} parent=0 // pred_fallthru
    _
  %v14 = vld [vmem:[%s0] sm:$0xff]
  %v15 = vld [vmem:[%s0 + $0x8] sm:$0xff]
  %v16 = vld [vmem:[%s1] sm:$0xff]
  %v17 = vld [vmem:[%s1 + $0x8] sm:$0xff]
  %v18 = vld [vmem:[%s1 + $0x10] sm:$0xff]
  %v19 = vld [vmem:[%s1 + $0x18] sm:$0xff]
  %v20 = vld [vmem:[%s1 + $0x20] sm:$0xff]
  %v21 = vld [vmem:[%s1 + $0x28] sm:$0xff]
  %v22 = vld [vmem:[%s1 + $0x30] sm:$0xff]
  %v23 = vld [vmem:[%s1 + $0x38] sm:$0xff]
  %v24 = vld [vmem:[%s1 + $0x40] sm:$0xff]
  %v25 = vld [vmem:[%s1 + $0x48] sm:$0xff]
  %v26 = vld [vmem:[%s1 + $0x50] sm:$0xff]
  %v27 = vld [vmem:[%s1 + $0x58] sm:$0xff]
  %v28 = vld [vmem:[%s1 + $0x60] sm:$0xff]
  %v29 = vld [vmem:[%s1 + $0x68] sm:$0xff]
  %v30 = vld [vmem:[%s1 + $0x70] sm:$0xff]
  %v31 = vld [vmem:[%s1 + $0x78] sm:$0xff]
  %v32 = vld [vmem:[%s1 + $0x80] sm:$0xff]
  %v33 = vld [vmem:[%s1 + $0x88] sm:$0xff]
  %v34 = vld [vmem:[%s1 + $0x90] sm:$0xff]
  %v35 = vld [vmem:[%s1 + $0x98] sm:$0xff]
  %v36 = vld [vmem:[%s1 + $0xa0] sm:$0xff]
  %v37 = vld [vmem:[%s1 + $0xa8] sm:$0xff]
  %v38 = vld [vmem:[%s1 + $0xb0] sm:$0xff]
  %v39 = vld [vmem:[%s1 + $0xb8] sm:$0xff]
  %v40 = vld [vmem:[%s1 + $0xc0] sm:$0xff]
  %v41 = vld [vmem:[%s1 + $0xc8] sm:$0xff]
  %v42 = vld [vmem:[%s1 + $0xd0] sm:$0xff]
  %v43 = vld [vmem:[%s1 + $0xd8] sm:$0xff]
  %v44 = vld [vmem:[%s1 + $0xe0] sm:$0xff]
  %v45 = vld [vmem:[%s1 + $0xe8] sm:$0xff]
  %v46 = vld [vmem:[%s1 + $0xf0] sm:$0xff]
  %v47 = vld [vmem:[%s1 + $0xf8] sm:$0xff]
  %v48 = vld [vmem:[%s1 + $0x100] sm:$0xff]
  %v49 = vld [vmem:[%s1 + $0x108] sm:$0xff]
  %v50 = vld [vmem:[%s1 + $0x110] sm:$0xff]
  %v51 = vld [vmem:[%s1 + $0x118] sm:$0xff]
  %v52 = vld [vmem:[%s1 + $0x120] sm:$0xff]
  %v53 = vld [vmem:[%s1 + $0x128] sm:$0xff]
  %v54 = vld [vmem:[%s1 + $0x130] sm:$0xff]
  %v55 = vld [vmem:[%s1 + $0x138] sm:$0xff]
  %v56 = vld [vmem:[%s1 + $0x140] sm:$0xff]
  %v57 = vld [vmem:[%s1 + $0x148] sm:$0xff]
  %v58 = vld [vmem:[%s1 + $0x150] sm:$0xff]
  %v59 = vld [vmem:[%s1 + $0x158] sm:$0xff]
  %v60 = vld [vmem:[%s1 + $0x160] sm:$0xff]
  %v61 = vld [vmem:[%s1 + $0x168] sm:$0xff]
  %v62 = vld [vmem:[%s1 + $0x170] sm:$0xff]
  %v63 = vld [vmem:[%s1 + $0x178] sm:$0xff]
  %v64 = vld [vmem:[%s1 + $0x180] sm:$0xff]
  %v65 = vld [vmem:[%s1 + $0x188] sm:$0xff]
  %v66 = vld [vmem:[%s1 + $0x190] sm:$0xff]
  %v67 = vld [vmem:[%s1 + $0x198] sm:$0xff]
  %v68 = vld [vmem:[%s1 + $0x1a0] sm:$0xff]
  %v69 = vld [vmem:[%s1 + $0x1a8] sm:$0xff]
  %v70 = vld [vmem:[%s1 + $0x1b0] sm:$0xff]
  %v71 = vld [vmem:[%s1 + $0x1b8] sm:$0xff]
  %v72 = vld [vmem:[%s1 + $0x1c0] sm:$0xff]
  %v73 = vld [vmem:[%s1 + $0x1c8] sm:$0xff]
  %v74 = vld [vmem:[%s1 + $0x1d0] sm:$0xff]
  %v75 = vld [vmem:[%s1 + $0x1d8] sm:$0xff]
  %v76 = vld [vmem:[%s1 + $0x1e0] sm:$0xff]
  %v77 = vld [vmem:[%s1 + $0x1e8] sm:$0xff]
  %v78 = vld [vmem:[%s1 + $0x1f0] sm:$0xff]
  %v79 = vld [vmem:[%s1 + $0x1f8] sm:$0xff]
  %v80 = vld [vmem:[%s2] sm:$0xf]
  %v82 = vlaneseq
  %v83 = vshrl.u32 %v82, 7
  %v84 = vsub.s32 0, %v83
  %v85 = vrot.slane %v80, %v84
  %v86 = vlaneseq
  %v87 = vshrl.u32 %v86, 7
  %v88 = vsub.s32 1, %v87
  %v89 = vrot.slane %v80, %v88
  %v90 = vlaneseq
  %v91 = vshrl.u32 %v90, 7
  %v92 = vsub.s32 2, %v91
  %v93 = vrot.slane %v80, %v92
  %v94 = vlaneseq
  %v95 = vshrl.u32 %v94, 7
  %v96 = vsub.s32 3, %v95
  %v97 = vrot.slane %v80, %v96
  %102 = vmatprep.subr.mxu0 %v77
  %103 = vmatpush1.msra.mxu0 %v76
  %104 = vmatprep.subr.mxu0 %v73
  %105 = vmatpush1.msra.mxu0 %v72
  %106 = vmatprep.subr.mxu0 %v69
  %107 = vmatpush1.msra.mxu0 %v68
  %108 = vmatprep.subr.mxu0 %v65
  %109 = vmatpush1.msra.mxu0 %v64
  %110 = vmatprep.subr.mxu0 %v61
  %111 = vmatpush1.msra.mxu0 %v60
  %112 = vmatprep.subr.mxu0 %v57
  %113 = vmatpush1.msra.mxu0 %v56
  %114 = vmatprep.subr.mxu0 %v53
  %115 = vmatpush1.msra.mxu0 %v52
  %116 = vmatprep.subr.mxu0 %v49
  %117 = vmatpush1.msra.mxu0 %v48
  %118 = vmatprep.subr.mxu0 %v45
  %119 = vmatpush1.msra.mxu0 %v44
  %120 = vmatprep.subr.mxu0 %v41
  %121 = vmatpush1.msra.mxu0 %v40
  %122 = vmatprep.subr.mxu0 %v37
  %123 = vmatpush1.msra.mxu0 %v36
  %124 = vmatprep.subr.mxu0 %v33
  %125 = vmatpush1.msra.mxu0 %v32
  %126 = vmatprep.subr.mxu0 %v29
  %127 = vmatpush1.msra.mxu0 %v28
  %128 = vmatprep.subr.mxu0 %v25
  %129 = vmatpush1.msra.mxu0 %v24
  %130 = vmatprep.subr.mxu0 %v21
  %131 = vmatpush1.msra.mxu0 %v20
  %132 = vmatprep.subr.mxu0 %v17
  %133 = vmatpush1.msra.mxu0 %v16
  %134 = vmatprep.subr.mxu0 0.0
  %135 = vmatpush2.msra.mxu0 0.0
  %136 = vmatprep.subr.mxu0 0.0
  %137 = vmatpush2.msra.mxu0 0.0
  %138 = vmatprep.subr.mxu0 0.0
  %139 = vmatpush2.msra.mxu0 0.0
  %140 = vmatprep.subr.mxu0 0.0
  %141 = vmatpush2.msra.mxu0 0.0
  %142 = vmatprep.subr.mxu0 0.0
  %143 = vmatpush2.msra.mxu0 0.0
  %144 = vmatprep.subr.mxu0 0.0
  %145 = vmatpush2.msra.mxu0 0.0
  %146 = vmatprep.subr.mxu0 0.0
  %147 = vmatpush2.msra.mxu0 0.0
  %148 = vmatprep.subr.mxu0 0.0
  %149 = vmatpush2.msra.mxu0 0.0
  %150 = vmatprep.subr.mxu0 0.0
  %151 = vmatpush2.msra.mxu0 0.0
  %152 = vmatprep.subr.mxu0 0.0
  %153 = vmatpush2.msra.mxu0 0.0
  %154 = vmatprep.subr.mxu0 0.0
  %155 = vmatpush2.msra.mxu0 0.0
  %156 = vmatprep.subr.mxu0 0.0
  %157 = vmatpush2.msra.mxu0 0.0
  %158 = vmatprep.subr.mxu0 0.0
  %159 = vmatpush2.msra.mxu0 0.0
  %160 = vmatprep.subr.mxu0 0.0
  %161 = vmatpush2.msra.mxu0 0.0
  %162 = vmatprep.subr.mxu0 0.0
  %163 = vmatpush2.msra.mxu0 0.0
  %164 = vmatprep.subr.mxu0 0.0
  %165 = vmatpush2.msra.mxu0 0.0
  %166 = vmatprep.mubr.f32.mxu0 0.0
  %167 = vmatmul.mubr.f32.gmra.mxu0 %v14
  %v168 = vpop.f32.mrf.mxu0
  %v169 = vadd.f32 %v85, %v168
  %v170 = vpop.f32.mrf.mxu0
  %v171 = vadd.f32 %v89, %v170
  %172 = vmatprep.mubr.f32.mxu0 0.0
  %173 = vmatmul.mubr.f32.gmra.mxu0 %v15
  %v174 = vpop.f32.mrf.mxu0
  %v175 = vadd.f32 %v85, %v174
  %v176 = vpop.f32.mrf.mxu0
  %v177 = vadd.f32 %v89, %v176
  %178 = vdwg.mxu0
  %179 = vmatprep.subr.mxu0 %v79
  %180 = vmatpush1.msra.mxu0 %v78
  %181 = vmatprep.subr.mxu0 %v75
  %182 = vmatpush1.msra.mxu0 %v74
  %183 = vmatprep.subr.mxu0 %v71
  %184 = vmatpush1.msra.mxu0 %v70
  %185 = vmatprep.subr.mxu0 %v67
  %186 = vmatpush1.msra.mxu0 %v66
  %187 = vmatprep.subr.mxu0 %v63
  %188 = vmatpush1.msra.mxu0 %v62
  %189 = vmatprep.subr.mxu0 %v59
  %190 = vmatpush1.msra.mxu0 %v58
  %191 = vmatprep.subr.mxu0 %v55
  %192 = vmatpush1.msra.mxu0 %v54
  %193 = vmatprep.subr.mxu0 %v51
  %194 = vmatpush1.msra.mxu0 %v50
  %195 = vmatprep.subr.mxu0 %v47
  %196 = vmatpush1.msra.mxu0 %v46
  %197 = vmatprep.subr.mxu0 %v43
  %198 = vmatpush1.msra.mxu0 %v42
  %199 = vmatprep.subr.mxu0 %v39
  %200 = vmatpush1.msra.mxu0 %v38
  %201 = vmatprep.subr.mxu0 %v35
  %202 = vmatpush1.msra.mxu0 %v34
  %203 = vmatprep.subr.mxu0 %v31
  %204 = vmatpush1.msra.mxu0 %v30
  %205 = vmatprep.subr.mxu0 %v27
  %206 = vmatpush1.msra.mxu0 %v26
  %207 = vmatprep.subr.mxu0 %v23
  %208 = vmatpush1.msra.mxu0 %v22
  %209 = vmatprep.subr.mxu0 %v19
  %210 = vmatpush1.msra.mxu0 %v18
  %211 = vmatprep.subr.mxu0 0.0
  %212 = vmatpush2.msra.mxu0 0.0
  %213 = vmatprep.subr.mxu0 0.0
  %214 = vmatpush2.msra.mxu0 0.0
  %215 = vmatprep.subr.mxu0 0.0
  %216 = vmatpush2.msra.mxu0 0.0
  %217 = vmatprep.subr.mxu0 0.0
  %218 = vmatpush2.msra.mxu0 0.0
  %219 = vmatprep.subr.mxu0 0.0
  %220 = vmatpush2.msra.mxu0 0.0
  %221 = vmatprep.subr.mxu0 0.0
  %222 = vmatpush2.msra.mxu0 0.0
  %223 = vmatprep.subr.mxu0 0.0
  %224 = vmatpush2.msra.mxu0 0.0
  %225 = vmatprep.subr.mxu0 0.0
  %226 = vmatpush2.msra.mxu0 0.0
  %227 = vmatprep.subr.mxu0 0.0
  %228 = vmatpush2.msra.mxu0 0.0
  %229 = vmatprep.subr.mxu0 0.0
  %230 = vmatpush2.msra.mxu0 0.0
  %231 = vmatprep.subr.mxu0 0.0
  %232 = vmatpush2.msra.mxu0 0.0
  %233 = vmatprep.subr.mxu0 0.0
  %234 = vmatpush2.msra.mxu0 0.0
  %235 = vmatprep.subr.mxu0 0.0
  %236 = vmatpush2.msra.mxu0 0.0
  %237 = vmatprep.subr.mxu0 0.0
  %238 = vmatpush2.msra.mxu0 0.0
  %239 = vmatprep.subr.mxu0 0.0
  %240 = vmatpush2.msra.mxu0 0.0
  %241 = vmatprep.subr.mxu0 0.0
  %242 = vmatpush2.msra.mxu0 0.0
  %243 = vmatprep.mubr.f32.mxu0 0.0
  %244 = vmatmul.mubr.f32.gmra.mxu0 %v14
  %v245 = vpop.f32.mrf.mxu0
  %v246 = vadd.f32 %v93, %v245
  %v247 = vpop.f32.mrf.mxu0
  %v248 = vadd.f32 %v97, %v247
  %249 = vmatprep.mubr.f32.mxu0 0.0
  %250 = vmatmul.mubr.f32.gmra.mxu0 %v15
  %v251 = vpop.f32.mrf.mxu0
  %v252 = vadd.f32 %v93, %v251
  %v253 = vpop.f32.mrf.mxu0
  %v254 = vadd.f32 %v97, %v253
  %255 = vdwg.mxu0
  %256 = vst [vmem:[%s3] sm:$0xff] %v169
  %257 = vst [vmem:[%s3 + $0x8] sm:$0xff] %v171
  %258 = vst [vmem:[%s3 + $0x10] sm:$0xff] %v246
  %259 = vst [vmem:[%s3 + $0x18] sm:$0xff] %v248
  %260 = vst [vmem:[%s3 + $0x20] sm:$0xff] %v175
  %261 = vst [vmem:[%s3 + $0x28] sm:$0xff] %v177
  %262 = vst [vmem:[%s3 + $0x30] sm:$0xff] %v252
  %263 = vst [vmem:[%s3 + $0x38] sm:$0xff] %v254
  // Predicated region
  $region14: #{rnn_forward.7} parent=0 // pred_check
    _
  $region15: #{rnn_forward.7} parent=0 // pred_check_branch
    %265 = sbr.rel (0) target = $region17
  $region16: #{rnn_forward.7} parent=0 // pred_region
    _
  $region17: #{rnn_forward.7} parent=0 // pred_fallthru
    _
  // Predicated region
  $region18: #{rnn_forward.7} parent=0 // pred_check
    _
  $region19: #{rnn_forward.7} parent=0 // pred_check_branch
    %267 = sbr.rel (0) target = $region21
  $region20: #{rnn_forward.7} parent=0 // pred_region
    _
  $region21: #{rnn_forward.7} parent=0 // pred_fallthru
    _

// kernel: rnn_forward.5
$region0: #{rnn_forward.5}
  #allocation0 [shape = 'u32[]', space=smem, size = 0x4, offset = 0x4, fixed_abs, tag = 'smem constant byte address 0x4 - core index']
  #allocation1 [shape = 'u32[144,128]{1,0:T(1,128)}', space=vmem, size = 0x12000, scoped, tag = 'internal scratch']
  %s0 = inlined_call_operand.vmem [shape: f32[16,16], index: 0, kind: input, shape index: {}]
  %s1 = inlined_call_operand.hbm [shape: f32[16,512], index: 1, kind: input, shape index: {}]
  %s2 = inlined_call_operand.hbm [shape: f32[1,512], index: 2, kind: input, shape index: {}]
  %s3 = inlined_call_operand.vmem [shape: f32[16,512], index: 3, kind: output, shape index: {}]
  %s4 = sld [smem:[#allocation0]]
  $region30: #{rnn_forward.5} parent=0
    _
  %s6 = ssub.s32 1, %s4
  %s7 = scalar_select 0, %s6, %s4
  $region1: #{rnn_forward.5} parent=0
    #allocation2 [shape = 'u8[32768]{0}', space=vmem, size = 0x8000, scoped, tag = 'input window, operand 1, single buffered']
    #allocation3 [shape = 's32[1]{0}', space=sflag, size = 0x4, scoped, tag = 'scoped memory for rnn_forward.5']
    #allocation4 [shape = 'u8[2048]{0}', space=vmem, size = 0x800, scoped, tag = 'input window, operand 2, single buffered']
    #allocation5 [shape = 's32[1]{0}', space=sflag, size = 0x4, scoped, tag = 'scoped memory for rnn_forward.5']
    %8 = vsyncpa [#allocation3], 0
    %9 = vsyncpa [#allocation5], 0
    // Predicated region
    $region2: #{rnn_forward.5} parent=1 // pred_check
      _
    $region3: #{rnn_forward.5} parent=1 // pred_check_branch
      %11 = sbr.rel (0) target = $region5
    $region4: #{rnn_forward.5} parent=1 // pred_region
      _
    $region5: #{rnn_forward.5} parent=1 // pred_fallthru
      _
    // Predicated region
    $region6: #{rnn_forward.5} parent=1 // pred_check
      _
    $region7: #{rnn_forward.5} parent=1 // pred_check_branch
      %13 = sbr.rel (0) target = $region9
    $region8: #{rnn_forward.5} parent=1 // pred_region
      %s15 = ssub.s32 1024, 1024
      %16 = vsyncadd [#allocation3], %s15
      %s17 = sshll.u32 [#allocation2], 4
      %s18 = int_to_ptr.vmem [resolvable:$true] %s17
      %23 = dma.hbm_to_vmem [thread:$0]  %s1, 1024, %s18, [#allocation3], 512, 512, 32
    $region9: #{rnn_forward.5} parent=1 // pred_fallthru
      _
    // Predicated region
    $region10: #{rnn_forward.5} parent=1 // pred_check
      _
    $region11: #{rnn_forward.5} parent=1 // pred_check_branch
      %25 = sbr.rel (0) target = $region13
    $region12: #{rnn_forward.5} parent=1 // pred_region
      %s27 = ssub.s32 64, 64
      %28 = vsyncadd [#allocation5], %s27
      %s30 = sshll.u32 [#allocation4], 4
      %s31 = int_to_ptr.vmem [resolvable:$true] %s30
      %33 = dma.hbm_to_vmem [thread:$0]  %s2, 64, %s31, [#allocation5]
    $region13: #{rnn_forward.5} parent=1 // pred_fallthru
      _
    // Predicated region
    $region14: #{rnn_forward.5} parent=1 // pred_check
      _
    $region15: #{rnn_forward.5} parent=1 // pred_check_branch
      %35 = sbr.rel (0) target = $region17
    $region16: #{rnn_forward.5} parent=1 // pred_region
      %36 = dma.done [#allocation3], 1024
    $region17: #{rnn_forward.5} parent=1 // pred_fallthru
      _
    // Predicated region
    $region18: #{rnn_forward.5} parent=1 // pred_check
      _
    $region19: #{rnn_forward.5} parent=1 // pred_check_branch
      %38 = sbr.rel (0) target = $region21
    $region20: #{rnn_forward.5} parent=1 // pred_region
      %39 = dma.done [#allocation5], 64
    $region21: #{rnn_forward.5} parent=1 // pred_fallthru
      _
    %v40 = vld [vmem:[%s0] sm:$0xff]
    %v41 = vld [vmem:[%s0 + $0x8] sm:$0xff]
    %v42 = vld [vmem:[#allocation2] sm:$0xff]
    %v43 = vld [vmem:[#allocation2 + $0x8] sm:$0xff]
    %v44 = vld [vmem:[#allocation2 + $0x10] sm:$0xff]
    %v45 = vld [vmem:[#allocation2 + $0x18] sm:$0xff]
    %v46 = vld [vmem:[#allocation2 + $0x20] sm:$0xff]
    %v47 = vld [vmem:[#allocation2 + $0x28] sm:$0xff]
    %v48 = vld [vmem:[#allocation2 + $0x30] sm:$0xff]
    %v49 = vld [vmem:[#allocation2 + $0x38] sm:$0xff]
    %v50 = vld [vmem:[#allocation4] sm:$0xf]
    %v52 = vlaneseq
    %v53 = vshrl.u32 %v52, 7
    %v54 = vsub.s32 0, %v53
    %v55 = vrot.slane %v50, %v54
    %v56 = vlaneseq
    %v57 = vshrl.u32 %v56, 7
    %v58 = vsub.s32 1, %v57
    %v59 = vrot.slane %v50, %v58
    %v60 = vlaneseq
    %v61 = vshrl.u32 %v60, 7
    %v62 = vsub.s32 2, %v61
    %v63 = vrot.slane %v50, %v62
    %v64 = vlaneseq
    %v65 = vshrl.u32 %v64, 7
    %v66 = vsub.s32 3, %v65
    %v67 = vrot.slane %v50, %v66
    %vm72 = vcmask 130048
    %v74 = vsel %vm72, %v40, 0
    %v77 = vsel %vm72, %v41, 0
    %79 = vmatprep.subr.mxu0 0.0
    %80 = vmatpush1.msra.mxu0 0.0
    %81 = vmatprep.subr.mxu0 0.0
    %82 = vmatpush1.msra.mxu0 0.0
    %83 = vmatprep.subr.mxu0 0.0
    %84 = vmatpush1.msra.mxu0 0.0
    %85 = vmatprep.subr.mxu0 0.0
    %86 = vmatpush1.msra.mxu0 0.0
    %87 = vmatprep.subr.mxu0 0.0
    %88 = vmatpush1.msra.mxu0 0.0
    %89 = vmatprep.subr.mxu0 0.0
    %90 = vmatpush1.msra.mxu0 0.0
    %91 = vmatprep.subr.mxu0 0.0
    %92 = vmatpush1.msra.mxu0 0.0
    %93 = vmatprep.subr.mxu0 0.0
    %94 = vmatpush1.msra.mxu0 0.0
    %95 = vmatprep.subr.mxu0 0.0
    %96 = vmatpush1.msra.mxu0 0.0
    %97 = vmatprep.subr.mxu0 0.0
    %98 = vmatpush1.msra.mxu0 0.0
    %99 = vmatprep.subr.mxu0 0.0
    %100 = vmatpush1.msra.mxu0 0.0
    %101 = vmatprep.subr.mxu0 0.0
    %102 = vmatpush1.msra.mxu0 0.0
    %103 = vmatprep.subr.mxu0 0.0
    %104 = vmatpush1.msra.mxu0 0.0
    %105 = vmatprep.subr.mxu0 0.0
    %106 = vmatpush1.msra.mxu0 0.0
    %107 = vmatprep.subr.mxu0 %v47
    %108 = vmatpush1.msra.mxu0 %v46
    %109 = vmatprep.subr.mxu0 %v43
    %110 = vmatpush1.msra.mxu0 %v42
    %111 = vmatprep.subr.mxu0 0.0
    %112 = vmatpush2.msra.mxu0 0.0
    %113 = vmatprep.subr.mxu0 0.0
    %114 = vmatpush2.msra.mxu0 0.0
    %115 = vmatprep.subr.mxu0 0.0
    %116 = vmatpush2.msra.mxu0 0.0
    %117 = vmatprep.subr.mxu0 0.0
    %118 = vmatpush2.msra.mxu0 0.0
    %119 = vmatprep.subr.mxu0 0.0
    %120 = vmatpush2.msra.mxu0 0.0
    %121 = vmatprep.subr.mxu0 0.0
    %122 = vmatpush2.msra.mxu0 0.0
    %123 = vmatprep.subr.mxu0 0.0
    %124 = vmatpush2.msra.mxu0 0.0
    %125 = vmatprep.subr.mxu0 0.0
    %126 = vmatpush2.msra.mxu0 0.0
    %127 = vmatprep.subr.mxu0 0.0
    %128 = vmatpush2.msra.mxu0 0.0
    %129 = vmatprep.subr.mxu0 0.0
    %130 = vmatpush2.msra.mxu0 0.0
    %131 = vmatprep.subr.mxu0 0.0
    %132 = vmatpush2.msra.mxu0 0.0
    %133 = vmatprep.subr.mxu0 0.0
    %134 = vmatpush2.msra.mxu0 0.0
    %135 = vmatprep.subr.mxu0 0.0
    %136 = vmatpush2.msra.mxu0 0.0
    %137 = vmatprep.subr.mxu0 0.0
    %138 = vmatpush2.msra.mxu0 0.0
    %139 = vmatprep.subr.mxu0 0.0
    %140 = vmatpush2.msra.mxu0 0.0
    %141 = vmatprep.subr.mxu0 0.0
    %142 = vmatpush2.msra.mxu0 0.0
    %143 = vmatprep.mubr.f32.mxu0 0.0
    %144 = vmatmul.mubr.f32.gmra.mxu0 %v74
    %v145 = vpop.f32.mrf.mxu0
    %v146 = vadd.f32 %v55, %v145
    %v147 = vpop.f32.mrf.mxu0
    %v148 = vadd.f32 %v59, %v147
    %149 = vmatprep.mubr.f32.mxu0 0.0
    %150 = vmatmul.mubr.f32.gmra.mxu0 %v77
    %v151 = vpop.f32.mrf.mxu0
    %v152 = vadd.f32 %v55, %v151
    %v153 = vpop.f32.mrf.mxu0
    %v154 = vadd.f32 %v59, %v153
    %155 = vdwg.mxu0
    %156 = vmatprep.subr.mxu0 0.0
    %157 = vmatpush1.msra.mxu0 0.0
    %158 = vmatprep.subr.mxu0 0.0
    %159 = vmatpush1.msra.mxu0 0.0
    %160 = vmatprep.subr.mxu0 0.0
    %161 = vmatpush1.msra.mxu0 0.0
    %162 = vmatprep.subr.mxu0 0.0
    %163 = vmatpush1.msra.mxu0 0.0
    %164 = vmatprep.subr.mxu0 0.0
    %165 = vmatpush1.msra.mxu0 0.0
    %166 = vmatprep.subr.mxu0 0.0
    %167 = vmatpush1.msra.mxu0 0.0
    %168 = vmatprep.subr.mxu0 0.0
    %169 = vmatpush1.msra.mxu0 0.0
    %170 = vmatprep.subr.mxu0 0.0
    %171 = vmatpush1.msra.mxu0 0.0
    %172 = vmatprep.subr.mxu0 0.0
    %173 = vmatpush1.msra.mxu0 0.0
    %174 = vmatprep.subr.mxu0 0.0
    %175 = vmatpush1.msra.mxu0 0.0
    %176 = vmatprep.subr.mxu0 0.0
    %177 = vmatpush1.msra.mxu0 0.0
    %178 = vmatprep.subr.mxu0 0.0
    %179 = vmatpush1.msra.mxu0 0.0
    %180 = vmatprep.subr.mxu0 0.0
    %181 = vmatpush1.msra.mxu0 0.0
    %182 = vmatprep.subr.mxu0 0.0
    %183 = vmatpush1.msra.mxu0 0.0
    %184 = vmatprep.subr.mxu0 %v49
    %185 = vmatpush1.msra.mxu0 %v48
    %186 = vmatprep.subr.mxu0 %v45
    %187 = vmatpush1.msra.mxu0 %v44
    %188 = vmatprep.subr.mxu0 0.0
    %189 = vmatpush2.msra.mxu0 0.0
    %190 = vmatprep.subr.mxu0 0.0
    %191 = vmatpush2.msra.mxu0 0.0
    %192 = vmatprep.subr.mxu0 0.0
    %193 = vmatpush2.msra.mxu0 0.0
    %194 = vmatprep.subr.mxu0 0.0
    %195 = vmatpush2.msra.mxu0 0.0
    %196 = vmatprep.subr.mxu0 0.0
    %197 = vmatpush2.msra.mxu0 0.0
    %198 = vmatprep.subr.mxu0 0.0
    %199 = vmatpush2.msra.mxu0 0.0
    %200 = vmatprep.subr.mxu0 0.0
    %201 = vmatpush2.msra.mxu0 0.0
    %202 = vmatprep.subr.mxu0 0.0
    %203 = vmatpush2.msra.mxu0 0.0
    %204 = vmatprep.subr.mxu0 0.0
    %205 = vmatpush2.msra.mxu0 0.0
    %206 = vmatprep.subr.mxu0 0.0
    %207 = vmatpush2.msra.mxu0 0.0
    %208 = vmatprep.subr.mxu0 0.0
    %209 = vmatpush2.msra.mxu0 0.0
    %210 = vmatprep.subr.mxu0 0.0
    %211 = vmatpush2.msra.mxu0 0.0
    %212 = vmatprep.subr.mxu0 0.0
    %213 = vmatpush2.msra.mxu0 0.0
    %214 = vmatprep.subr.mxu0 0.0
    %215 = vmatpush2.msra.mxu0 0.0
    %216 = vmatprep.subr.mxu0 0.0
    %217 = vmatpush2.msra.mxu0 0.0
    %218 = vmatprep.subr.mxu0 0.0
    %219 = vmatpush2.msra.mxu0 0.0
    %220 = vmatprep.mubr.f32.mxu0 0.0
    %221 = vmatmul.mubr.f32.gmra.mxu0 %v74
    %v222 = vpop.f32.mrf.mxu0
    %v223 = vadd.f32 %v63, %v222
    %v224 = vpop.f32.mrf.mxu0
    %v225 = vadd.f32 %v67, %v224
    %226 = vmatprep.mubr.f32.mxu0 0.0
    %227 = vmatmul.mubr.f32.gmra.mxu0 %v77
    %v228 = vpop.f32.mrf.mxu0
    %v229 = vadd.f32 %v63, %v228
    %v230 = vpop.f32.mrf.mxu0
    %v231 = vadd.f32 %v67, %v230
    %232 = vdwg.mxu0
    %233 = vst [vmem:[%s3] sm:$0xff] %v146
    %234 = vst [vmem:[%s3 + $0x8] sm:$0xff] %v148
    %235 = vst [vmem:[%s3 + $0x10] sm:$0xff] %v223
    %236 = vst [vmem:[%s3 + $0x18] sm:$0xff] %v225
    %237 = vst [vmem:[%s3 + $0x20] sm:$0xff] %v152
    %238 = vst [vmem:[%s3 + $0x28] sm:$0xff] %v154
    %239 = vst [vmem:[%s3 + $0x30] sm:$0xff] %v229
    %240 = vst [vmem:[%s3 + $0x38] sm:$0xff] %v231
    // Predicated region
    $region22: #{rnn_forward.5} parent=1 // pred_check
      _
    $region23: #{rnn_forward.5} parent=1 // pred_check_branch
      %242 = sbr.rel (0) target = $region25
    $region24: #{rnn_forward.5} parent=1 // pred_region
      _
    $region25: #{rnn_forward.5} parent=1 // pred_fallthru
      _
    // Predicated region
    $region26: #{rnn_forward.5} parent=1 // pred_check
      _
    $region27: #{rnn_forward.5} parent=1 // pred_check_branch
      %244 = sbr.rel (0) target = $region29
    $region28: #{rnn_forward.5} parent=1 // pred_region
      _
    $region29: #{rnn_forward.5} parent=1 // pred_fallthru
      _
    %245 = vsyncpa [#allocation3], 1
    %246 = vsyncpa [#allocation5], 1

// kernel: rnn_forward.6
$region0: #{rnn_forward.6}
  #allocation0 [shape = 'u32[]', space=smem, size = 0x4, offset = 0x4, fixed_abs, tag = 'smem constant byte address 0x4 - core index']
  #allocation1 [shape = 'u32[144,128]{1,0:T(1,128)}', space=vmem, size = 0x12000, scoped, tag = 'internal scratch']
  #allocation2 [shape = 'f32[2,128]{1,0:T(2,128)}', space=vmem, size = 0x400, scoped, tag = 'scratch operand']
  #allocation3 [shape = 'f32[2,128]{1,0:T(2,128)}', space=vmem, size = 0x400, scoped, tag = 'scratch operand']
  %s0 = inlined_call_operand.vmem [shape: f32[8,2,512], index: 0, kind: input, shape index: {}]
  %s1 = inlined_call_operand.hbm [shape: f32[128,512], index: 1, kind: input, shape index: {}]
  %s2 = inlined_call_operand.vmem [shape: f32[8,2,128], index: 2, kind: output, shape index: {}]
  %s3 = sld [smem:[#allocation0]]
  $region26: #{rnn_forward.6} parent=0
    _
  %s5 = ssub.s32 1, %s3
  %s6 = scalar_select 0, %s5, %s3
  $region1: #{rnn_forward.6} parent=0
    #allocation4 [shape = 'u8[262144]{0}', space=vmem, size = 0x40000, scoped, tag = 'input window, operand 1, single buffered']
    #allocation5 [shape = 's32[1]{0}', space=sflag, size = 0x4, scoped, tag = 'scoped memory for rnn_forward.6']
    %7 = vsyncpa [#allocation5], 0
    // Predicated region
    $region2: #{rnn_forward.6} parent=1 // pred_check
      _
    $region3: #{rnn_forward.6} parent=1 // pred_check_branch
      %9 = sbr.rel (0) target = $region5
    $region4: #{rnn_forward.6} parent=1 // pred_region
      _
    $region5: #{rnn_forward.6} parent=1 // pred_fallthru
      _
    // Predicated region
    $region6: #{rnn_forward.6} parent=1 // pred_check
      _
    $region7: #{rnn_forward.6} parent=1 // pred_check_branch
      %11 = sbr.rel (0) target = $region9
    $region8: #{rnn_forward.6} parent=1 // pred_region
      %s13 = ssub.s32 8192, 8192
      %14 = vsyncadd [#allocation5], %s13
      %s15 = sshll.u32 [#allocation4], 4
      %s16 = int_to_ptr.vmem [resolvable:$true] %s15
      %21 = dma.hbm_to_vmem [thread:$0]  %s1, 8192, %s16, [#allocation5], 512, 512, 32
    $region9: #{rnn_forward.6} parent=1 // pred_fallthru
      _
    // Predicated region
    $region10: #{rnn_forward.6} parent=1 // pred_check
      _
    $region11: #{rnn_forward.6} parent=1 // pred_check_branch
      %23 = sbr.rel (0) target = $region13
    $region12: #{rnn_forward.6} parent=1 // pred_region
      %24 = dma.done [#allocation5], 8192
    $region13: #{rnn_forward.6} parent=1 // pred_fallthru
      _
    %p25 = scmp.eq.s32.totalorder 0, 0
    // Predicated region
    $region14: #{rnn_forward.6} parent=1 // pred_check
      %p26 = pneg %p25
    $region15: #{rnn_forward.6} parent=1 // pred_check_branch
      %28 = sbr.rel (%p26) target = $region17
    $region16: #{rnn_forward.6} parent=1 // pred_region
      %29 = vst [vmem:[#allocation2] sm:$0x3] 0.0
      %30 = vst [vmem:[#allocation3] sm:$0x3] 0.0
    $region17: #{rnn_forward.6} parent=1 // pred_fallthru
      _
    %v31 = vld [vmem:[#allocation4] sm:$0xff]
    %v32 = vld [vmem:[#allocation4 + $0x8] sm:$0xff]
    %v33 = vld [vmem:[#allocation4 + $0x10] sm:$0xff]
    %v34 = vld [vmem:[#allocation4 + $0x18] sm:$0xff]
    %v35 = vld [vmem:[#allocation4 + $0x20] sm:$0xff]
    %v36 = vld [vmem:[#allocation4 + $0x28] sm:$0xff]
    %v37 = vld [vmem:[#allocation4 + $0x30] sm:$0xff]
    %v38 = vld [vmem:[#allocation4 + $0x38] sm:$0xff]
    %v39 = vld [vmem:[#allocation4 + $0x40] sm:$0xff]
    %v40 = vld [vmem:[#allocation4 + $0x48] sm:$0xff]
    %v41 = vld [vmem:[#allocation4 + $0x50] sm:$0xff]
    %v42 = vld [vmem:[#allocation4 + $0x58] sm:$0xff]
    %v43 = vld [vmem:[#allocation4 + $0x60] sm:$0xff]
    %v44 = vld [vmem:[#allocation4 + $0x68] sm:$0xff]
    %v45 = vld [vmem:[#allocation4 + $0x70] sm:$0xff]
    %v46 = vld [vmem:[#allocation4 + $0x78] sm:$0xff]
    %v47 = vld [vmem:[#allocation4 + $0x80] sm:$0xff]
    %v48 = vld [vmem:[#allocation4 + $0x88] sm:$0xff]
    %v49 = vld [vmem:[#allocation4 + $0x90] sm:$0xff]
    %v50 = vld [vmem:[#allocation4 + $0x98] sm:$0xff]
    %v51 = vld [vmem:[#allocation4 + $0xa0] sm:$0xff]
    %v52 = vld [vmem:[#allocation4 + $0xa8] sm:$0xff]
    %v53 = vld [vmem:[#allocation4 + $0xb0] sm:$0xff]
    %v54 = vld [vmem:[#allocation4 + $0xb8] sm:$0xff]
    %v55 = vld [vmem:[#allocation4 + $0xc0] sm:$0xff]
    %v56 = vld [vmem:[#allocation4 + $0xc8] sm:$0xff]
    %v57 = vld [vmem:[#allocation4 + $0xd0] sm:$0xff]
    %v58 = vld [vmem:[#allocation4 + $0xd8] sm:$0xff]
    %v59 = vld [vmem:[#allocation4 + $0xe0] sm:$0xff]
    %v60 = vld [vmem:[#allocation4 + $0xe8] sm:$0xff]
    %v61 = vld [vmem:[#allocation4 + $0xf0] sm:$0xff]
    %v62 = vld [vmem:[#allocation4 + $0xf8] sm:$0xff]
    %v63 = vld [vmem:[#allocation4 + $0x100] sm:$0xff]
    %v64 = vld [vmem:[#allocation4 + $0x108] sm:$0xff]
    %v65 = vld [vmem:[#allocation4 + $0x110] sm:$0xff]
    %v66 = vld [vmem:[#allocation4 + $0x118] sm:$0xff]
    %v67 = vld [vmem:[#allocation4 + $0x120] sm:$0xff]
    %v68 = vld [vmem:[#allocation4 + $0x128] sm:$0xff]
    %v69 = vld [vmem:[#allocation4 + $0x130] sm:$0xff]
    %v70 = vld [vmem:[#allocation4 + $0x138] sm:$0xff]
    %v71 = vld [vmem:[#allocation4 + $0x140] sm:$0xff]
    %v72 = vld [vmem:[#allocation4 + $0x148] sm:$0xff]
    %v73 = vld [vmem:[#allocation4 + $0x150] sm:$0xff]
    %v74 = vld [vmem:[#allocation4 + $0x158] sm:$0xff]
    %v75 = vld [vmem:[#allocation4 + $0x160] sm:$0xff]
    %v76 = vld [vmem:[#allocation4 + $0x168] sm:$0xff]
    %v77 = vld [vmem:[#allocation4 + $0x170] sm:$0xff]
    %v78 = vld [vmem:[#allocation4 + $0x178] sm:$0xff]
    %v79 = vld [vmem:[#allocation4 + $0x180] sm:$0xff]
    %v80 = vld [vmem:[#allocation4 + $0x188] sm:$0xff]
    %v81 = vld [vmem:[#allocation4 + $0x190] sm:$0xff]
    %v82 = vld [vmem:[#allocation4 + $0x198] sm:$0xff]
    %v83 = vld [vmem:[#allocation4 + $0x1a0] sm:$0xff]
    %v84 = vld [vmem:[#allocation4 + $0x1a8] sm:$0xff]
    %v85 = vld [vmem:[#allocation4 + $0x1b0] sm:$0xff]
    %v86 = vld [vmem:[#allocation4 + $0x1b8] sm:$0xff]
    %v87 = vld [vmem:[#allocation4 + $0x1c0] sm:$0xff]
    %v88 = vld [vmem:[#allocation4 + $0x1c8] sm:$0xff]
    %v89 = vld [vmem:[#allocation4 + $0x1d0] sm:$0xff]
    %v90 = vld [vmem:[#allocation4 + $0x1d8] sm:$0xff]
    %v91 = vld [vmem:[#allocation4 + $0x1e0] sm:$0xff]
    %v92 = vld [vmem:[#allocation4 + $0x1e8] sm:$0xff]
    %v93 = vld [vmem:[#allocation4 + $0x1f0] sm:$0xff]
    %v94 = vld [vmem:[#allocation4 + $0x1f8] sm:$0xff]
    %v95 = vld [vmem:[#allocation2] sm:$0x3]
    %v96 = vld [vmem:[#allocation3] sm:$0x3]
    %v97 = vld [vmem:[%s0] sm:$0xff]
    %98 = vmatprep.subr.mxu0 %v92
    %99 = vmatpush1.msra.mxu0 %v91
    %100 = vmatprep.subr.mxu0 %v88
    %101 = vmatpush1.msra.mxu0 %v87
    %102 = vmatprep.subr.mxu0 %v84
    %103 = vmatpush1.msra.mxu0 %v83
    %104 = vmatprep.subr.mxu0 %v80
    %105 = vmatpush1.msra.mxu0 %v79
    %106 = vmatprep.subr.mxu0 %v76
    %107 = vmatpush1.msra.mxu0 %v75
    %108 = vmatprep.subr.mxu0 %v72
    %109 = vmatpush1.msra.mxu0 %v71
    %110 = vmatprep.subr.mxu0 %v68
    %111 = vmatpush1.msra.mxu0 %v67
    %112 = vmatprep.subr.mxu0 %v64
    %113 = vmatpush1.msra.mxu0 %v63
    %114 = vmatprep.subr.mxu0 %v60
    %115 = vmatpush1.msra.mxu0 %v59
    %116 = vmatprep.subr.mxu0 %v56
    %117 = vmatpush1.msra.mxu0 %v55
    %118 = vmatprep.subr.mxu0 %v52
    %119 = vmatpush1.msra.mxu0 %v51
    %120 = vmatprep.subr.mxu0 %v48
    %121 = vmatpush1.msra.mxu0 %v47
    %122 = vmatprep.subr.mxu0 %v44
    %123 = vmatpush1.msra.mxu0 %v43
    %124 = vmatprep.subr.mxu0 %v40
    %125 = vmatpush1.msra.mxu0 %v39
    %126 = vmatprep.subr.mxu0 %v36
    %127 = vmatpush1.msra.mxu0 %v35
    %128 = vmatprep.subr.mxu0 %v32
    %129 = vmatpush1.msra.mxu0 %v31
    %130 = vmatprep.subr.mxu0 0.0
    %131 = vmatpush2.msra.mxu0 0.0
    %132 = vmatprep.subr.mxu0 0.0
    %133 = vmatpush2.msra.mxu0 0.0
    %134 = vmatprep.subr.mxu0 0.0
    %135 = vmatpush2.msra.mxu0 0.0
    %136 = vmatprep.subr.mxu0 0.0
    %137 = vmatpush2.msra.mxu0 0.0
    %138 = vmatprep.subr.mxu0 0.0
    %139 = vmatpush2.msra.mxu0 0.0
    %140 = vmatprep.subr.mxu0 0.0
    %141 = vmatpush2.msra.mxu0 0.0
    %142 = vmatprep.subr.mxu0 0.0
    %143 = vmatpush2.msra.mxu0 0.0
    %144 = vmatprep.subr.mxu0 0.0
    %145 = vmatpush2.msra.mxu0 0.0
    %146 = vmatprep.subr.mxu0 0.0
    %147 = vmatpush2.msra.mxu0 0.0
    %148 = vmatprep.subr.mxu0 0.0
    %149 = vmatpush2.msra.mxu0 0.0
    %150 = vmatprep.subr.mxu0 0.0
    %151 = vmatpush2.msra.mxu0 0.0
    %152 = vmatprep.subr.mxu0 0.0
    %153 = vmatpush2.msra.mxu0 0.0
    %154 = vmatprep.subr.mxu0 0.0
    %155 = vmatpush2.msra.mxu0 0.0
    %156 = vmatprep.subr.mxu0 0.0
    %157 = vmatpush2.msra.mxu0 0.0
    %158 = vmatprep.subr.mxu0 0.0
    %159 = vmatpush2.msra.mxu0 0.0
    %160 = vmatprep.subr.mxu0 0.0
    %161 = vmatpush2.msra.mxu0 0.0
    %162 = vmatprep.mubr.f32.mxu0 0.0
    %163 = vmatmul.mubr.f32.gmra.mxu0 %v95
    %v164 = vpop.f32.mrf.mxu0
    %v165 = vadd.f32 0.0, %v164
    %v166 = vpop.f32.mrf.mxu0
    %v167 = vadd.f32 0.0, %v166
    %168 = vdwg.mxu0
    %169 = vmatprep.subr.mxu0 %v94
    %170 = vmatpush1.msra.mxu0 %v93
    %171 = vmatprep.subr.mxu0 %v90
    %172 = vmatpush1.msra.mxu0 %v89
    %173 = vmatprep.subr.mxu0 %v86
    %174 = vmatpush1.msra.mxu0 %v85
    %175 = vmatprep.subr.mxu0 %v82
    %176 = vmatpush1.msra.mxu0 %v81
    %177 = vmatprep.subr.mxu0 %v78
    %178 = vmatpush1.msra.mxu0 %v77
    %179 = vmatprep.subr.mxu0 %v74
    %180 = vmatpush1.msra.mxu0 %v73
    %181 = vmatprep.subr.mxu0 %v70
    %182 = vmatpush1.msra.mxu0 %v69
    %183 = vmatprep.subr.mxu0 %v66
    %184 = vmatpush1.msra.mxu0 %v65
    %185 = vmatprep.subr.mxu0 %v62
    %186 = vmatpush1.msra.mxu0 %v61
    %187 = vmatprep.subr.mxu0 %v58
    %188 = vmatpush1.msra.mxu0 %v57
    %189 = vmatprep.subr.mxu0 %v54
    %190 = vmatpush1.msra.mxu0 %v53
    %191 = vmatprep.subr.mxu0 %v50
    %192 = vmatpush1.msra.mxu0 %v49
    %193 = vmatprep.subr.mxu0 %v46
    %194 = vmatpush1.msra.mxu0 %v45
    %195 = vmatprep.subr.mxu0 %v42
    %196 = vmatpush1.msra.mxu0 %v41
    %197 = vmatprep.subr.mxu0 %v38
    %198 = vmatpush1.msra.mxu0 %v37
    %199 = vmatprep.subr.mxu0 %v34
    %200 = vmatpush1.msra.mxu0 %v33
    %201 = vmatprep.subr.mxu0 0.0
    %202 = vmatpush2.msra.mxu0 0.0
    %203 = vmatprep.subr.mxu0 0.0
    %204 = vmatpush2.msra.mxu0 0.0
    %205 = vmatprep.subr.mxu0 0.0
    %206 = vmatpush2.msra.mxu0 0.0
    %207 = vmatprep.subr.mxu0 0.0
    %208 = vmatpush2.msra.mxu0 0.0
    %209 = vmatprep.subr.mxu0 0.0
    %210 = vmatpush2.msra.mxu0 0.0
    %211 = vmatprep.subr.mxu0 0.0
    %212 = vmatpush2.msra.mxu0 0.0
    %213 = vmatprep.subr.mxu0 0.0
    %214 = vmatpush2.msra.mxu0 0.0
    %215 = vmatprep.subr.mxu0 0.0
    %216 = vmatpush2.msra.mxu0 0.0
    %217 = vmatprep.subr.mxu0 0.0
    %218 = vmatpush2.msra.mxu0 0.0
    %219 = vmatprep.subr.mxu0 0.0
    %220 = vmatpush2.msra.mxu0 0.0
    %221 = vmatprep.subr.mxu0 0.0
    %222 = vmatpush2.msra.mxu0 0.0
    %223 = vmatprep.subr.mxu0 0.0
    %224 = vmatpush2.msra.mxu0 0.0
    %225 = vmatprep.subr.mxu0 0.0
    %226 = vmatpush2.msra.mxu0 0.0
    %227 = vmatprep.subr.mxu0 0.0
    %228 = vmatpush2.msra.mxu0 0.0
    %229 = vmatprep.subr.mxu0 0.0
    %230 = vmatpush2.msra.mxu0 0.0
    %231 = vmatprep.subr.mxu0 0.0
    %232 = vmatpush2.msra.mxu0 0.0
    %233 = vmatprep.mubr.f32.mxu0 0.0
    %234 = vmatmul.mubr.f32.gmra.mxu0 %v95
    %v235 = vpop.f32.mrf.mxu0
    %v236 = vadd.f32 0.0, %v235
    %v237 = vpop.f32.mrf.mxu0
    %v238 = vadd.f32 0.0, %v237
    %239 = vdwg.mxu0
    %v244 = vcombine.low %v165, %v167
    %v245 = vcombine.low %v236, %v238
    %v247 = vunpack.c.l.s4 1983009808
    %v248 = vunpack.c.0.s8 %v247
    %v249 = vlaneseq
    %v250 = vshrl.u32 %v249, 7
    %v251 = vsub.s32 %v248, %v250
    %v252 = vrot.slane %v244, %v251
    %v254 = vunpack.c.l.s4 1983009808
    %v255 = vunpack.c.0.s8 %v254
    %v256 = vlaneseq
    %v257 = vshrl.u32 %v256, 7
    %v258 = vsub.s32 %v255, %v257
    %v259 = vrot.slane %v245, %v258
    %v260 = vcombine.low %v252, %v259
    %v262 = vadd.f32 %v97, %v260
    %v263 = vxor.u32 %v262, 2147483648
    %v264 = vmul.f32 %v263, 1.442695
    %v265 = vpow.pop %v264
    %v266 = vadd.f32 %v265, 1.0
    %v267 = vrcp.pop %v266
    %v268 = vmul.f32 1.0, %v267
    %v270 = vrot.slane %v262, 2
    %v272 = vxor.u32 %v270, 2147483648
    %v273 = vmul.f32 %v272, 1.442695
    %v274 = vpow.pop %v273
    %v275 = vadd.f32 %v274, 1.0
    %v276 = vrcp.pop %v275
    %v277 = vmul.f32 1.0, %v276
    %v278 = vrot.slane %v262, 4
    %v280 = vtanh.pop %v278
    %v281 = vrot.slane %v262, 6
    %v283 = vxor.u32 %v281, 2147483648
    %v284 = vmul.f32 %v283, 1.442695
    %v285 = vpow.pop %v284
    %v286 = vadd.f32 %v285, 1.0
    %v287 = vrcp.pop %v286
    %v288 = vmul.f32 1.0, %v287
    %v289 = vmul.f32 %v277, %v96
    %v290 = vmul.f32 %v268, %v280
    %v291 = vadd.f32 %v289, %v290
    %v292 = vtanh.pop %v291
    %v293 = vmul.f32 %v288, %v292
    %294 = vst [vmem:[%s2] sm:$0x3] %v293
    %s295 = scalar_lea.vmem %s0, 8
    %v296 = vld [vmem:[%s295] sm:$0xff]
    %297 = vmatprep.subr.mxu0 %v92
    %298 = vmatpush1.msra.mxu0 %v91
    %299 = vmatprep.subr.mxu0 %v88
    %300 = vmatpush1.msra.mxu0 %v87
    %301 = vmatprep.subr.mxu0 %v84
    %302 = vmatpush1.msra.mxu0 %v83
    %303 = vmatprep.subr.mxu0 %v80
    %304 = vmatpush1.msra.mxu0 %v79
    %305 = vmatprep.subr.mxu0 %v76
    %306 = vmatpush1.msra.mxu0 %v75
    %307 = vmatprep.subr.mxu0 %v72
    %308 = vmatpush1.msra.mxu0 %v71
    %309 = vmatprep.subr.mxu0 %v68
    %310 = vmatpush1.msra.mxu0 %v67
    %311 = vmatprep.subr.mxu0 %v64
    %312 = vmatpush1.msra.mxu0 %v63
    %313 = vmatprep.subr.mxu0 %v60
    %314 = vmatpush1.msra.mxu0 %v59
    %315 = vmatprep.subr.mxu0 %v56
    %316 = vmatpush1.msra.mxu0 %v55
    %317 = vmatprep.subr.mxu0 %v52
    %318 = vmatpush1.msra.mxu0 %v51
    %319 = vmatprep.subr.mxu0 %v48
    %320 = vmatpush1.msra.mxu0 %v47
    %321 = vmatprep.subr.mxu0 %v44
    %322 = vmatpush1.msra.mxu0 %v43
    %323 = vmatprep.subr.mxu0 %v40
    %324 = vmatpush1.msra.mxu0 %v39
    %325 = vmatprep.subr.mxu0 %v36
    %326 = vmatpush1.msra.mxu0 %v35
    %327 = vmatprep.subr.mxu0 %v32
    %328 = vmatpush1.msra.mxu0 %v31
    %329 = vmatprep.subr.mxu0 0.0
    %330 = vmatpush2.msra.mxu0 0.0
    %331 = vmatprep.subr.mxu0 0.0
    %332 = vmatpush2.msra.mxu0 0.0
    %333 = vmatprep.subr.mxu0 0.0
    %334 = vmatpush2.msra.mxu0 0.0
    %335 = vmatprep.subr.mxu0 0.0
    %336 = vmatpush2.msra.mxu0 0.0
    %337 = vmatprep.subr.mxu0 0.0
    %338 = vmatpush2.msra.mxu0 0.0
    %339 = vmatprep.subr.mxu0 0.0
    %340 = vmatpush2.msra.mxu0 0.0
    %341 = vmatprep.subr.mxu0 0.0
    %342 = vmatpush2.msra.mxu0 0.0
    %343 = vmatprep.subr.mxu0 0.0
    %344 = vmatpush2.msra.mxu0 0.0
    %345 = vmatprep.subr.mxu0 0.0
    %346 = vmatpush2.msra.mxu0 0.0
    %347 = vmatprep.subr.mxu0 0.0
    %348 = vmatpush2.msra.mxu0 0.0
    %349 = vmatprep.subr.mxu0 0.0
    %350 = vmatpush2.msra.mxu0 0.0
    %351 = vmatprep.subr.mxu0 0.0
    %352 = vmatpush2.msra.mxu0 0.0
    %353 = vmatprep.subr.mxu0 0.0
    %354 = vmatpush2.msra.mxu0 0.0
    %355 = vmatprep.subr.mxu0 0.0
    %356 = vmatpush2.msra.mxu0 0.0
    %357 = vmatprep.subr.mxu0 0.0
    %358 = vmatpush2.msra.mxu0 0.0
    %359 = vmatprep.subr.mxu0 0.0
    %360 = vmatpush2.msra.mxu0 0.0
    %361 = vmatprep.mubr.f32.mxu0 0.0
    %362 = vmatmul.mubr.f32.gmra.mxu0 %v293
    %v363 = vpop.f32.mrf.mxu0
    %v364 = vadd.f32 0.0, %v363
    %v365 = vpop.f32.mrf.mxu0
    %v366 = vadd.f32 0.0, %v365
    %367 = vdwg.mxu0
    %368 = vmatprep.subr.mxu0 %v94
    %369 = vmatpush1.msra.mxu0 %v93
    %370 = vmatprep.subr.mxu0 %v90
    %371 = vmatpush1.msra.mxu0 %v89
    %372 = vmatprep.subr.mxu0 %v86
    %373 = vmatpush1.msra.mxu0 %v85
    %374 = vmatprep.subr.mxu0 %v82
    %375 = vmatpush1.msra.mxu0 %v81
    %376 = vmatprep.subr.mxu0 %v78
    %377 = vmatpush1.msra.mxu0 %v77
    %378 = vmatprep.subr.mxu0 %v74
    %379 = vmatpush1.msra.mxu0 %v73
    %380 = vmatprep.subr.mxu0 %v70
    %381 = vmatpush1.msra.mxu0 %v69
    %382 = vmatprep.subr.mxu0 %v66
    %383 = vmatpush1.msra.mxu0 %v65
    %384 = vmatprep.subr.mxu0 %v62
    %385 = vmatpush1.msra.mxu0 %v61
    %386 = vmatprep.subr.mxu0 %v58
    %387 = vmatpush1.msra.mxu0 %v57
    %388 = vmatprep.subr.mxu0 %v54
    %389 = vmatpush1.msra.mxu0 %v53
    %390 = vmatprep.subr.mxu0 %v50
    %391 = vmatpush1.msra.mxu0 %v49
    %392 = vmatprep.subr.mxu0 %v46
    %393 = vmatpush1.msra.mxu0 %v45
    %394 = vmatprep.subr.mxu0 %v42
    %395 = vmatpush1.msra.mxu0 %v41
    %396 = vmatprep.subr.mxu0 %v38
    %397 = vmatpush1.msra.mxu0 %v37
    %398 = vmatprep.subr.mxu0 %v34
    %399 = vmatpush1.msra.mxu0 %v33
    %400 = vmatprep.subr.mxu0 0.0
    %401 = vmatpush2.msra.mxu0 0.0
    %402 = vmatprep.subr.mxu0 0.0
    %403 = vmatpush2.msra.mxu0 0.0
    %404 = vmatprep.subr.mxu0 0.0
    %405 = vmatpush2.msra.mxu0 0.0
    %406 = vmatprep.subr.mxu0 0.0
    %407 = vmatpush2.msra.mxu0 0.0
    %408 = vmatprep.subr.mxu0 0.0
    %409 = vmatpush2.msra.mxu0 0.0
    %410 = vmatprep.subr.mxu0 0.0
    %411 = vmatpush2.msra.mxu0 0.0
    %412 = vmatprep.subr.mxu0 0.0
    %413 = vmatpush2.msra.mxu0 0.0
    %414 = vmatprep.subr.mxu0 0.0
    %415 = vmatpush2.msra.mxu0 0.0
    %416 = vmatprep.subr.mxu0 0.0
    %417 = vmatpush2.msra.mxu0 0.0
    %418 = vmatprep.subr.mxu0 0.0
    %419 = vmatpush2.msra.mxu0 0.0
    %420 = vmatprep.subr.mxu0 0.0
    %421 = vmatpush2.msra.mxu0 0.0
    %422 = vmatprep.subr.mxu0 0.0
    %423 = vmatpush2.msra.mxu0 0.0
    %424 = vmatprep.subr.mxu0 0.0
    %425 = vmatpush2.msra.mxu0 0.0
    %426 = vmatprep.subr.mxu0 0.0
    %427 = vmatpush2.msra.mxu0 0.0
    %428 = vmatprep.subr.mxu0 0.0
    %429 = vmatpush2.msra.mxu0 0.0
    %430 = vmatprep.subr.mxu0 0.0
    %431 = vmatpush2.msra.mxu0 0.0
    %432 = vmatprep.mubr.f32.mxu0 0.0
    %433 = vmatmul.mubr.f32.gmra.mxu0 %v293
    %v434 = vpop.f32.mrf.mxu0
    %v435 = vadd.f32 0.0, %v434
    %v436 = vpop.f32.mrf.mxu0
    %v437 = vadd.f32 0.0, %v436
    %438 = vdwg.mxu0
    %v443 = vcombine.low %v364, %v366
    %v444 = vcombine.low %v435, %v437
    %v446 = vunpack.c.l.s4 1983009808
    %v447 = vunpack.c.0.s8 %v446
    %v448 = vlaneseq
    %v449 = vshrl.u32 %v448, 7
    %v450 = vsub.s32 %v447, %v449
    %v451 = vrot.slane %v443, %v450
    %v453 = vunpack.c.l.s4 1983009808
    %v454 = vunpack.c.0.s8 %v453
    %v455 = vlaneseq
    %v456 = vshrl.u32 %v455, 7
    %v457 = vsub.s32 %v454, %v456
    %v458 = vrot.slane %v444, %v457
    %v459 = vcombine.low %v451, %v458
    %v461 = vadd.f32 %v296, %v459
    %v462 = vxor.u32 %v461, 2147483648
    %v463 = vmul.f32 %v462, 1.442695
    %v464 = vpow.pop %v463
    %v465 = vadd.f32 %v464, 1.0
    %v466 = vrcp.pop %v465
    %v467 = vmul.f32 1.0, %v466
    %v469 = vrot.slane %v461, 2
    %v471 = vxor.u32 %v469, 2147483648
    %v472 = vmul.f32 %v471, 1.442695
    %v473 = vpow.pop %v472
    %v474 = vadd.f32 %v473, 1.0
    %v475 = vrcp.pop %v474
    %v476 = vmul.f32 1.0, %v475
    %v477 = vrot.slane %v461, 4
    %v479 = vtanh.pop %v477
    %v480 = vrot.slane %v461, 6
    %v482 = vxor.u32 %v480, 2147483648
    %v483 = vmul.f32 %v482, 1.442695
    %v484 = vpow.pop %v483
    %v485 = vadd.f32 %v484, 1.0
    %v486 = vrcp.pop %v485
    %v487 = vmul.f32 1.0, %v486
    %v488 = vmul.f32 %v476, %v291
    %v489 = vmul.f32 %v467, %v479
    %v490 = vadd.f32 %v488, %v489
    %v491 = vtanh.pop %v490
    %v492 = vmul.f32 %v487, %v491
    %s493 = scalar_lea.vmem %s2, 2
    %494 = vst [vmem:[%s493] sm:$0x3] %v492
    %s495 = scalar_lea.vmem %s0, 16
    %v496 = vld [vmem:[%s495] sm:$0xff]
    %497 = vmatprep.subr.mxu0 %v92
    %498 = vmatpush1.msra.mxu0 %v91
    %499 = vmatprep.subr.mxu0 %v88
    %500 = vmatpush1.msra.mxu0 %v87
    %501 = vmatprep.subr.mxu0 %v84
    %502 = vmatpush1.msra.mxu0 %v83
    %503 = vmatprep.subr.mxu0 %v80
    %504 = vmatpush1.msra.mxu0 %v79
    %505 = vmatprep.subr.mxu0 %v76
    %506 = vmatpush1.msra.mxu0 %v75
    %507 = vmatprep.subr.mxu0 %v72
    %508 = vmatpush1.msra.mxu0 %v71
    %509 = vmatprep.subr.mxu0 %v68
    %510 = vmatpush1.msra.mxu0 %v67
    %511 = vmatprep.subr.mxu0 %v64
    %512 = vmatpush1.msra.mxu0 %v63
    %513 = vmatprep.subr.mxu0 %v60
    %514 = vmatpush1.msra.mxu0 %v59
    %515 = vmatprep.subr.mxu0 %v56
    %516 = vmatpush1.msra.mxu0 %v55
    %517 = vmatprep.subr.mxu0 %v52
    %518 = vmatpush1.msra.mxu0 %v51
    %519 = vmatprep.subr.mxu0 %v48
    %520 = vmatpush1.msra.mxu0 %v47
    %521 = vmatprep.subr.mxu0 %v44
    %522 = vmatpush1.msra.mxu0 %v43
    %523 = vmatprep.subr.mxu0 %v40
    %524 = vmatpush1.msra.mxu0 %v39
    %525 = vmatprep.subr.mxu0 %v36
    %526 = vmatpush1.msra.mxu0 %v35
    %527 = vmatprep.subr.mxu0 %v32
    %528 = vmatpush1.msra.mxu0 %v31
    %529 = vmatprep.subr.mxu0 0.0
    %530 = vmatpush2.msra.mxu0 0.0
    %531 = vmatprep.subr.mxu0 0.0
    %532 = vmatpush2.msra.mxu0 0.0
    %533 = vmatprep.subr.mxu0 0.0
    %534 = vmatpush2.msra.mxu0 0.0
    %535 = vmatprep.subr.mxu0 0.0
    %536 = vmatpush2.msra.mxu0 0.0
    %537 = vmatprep.subr.mxu0 0.0
    %538 = vmatpush2.msra.mxu0 0.0
    %539 = vmatprep.subr.mxu0 0.0
    %540 = vmatpush2.msra.mxu0 0.0
    %541 = vmatprep.subr.mxu0 0.0
    %542 = vmatpush2.msra.mxu0 0.0
    %543 = vmatprep.subr.mxu0 0.0
    %544 = vmatpush2.msra.mxu0 0.0
    %545 = vmatprep.subr.mxu0 0.0
    %546 = vmatpush2.msra.mxu0 0.0
    %547 = vmatprep.subr.mxu0 0.0
    %548 = vmatpush2.msra.mxu0 0.0
    %549 = vmatprep.subr.mxu0 0.0
    %550 = vmatpush2.msra.mxu0 0.0
    %551 = vmatprep.subr.mxu0 0.0
    %552 = vmatpush2.msra.mxu0 0.0
    %553 = vmatprep.subr.mxu0 0.0
    %554 = vmatpush2.msra.mxu0 0.0
    %555 = vmatprep.subr.mxu0 0.0
    %556 = vmatpush2.msra.mxu0 0.0
    %557 = vmatprep.subr.mxu0 0.0
    %558 = vmatpush2.msra.mxu0 0.0
    %559 = vmatprep.subr.mxu0 0.0
    %560 = vmatpush2.msra.mxu0 0.0
    %561 = vmatprep.mubr.f32.mxu0 0.0
    %562 = vmatmul.mubr.f32.gmra.mxu0 %v492
    %v563 = vpop.f32.mrf.mxu0
    %v564 = vadd.f32 0.0, %v563
    %v565 = vpop.f32.mrf.mxu0
    %v566 = vadd.f32 0.0, %v565
    %567 = vdwg.mxu0
    %568 = vmatprep.subr.mxu0 %v94
    %569 = vmatpush1.msra.mxu0 %v93
    %570 = vmatprep.subr.mxu0 %v90
    %571 = vmatpush1.msra.mxu0 %v89
    %572 = vmatprep.subr.mxu0 %v86
    %573 = vmatpush1.msra.mxu0 %v85
    %574 = vmatprep.subr.mxu0 %v82
    %575 = vmatpush1.msra.mxu0 %v81
    %576 = vmatprep.subr.mxu0 %v78
    %577 = vmatpush1.msra.mxu0 %v77
    %578 = vmatprep.subr.mxu0 %v74
    %579 = vmatpush1.msra.mxu0 %v73
    %580 = vmatprep.subr.mxu0 %v70
    %581 = vmatpush1.msra.mxu0 %v69
    %582 = vmatprep.subr.mxu0 %v66
    %583 = vmatpush1.msra.mxu0 %v65
    %584 = vmatprep.subr.mxu0 %v62
    %585 = vmatpush1.msra.mxu0 %v61
    %586 = vmatprep.subr.mxu0 %v58
    %587 = vmatpush1.msra.mxu0 %v57
    %588 = vmatprep.subr.mxu0 %v54
    %589 = vmatpush1.msra.mxu0 %v53
    %590 = vmatprep.subr.mxu0 %v50
    %591 = vmatpush1.msra.mxu0 %v49
    %592 = vmatprep.subr.mxu0 %v46
    %593 = vmatpush1.msra.mxu0 %v45
    %594 = vmatprep.subr.mxu0 %v42
    %595 = vmatpush1.msra.mxu0 %v41
    %596 = vmatprep.subr.mxu0 %v38
    %597 = vmatpush1.msra.mxu0 %v37
    %598 = vmatprep.subr.mxu0 %v34
    %599 = vmatpush1.msra.mxu0 %v33
    %600 = vmatprep.subr.mxu0 0.0
    %601 = vmatpush2.msra.mxu0 0.0
    %602 = vmatprep.subr.mxu0 0.0
    %603 = vmatpush2.msra.mxu0 0.0
    %604 = vmatprep.subr.mxu0 0.0
    %605 = vmatpush2.msra.mxu0 0.0
    %606 = vmatprep.subr.mxu0 0.0
    %607 = vmatpush2.msra.mxu0 0.0
    %608 = vmatprep.subr.mxu0 0.0
    %609 = vmatpush2.msra.mxu0 0.0
    %610 = vmatprep.subr.mxu0 0.0
    %611 = vmatpush2.msra.mxu0 0.0
    %612 = vmatprep.subr.mxu0 0.0
    %613 = vmatpush2.msra.mxu0 0.0
    %614 = vmatprep.subr.mxu0 0.0
    %615 = vmatpush2.msra.mxu0 0.0
    %616 = vmatprep.subr.mxu0 0.0
    %617 = vmatpush2.msra.mxu0 0.0
    %618 = vmatprep.subr.mxu0 0.0
    %619 = vmatpush2.msra.mxu0 0.0
    %620 = vmatprep.subr.mxu0 0.0
    %621 = vmatpush2.msra.mxu0 0.0
    %622 = vmatprep.subr.mxu0 0.0
    %623 = vmatpush2.msra.mxu0 0.0
    %624 = vmatprep.subr.mxu0 0.0
    %625 = vmatpush2.msra.mxu0 0.0
    %626 = vmatprep.subr.mxu0 0.0
    %627 = vmatpush2.msra.mxu0 0.0
    %628 = vmatprep.subr.mxu0 0.0
    %629 = vmatpush2.msra.mxu0 0.0
    %630 = vmatprep.subr.mxu0 0.0
    %631 = vmatpush2.msra.mxu0 0.0
    %632 = vmatprep.mubr.f32.mxu0 0.0
    %633 = vmatmul.mubr.f32.gmra.mxu0 %v492
    %v634 = vpop.f32.mrf.mxu0
    %v635 = vadd.f32 0.0, %v634
    %v636 = vpop.f32.mrf.mxu0
    %v637 = vadd.f32 0.0, %v636
    %638 = vdwg.mxu0
    %v643 = vcombine.low %v564, %v566
    %v644 = vcombine.low %v635, %v637
    %v646 = vunpack.c.l.s4 1983009808
    %v647 = vunpack.c.0.s8 %v646
    %v648 = vlaneseq
    %v649 = vshrl.u32 %v648, 7
    %v650 = vsub.s32 %v647, %v649
    %v651 = vrot.slane %v643, %v650
    %v653 = vunpack.c.l.s4 1983009808
    %v654 = vunpack.c.0.s8 %v653
    %v655 = vlaneseq
    %v656 = vshrl.u32 %v655, 7
    %v657 = vsub.s32 %v654, %v656
    %v658 = vrot.slane %v644, %v657
    %v659 = vcombine.low %v651, %v658
    %v661 = vadd.f32 %v496, %v659
    %v662 = vxor.u32 %v661, 2147483648
    %v663 = vmul.f32 %v662, 1.442695
    %v664 = vpow.pop %v663
    %v665 = vadd.f32 %v664, 1.0
    %v666 = vrcp.pop %v665
    %v667 = vmul.f32 1.0, %v666
    %v669 = vrot.slane %v661, 2
    %v671 = vxor.u32 %v669, 2147483648
    %v672 = vmul.f32 %v671, 1.442695
    %v673 = vpow.pop %v672
    %v674 = vadd.f32 %v673, 1.0
    %v675 = vrcp.pop %v674
    %v676 = vmul.f32 1.0, %v675
    %v677 = vrot.slane %v661, 4
    %v679 = vtanh.pop %v677
    %v680 = vrot.slane %v661, 6
    %v682 = vxor.u32 %v680, 2147483648
    %v683 = vmul.f32 %v682, 1.442695
    %v684 = vpow.pop %v683
    %v685 = vadd.f32 %v684, 1.0
    %v686 = vrcp.pop %v685
    %v687 = vmul.f32 1.0, %v686
    %v688 = vmul.f32 %v676, %v490
    %v689 = vmul.f32 %v667, %v679
    %v690 = vadd.f32 %v688, %v689
    %v691 = vtanh.pop %v690
    %v692 = vmul.f32 %v687, %v691
    %s693 = scalar_lea.vmem %s2, 4
    %694 = vst [vmem:[%s693] sm:$0x3] %v692
    %s695 = scalar_lea.vmem %s0, 24
    %v696 = vld [vmem:[%s695] sm:$0xff]
    %697 = vmatprep.subr.mxu0 %v92
    %698 = vmatpush1.msra.mxu0 %v91
    %699 = vmatprep.subr.mxu0 %v88
    %700 = vmatpush1.msra.mxu0 %v87
    %701 = vmatprep.subr.mxu0 %v84
    %702 = vmatpush1.msra.mxu0 %v83
    %703 = vmatprep.subr.mxu0 %v80
    %704 = vmatpush1.msra.mxu0 %v79
    %705 = vmatprep.subr.mxu0 %v76
    %706 = vmatpush1.msra.mxu0 %v75
    %707 = vmatprep.subr.mxu0 %v72
    %708 = vmatpush1.msra.mxu0 %v71
    %709 = vmatprep.subr.mxu0 %v68
    %710 = vmatpush1.msra.mxu0 %v67
    %711 = vmatprep.subr.mxu0 %v64
    %712 = vmatpush1.msra.mxu0 %v63
    %713 = vmatprep.subr.mxu0 %v60
    %714 = vmatpush1.msra.mxu0 %v59
    %715 = vmatprep.subr.mxu0 %v56
    %716 = vmatpush1.msra.mxu0 %v55
    %717 = vmatprep.subr.mxu0 %v52
    %718 = vmatpush1.msra.mxu0 %v51
    %719 = vmatprep.subr.mxu0 %v48
    %720 = vmatpush1.msra.mxu0 %v47
    %721 = vmatprep.subr.mxu0 %v44
    %722 = vmatpush1.msra.mxu0 %v43
    %723 = vmatprep.subr.mxu0 %v40
    %724 = vmatpush1.msra.mxu0 %v39
    %725 = vmatprep.subr.mxu0 %v36
    %726 = vmatpush1.msra.mxu0 %v35
    %727 = vmatprep.subr.mxu0 %v32
    %728 = vmatpush1.msra.mxu0 %v31
    %729 = vmatprep.subr.mxu0 0.0
    %730 = vmatpush2.msra.mxu0 0.0
    %731 = vmatprep.subr.mxu0 0.0
    %732 = vmatpush2.msra.mxu0 0.0
    %733 = vmatprep.subr.mxu0 0.0
    %734 = vmatpush2.msra.mxu0 0.0
    %735 = vmatprep.subr.mxu0 0.0
    %736 = vmatpush2.msra.mxu0 0.0
    %737 = vmatprep.subr.mxu0 0.0
    %738 = vmatpush2.msra.mxu0 0.0
    %739 = vmatprep.subr.mxu0 0.0
    %740 = vmatpush2.msra.mxu0 0.0
    %741 = vmatprep.subr.mxu0 0.0
    %742 = vmatpush2.msra.mxu0 0.0
    %743 = vmatprep.subr.mxu0 0.0
    %744 = vmatpush2.msra.mxu0 0.0
    %745 = vmatprep.subr.mxu0 0.0
    %746 = vmatpush2.msra.mxu0 0.0
    %747 = vmatprep.subr.mxu0 0.0
    %748 = vmatpush2.msra.mxu0 0.0
    %749 = vmatprep.subr.mxu0 0.0
    %750 = vmatpush2.msra.mxu0 0.0
    %751 = vmatprep.subr.mxu0 0.0
    %752 = vmatpush2.msra.mxu0 0.0
    %753 = vmatprep.subr.mxu0 0.0
    %754 = vmatpush2.msra.mxu0 0.0
    %755 = vmatprep.subr.mxu0 0.0
    %756 = vmatpush2.msra.mxu0 0.0
    %757 = vmatprep.subr.mxu0 0.0
    %758 = vmatpush2.msra.mxu0 0.0
    %759 = vmatprep.subr.mxu0 0.0
    %760 = vmatpush2.msra.mxu0 0.0
    %761 = vmatprep.mubr.f32.mxu0 0.0
    %762 = vmatmul.mubr.f32.gmra.mxu0 %v692
    %v763 = vpop.f32.mrf.mxu0
    %v764 = vadd.f32 0.0, %v763
    %v765 = vpop.f32.mrf.mxu0
    %v766 = vadd.f32 0.0, %v765
    %767 = vdwg.mxu0
    %768 = vmatprep.subr.mxu0 %v94
    %769 = vmatpush1.msra.mxu0 %v93
    %770 = vmatprep.subr.mxu0 %v90
    %771 = vmatpush1.msra.mxu0 %v89
    %772 = vmatprep.subr.mxu0 %v86
    %773 = vmatpush1.msra.mxu0 %v85
    %774 = vmatprep.subr.mxu0 %v82
    %775 = vmatpush1.msra.mxu0 %v81
    %776 = vmatprep.subr.mxu0 %v78
    %777 = vmatpush1.msra.mxu0 %v77
    %778 = vmatprep.subr.mxu0 %v74
    %779 = vmatpush1.msra.mxu0 %v73
    %780 = vmatprep.subr.mxu0 %v70
    %781 = vmatpush1.msra.mxu0 %v69
    %782 = vmatprep.subr.mxu0 %v66
    %783 = vmatpush1.msra.mxu0 %v65
    %784 = vmatprep.subr.mxu0 %v62
    %785 = vmatpush1.msra.mxu0 %v61
    %786 = vmatprep.subr.mxu0 %v58
    %787 = vmatpush1.msra.mxu0 %v57
    %788 = vmatprep.subr.mxu0 %v54
    %789 = vmatpush1.msra.mxu0 %v53
    %790 = vmatprep.subr.mxu0 %v50
    %791 = vmatpush1.msra.mxu0 %v49
    %792 = vmatprep.subr.mxu0 %v46
    %793 = vmatpush1.msra.mxu0 %v45
    %794 = vmatprep.subr.mxu0 %v42
    %795 = vmatpush1.msra.mxu0 %v41
    %796 = vmatprep.subr.mxu0 %v38
    %797 = vmatpush1.msra.mxu0 %v37
    %798 = vmatprep.subr.mxu0 %v34
    %799 = vmatpush1.msra.mxu0 %v33
    %800 = vmatprep.subr.mxu0 0.0
    %801 = vmatpush2.msra.mxu0 0.0
    %802 = vmatprep.subr.mxu0 0.0
    %803 = vmatpush2.msra.mxu0 0.0
    %804 = vmatprep.subr.mxu0 0.0
    %805 = vmatpush2.msra.mxu0 0.0
    %806 = vmatprep.subr.mxu0 0.0
    %807 = vmatpush2.msra.mxu0 0.0
    %808 = vmatprep.subr.mxu0 0.0
    %809 = vmatpush2.msra.mxu0 0.0
    %810 = vmatprep.subr.mxu0 0.0
    %811 = vmatpush2.msra.mxu0 0.0
    %812 = vmatprep.subr.mxu0 0.0
    %813 = vmatpush2.msra.mxu0 0.0
    %814 = vmatprep.subr.mxu0 0.0
    %815 = vmatpush2.msra.mxu0 0.0
    %816 = vmatprep.subr.mxu0 0.0
    %817 = vmatpush2.msra.mxu0 0.0
    %818 = vmatprep.subr.mxu0 0.0
    %819 = vmatpush2.msra.mxu0 0.0
    %820 = vmatprep.subr.mxu0 0.0
    %821 = vmatpush2.msra.mxu0 0.0
    %822 = vmatprep.subr.mxu0 0.0
    %823 = vmatpush2.msra.mxu0 0.0
    %824 = vmatprep.subr.mxu0 0.0
    %825 = vmatpush2.msra.mxu0 0.0
    %826 = vmatprep.subr.mxu0 0.0
    %827 = vmatpush2.msra.mxu0 0.0
    %828 = vmatprep.subr.mxu0 0.0
    %829 = vmatpush2.msra.mxu0 0.0
    %830 = vmatprep.subr.mxu0 0.0
    %831 = vmatpush2.msra.mxu0 0.0
    %832 = vmatprep.mubr.f32.mxu0 0.0
    %833 = vmatmul.mubr.f32.gmra.mxu0 %v692
    %v834 = vpop.f32.mrf.mxu0
    %v835 = vadd.f32 0.0, %v834
    %v836 = vpop.f32.mrf.mxu0
    %v837 = vadd.f32 0.0, %v836
    %838 = vdwg.mxu0
    %v843 = vcombine.low %v764, %v766
    %v844 = vcombine.low %v835, %v837
    %v846 = vunpack.c.l.s4 1983009808
    %v847 = vunpack.c.0.s8 %v846
    %v848 = vlaneseq
    %v849 = vshrl.u32 %v848, 7
    %v850 = vsub.s32 %v847, %v849
    %v851 = vrot.slane %v843, %v850
    %v853 = vunpack.c.l.s4 1983009808
    %v854 = vunpack.c.0.s8 %v853
    %v855 = vlaneseq
    %v856 = vshrl.u32 %v855, 7
    %v857 = vsub.s32 %v854, %v856
    %v858 = vrot.slane %v844, %v857
    %v859 = vcombine.low %v851, %v858
    %v861 = vadd.f32 %v696, %v859
    %v862 = vxor.u32 %v861, 2147483648
    %v863 = vmul.f32 %v862, 1.442695
    %v864 = vpow.pop %v863
    %v865 = vadd.f32 %v864, 1.0
    %v866 = vrcp.pop %v865
    %v867 = vmul.f32 1.0, %v866
    %v869 = vrot.slane %v861, 2
    %v871 = vxor.u32 %v869, 2147483648
    %v872 = vmul.f32 %v871, 1.442695
    %v873 = vpow.pop %v872
    %v874 = vadd.f32 %v873, 1.0
    %v875 = vrcp.pop %v874
    %v876 = vmul.f32 1.0, %v875
    %v877 = vrot.slane %v861, 4
    %v879 = vtanh.pop %v877
    %v880 = vrot.slane %v861, 6
    %v882 = vxor.u32 %v880, 2147483648
    %v883 = vmul.f32 %v882, 1.442695
    %v884 = vpow.pop %v883
    %v885 = vadd.f32 %v884, 1.0
    %v886 = vrcp.pop %v885
    %v887 = vmul.f32 1.0, %v886
    %v888 = vmul.f32 %v876, %v690
    %v889 = vmul.f32 %v867, %v879
    %v890 = vadd.f32 %v888, %v889
    %v891 = vtanh.pop %v890
    %v892 = vmul.f32 %v887, %v891
    %s893 = scalar_lea.vmem %s2, 6
    %894 = vst [vmem:[%s893] sm:$0x3] %v892
    %s895 = scalar_lea.vmem %s0, 32
    %v896 = vld [vmem:[%s895] sm:$0xff]
    %897 = vmatprep.subr.mxu0 %v92
    %898 = vmatpush1.msra.mxu0 %v91
    %899 = vmatprep.subr.mxu0 %v88
    %900 = vmatpush1.msra.mxu0 %v87
    %901 = vmatprep.subr.mxu0 %v84
    %902 = vmatpush1.msra.mxu0 %v83
    %903 = vmatprep.subr.mxu0 %v80
    %904 = vmatpush1.msra.mxu0 %v79
    %905 = vmatprep.subr.mxu0 %v76
    %906 = vmatpush1.msra.mxu0 %v75
    %907 = vmatprep.subr.mxu0 %v72
    %908 = vmatpush1.msra.mxu0 %v71
    %909 = vmatprep.subr.mxu0 %v68
    %910 = vmatpush1.msra.mxu0 %v67
    %911 = vmatprep.subr.mxu0 %v64
    %912 = vmatpush1.msra.mxu0 %v63
    %913 = vmatprep.subr.mxu0 %v60
    %914 = vmatpush1.msra.mxu0 %v59
    %915 = vmatprep.subr.mxu0 %v56
    %916 = vmatpush1.msra.mxu0 %v55
    %917 = vmatprep.subr.mxu0 %v52
    %918 = vmatpush1.msra.mxu0 %v51
    %919 = vmatprep.subr.mxu0 %v48
    %920 = vmatpush1.msra.mxu0 %v47
    %921 = vmatprep.subr.mxu0 %v44
    %922 = vmatpush1.msra.mxu0 %v43
    %923 = vmatprep.subr.mxu0 %v40
    %924 = vmatpush1.msra.mxu0 %v39
    %925 = vmatprep.subr.mxu0 %v36
    %926 = vmatpush1.msra.mxu0 %v35
    %927 = vmatprep.subr.mxu0 %v32
    %928 = vmatpush1.msra.mxu0 %v31
    %929 = vmatprep.subr.mxu0 0.0
    %930 = vmatpush2.msra.mxu0 0.0
    %931 = vmatprep.subr.mxu0 0.0
    %932 = vmatpush2.msra.mxu0 0.0
    %933 = vmatprep.subr.mxu0 0.0
    %934 = vmatpush2.msra.mxu0 0.0
    %935 = vmatprep.subr.mxu0 0.0
    %936 = vmatpush2.msra.mxu0 0.0
    %937 = vmatprep.subr.mxu0 0.0
    %938 = vmatpush2.msra.mxu0 0.0
    %939 = vmatprep.subr.mxu0 0.0
    %940 = vmatpush2.msra.mxu0 0.0
    %941 = vmatprep.subr.mxu0 0.0
    %942 = vmatpush2.msra.mxu0 0.0
    %943 = vmatprep.subr.mxu0 0.0
    %944 = vmatpush2.msra.mxu0 0.0
    %945 = vmatprep.subr.mxu0 0.0
    %946 = vmatpush2.msra.mxu0 0.0
    %947 = vmatprep.subr.mxu0 0.0
    %948 = vmatpush2.msra.mxu0 0.0
    %949 = vmatprep.subr.mxu0 0.0
    %950 = vmatpush2.msra.mxu0 0.0
    %951 = vmatprep.subr.mxu0 0.0
    %952 = vmatpush2.msra.mxu0 0.0
    %953 = vmatprep.subr.mxu0 0.0
    %954 = vmatpush2.msra.mxu0 0.0
    %955 = vmatprep.subr.mxu0 0.0
    %956 = vmatpush2.msra.mxu0 0.0
    %957 = vmatprep.subr.mxu0 0.0
    %958 = vmatpush2.msra.mxu0 0.0
    %959 = vmatprep.subr.mxu0 0.0
    %960 = vmatpush2.msra.mxu0 0.0
    %961 = vmatprep.mubr.f32.mxu0 0.0
    %962 = vmatmul.mubr.f32.gmra.mxu0 %v892
    %v963 = vpop.f32.mrf.mxu0
    %v964 = vadd.f32 0.0, %v963
    %v965 = vpop.f32.mrf.mxu0
    %v966 = vadd.f32 0.0, %v965
    %967 = vdwg.mxu0
    %968 = vmatprep.subr.mxu0 %v94
    %969 = vmatpush1.msra.mxu0 %v93
    %970 = vmatprep.subr.mxu0 %v90
    %971 = vmatpush1.msra.mxu0 %v89
    %972 = vmatprep.subr.mxu0 %v86
    %973 = vmatpush1.msra.mxu0 %v85
    %974 = vmatprep.subr.mxu0 %v82
    %975 = vmatpush1.msra.mxu0 %v81
    %976 = vmatprep.subr.mxu0 %v78
    %977 = vmatpush1.msra.mxu0 %v77
    %978 = vmatprep.subr.mxu0 %v74
    %979 = vmatpush1.msra.mxu0 %v73
    %980 = vmatprep.subr.mxu0 %v70
    %981 = vmatpush1.msra.mxu0 %v69
    %982 = vmatprep.subr.mxu0 %v66
    %983 = vmatpush1.msra.mxu0 %v65
    %984 = vmatprep.subr.mxu0 %v62
    %985 = vmatpush1.msra.mxu0 %v61
    %986 = vmatprep.subr.mxu0 %v58
    %987 = vmatpush1.msra.mxu0 %v57
    %988 = vmatprep.subr.mxu0 %v54
    %989 = vmatpush1.msra.mxu0 %v53
    %990 = vmatprep.subr.mxu0 %v50
    %991 = vmatpush1.msra.mxu0 %v49
    %992 = vmatprep.subr.mxu0 %v46
    %993 = vmatpush1.msra.mxu0 %v45
    %994 = vmatprep.subr.mxu0 %v42
    %995 = vmatpush1.msra.mxu0 %v41
    %996 = vmatprep.subr.mxu0 %v38
    %997 = vmatpush1.msra.mxu0 %v37
    %998 = vmatprep.subr.mxu0 %v34
    %999 = vmatpush1.msra.mxu0 %v33
    %1000 = vmatprep.subr.mxu0 0.0
    %1001 = vmatpush2.msra.mxu0 0.0
    %1002 = vmatprep.subr.mxu0 0.0
    %1003 = vmatpush2.msra.mxu0 0.0
    %1004 = vmatprep.subr.mxu0 0.0
    %1005 = vmatpush2.msra.mxu0 0.0
    %1006 = vmatprep.subr.mxu0 0.0
    %1007 = vmatpush2.msra.mxu0 0.0
    %1008 = vmatprep.subr.mxu0 0.0
    %1009 = vmatpush2.msra.mxu0 0.0
    %1010 = vmatprep.subr.mxu0 0.0
    %1011 = vmatpush2.msra.mxu0 0.0
    %1012 = vmatprep.subr.mxu0 0.0
    %1013 = vmatpush2.msra.mxu0 0.0
    %1014 = vmatprep.subr.mxu0 0.0
    %1015 = vmatpush2.msra.mxu0 0.0
    %1016 = vmatprep.subr.mxu0 0.0
    %1017 = vmatpush2.msra.mxu0 0.0
    %1018 = vmatprep.subr.mxu0 0.0
    %1019 = vmatpush2.msra.mxu0 0.0
    %1020 = vmatprep.subr.mxu0 0.0
    %1021 = vmatpush2.msra.mxu0 0.0
    %1022 = vmatprep.subr.mxu0 0.0
    %1023 = vmatpush2.msra.mxu0 0.0
    %1024 = vmatprep.subr.mxu0 0.0
    %1025 = vmatpush2.msra.mxu0 0.0
    %1026 = vmatprep.subr.mxu0 0.0
    %1027 = vmatpush2.msra.mxu0 0.0
    %1028 = vmatprep.subr.mxu0 0.0
    %1029 = vmatpush2.msra.mxu0 0.0
    %1030 = vmatprep.subr.mxu0 0.0
    %1031 = vmatpush2.msra.mxu0 0.0
    %1032 = vmatprep.mubr.f32.mxu0 0.0
    %1033 = vmatmul.mubr.f32.gmra.mxu0 %v892
    %v1034 = vpop.f32.mrf.mxu0
    %v1035 = vadd.f32 0.0, %v1034
    %v1036 = vpop.f32.mrf.mxu0
    %v1037 = vadd.f32 0.0, %v1036
    %1038 = vdwg.mxu0
    %v1043 = vcombine.low %v964, %v966
    %v1044 = vcombine.low %v1035, %v1037
    %v1046 = vunpack.c.l.s4 1983009808
    %v1047 = vunpack.c.0.s8 %v1046
    %v1048 = vlaneseq
    %v1049 = vshrl.u32 %v1048, 7
    %v1050 = vsub.s32 %v1047, %v1049
    %v1051 = vrot.slane %v1043, %v1050
    %v1053 = vunpack.c.l.s4 1983009808
    %v1054 = vunpack.c.0.s8 %v1053
    %v1055 = vlaneseq
    %v1056 = vshrl.u32 %v1055, 7
    %v1057 = vsub.s32 %v1054, %v1056
    %v1058 = vrot.slane %v1044, %v1057
    %v1059 = vcombine.low %v1051, %v1058
    %v1061 = vadd.f32 %v896, %v1059
    %v1062 = vxor.u32 %v1061, 2147483648
    %v1063 = vmul.f32 %v1062, 1.442695
    %v1064 = vpow.pop %v1063
    %v1065 = vadd.f32 %v1064, 1.0
    %v1066 = vrcp.pop %v1065
    %v1067 = vmul.f32 1.0, %v1066
    %v1069 = vrot.slane %v1061, 2
    %v1071 = vxor.u32 %v1069, 2147483648
    %v1072 = vmul.f32 %v1071, 1.442695
    %v1073 = vpow.pop %v1072
    %v1074 = vadd.f32 %v1073, 1.0
    %v1075 = vrcp.pop %v1074
    %v1076 = vmul.f32 1.0, %v1075
    %v1077 = vrot.slane %v1061, 4
    %v1079 = vtanh.pop %v1077
    %v1080 = vrot.slane %v1061, 6
    %v1082 = vxor.u32 %v1080, 2147483648
    %v1083 = vmul.f32 %v1082, 1.442695
    %v1084 = vpow.pop %v1083
    %v1085 = vadd.f32 %v1084, 1.0
    %v1086 = vrcp.pop %v1085
    %v1087 = vmul.f32 1.0, %v1086
    %v1088 = vmul.f32 %v1076, %v890
    %v1089 = vmul.f32 %v1067, %v1079
    %v1090 = vadd.f32 %v1088, %v1089
    %v1091 = vtanh.pop %v1090
    %v1092 = vmul.f32 %v1087, %v1091
    %s1093 = scalar_lea.vmem %s2, 8
    %1094 = vst [vmem:[%s1093] sm:$0x3] %v1092
    %s1095 = scalar_lea.vmem %s0, 40
    %v1096 = vld [vmem:[%s1095] sm:$0xff]
    %1097 = vmatprep.subr.mxu0 %v92
    %1098 = vmatpush1.msra.mxu0 %v91
    %1099 = vmatprep.subr.mxu0 %v88
    %1100 = vmatpush1.msra.mxu0 %v87
    %1101 = vmatprep.subr.mxu0 %v84
    %1102 = vmatpush1.msra.mxu0 %v83
    %1103 = vmatprep.subr.mxu0 %v80
    %1104 = vmatpush1.msra.mxu0 %v79
    %1105 = vmatprep.subr.mxu0 %v76
    %1106 = vmatpush1.msra.mxu0 %v75
    %1107 = vmatprep.subr.mxu0 %v72
    %1108 = vmatpush1.msra.mxu0 %v71
    %1109 = vmatprep.subr.mxu0 %v68
    %1110 = vmatpush1.msra.mxu0 %v67
    %1111 = vmatprep.subr.mxu0 %v64
    %1112 = vmatpush1.msra.mxu0 %v63
    %1113 = vmatprep.subr.mxu0 %v60
    %1114 = vmatpush1.msra.mxu0 %v59
    %1115 = vmatprep.subr.mxu0 %v56
    %1116 = vmatpush1.msra.mxu0 %v55
    %1117 = vmatprep.subr.mxu0 %v52
    %1118 = vmatpush1.msra.mxu0 %v51
    %1119 = vmatprep.subr.mxu0 %v48
    %1120 = vmatpush1.msra.mxu0 %v47
    %1121 = vmatprep.subr.mxu0 %v44
    %1122 = vmatpush1.msra.mxu0 %v43
    %1123 = vmatprep.subr.mxu0 %v40
    %1124 = vmatpush1.msra.mxu0 %v39
    %1125 = vmatprep.subr.mxu0 %v36
    %1126 = vmatpush1.msra.mxu0 %v35
    %1127 = vmatprep.subr.mxu0 %v32
    %1128 = vmatpush1.msra.mxu0 %v31
    %1129 = vmatprep.subr.mxu0 0.0
    %1130 = vmatpush2.msra.mxu0 0.0
    %1131 = vmatprep.subr.mxu0 0.0
    %1132 = vmatpush2.msra.mxu0 0.0
    %1133 = vmatprep.subr.mxu0 0.0
    %1134 = vmatpush2.msra.mxu0 0.0
    %1135 = vmatprep.subr.mxu0 0.0
    %1136 = vmatpush2.msra.mxu0 0.0
    %1137 = vmatprep.subr.mxu0 0.0
    %1138 = vmatpush2.msra.mxu0 0.0
    %1139 = vmatprep.subr.mxu0 0.0
    %1140 = vmatpush2.msra.mxu0 0.0
    %1141 = vmatprep.subr.mxu0 0.0
    %1142 = vmatpush2.msra.mxu0 0.0
    %1143 = vmatprep.subr.mxu0 0.0
    %1144 = vmatpush2.msra.mxu0 0.0
    %1145 = vmatprep.subr.mxu0 0.0
    %1146 = vmatpush2.msra.mxu0 0.0
    %1147 = vmatprep.subr.mxu0 0.0
    %1148 = vmatpush2.msra.mxu0 0.0
    %1149 = vmatprep.subr.mxu0 0.0
    %1150 = vmatpush2.msra.mxu0 0.0
    %1151 = vmatprep.subr.mxu0 0.0
    %1152 = vmatpush2.msra.mxu0 0.0
    %1153 = vmatprep.subr.mxu0 0.0
    %1154 = vmatpush2.msra.mxu0 0.0
    %1155 = vmatprep.subr.mxu0 0.0
    %1156 = vmatpush2.msra.mxu0 0.0
    %1157 = vmatprep.subr.mxu0 0.0
    %1158 = vmatpush2.msra.mxu0 0.0
    %1159 = vmatprep.subr.mxu0 0.0
    %1160 = vmatpush2.msra.mxu0 0.0
    %1161 = vmatprep.mubr.f32.mxu0 0.0
    %1162 = vmatmul.mubr.f32.gmra.mxu0 %v1092
    %v1163 = vpop.f32.mrf.mxu0
    %v1164 = vadd.f32 0.0, %v1163
    %v1165 = vpop.f32.mrf.mxu0
    %v1166 = vadd.f32 0.0, %v1165
    %1167 = vdwg.mxu0
    %1168 = vmatprep.subr.mxu0 %v94
    %1169 = vmatpush1.msra.mxu0 %v93
    %1170 = vmatprep.subr.mxu0 %v90
    %1171 = vmatpush1.msra.mxu0 %v89
    %1172 = vmatprep.subr.mxu0 %v86
    %1173 = vmatpush1.msra.mxu0 %v85
    %1174 = vmatprep.subr.mxu0 %v82
    %1175 = vmatpush1.msra.mxu0 %v81
    %1176 = vmatprep.subr.mxu0 %v78
    %1177 = vmatpush1.msra.mxu0 %v77
    %1178 = vmatprep.subr.mxu0 %v74
    %1179 = vmatpush1.msra.mxu0 %v73
    %1180 = vmatprep.subr.mxu0 %v70
    %1181 = vmatpush1.msra.mxu0 %v69
    %1182 = vmatprep.subr.mxu0 %v66
    %1183 = vmatpush1.msra.mxu0 %v65
    %1184 = vmatprep.subr.mxu0 %v62
    %1185 = vmatpush1.msra.mxu0 %v61
    %1186 = vmatprep.subr.mxu0 %v58
    %1187 = vmatpush1.msra.mxu0 %v57
    %1188 = vmatprep.subr.mxu0 %v54
    %1189 = vmatpush1.msra.mxu0 %v53
    %1190 = vmatprep.subr.mxu0 %v50
    %1191 = vmatpush1.msra.mxu0 %v49
    %1192 = vmatprep.subr.mxu0 %v46
    %1193 = vmatpush1.msra.mxu0 %v45
    %1194 = vmatprep.subr.mxu0 %v42
    %1195 = vmatpush1.msra.mxu0 %v41
    %1196 = vmatprep.subr.mxu0 %v38
    %1197 = vmatpush1.msra.mxu0 %v37
    %1198 = vmatprep.subr.mxu0 %v34
    %1199 = vmatpush1.msra.mxu0 %v33
    %1200 = vmatprep.subr.mxu0 0.0
    %1201 = vmatpush2.msra.mxu0 0.0
    %1202 = vmatprep.subr.mxu0 0.0
    %1203 = vmatpush2.msra.mxu0 0.0
    %1204 = vmatprep.subr.mxu0 0.0
    %1205 = vmatpush2.msra.mxu0 0.0
    %1206 = vmatprep.subr.mxu0 0.0
    %1207 = vmatpush2.msra.mxu0 0.0
    %1208 = vmatprep.subr.mxu0 0.0
    %1209 = vmatpush2.msra.mxu0 0.0
    %1210 = vmatprep.subr.mxu0 0.0
    %1211 = vmatpush2.msra.mxu0 0.0
    %1212 = vmatprep.subr.mxu0 0.0
    %1213 = vmatpush2.msra.mxu0 0.0
    %1214 = vmatprep.subr.mxu0 0.0
    %1215 = vmatpush2.msra.mxu0 0.0
    %1216 = vmatprep.subr.mxu0 0.0
    %1217 = vmatpush2.msra.mxu0 0.0
    %1218 = vmatprep.subr.mxu0 0.0
    %1219 = vmatpush2.msra.mxu0 0.0
    %1220 = vmatprep.subr.mxu0 0.0
    %1221 = vmatpush2.msra.mxu0 0.0
    %1222 = vmatprep.subr.mxu0 0.0
    %1223 = vmatpush2.msra.mxu0 0.0
    %1224 = vmatprep.subr.mxu0 0.0
    %1225 = vmatpush2.msra.mxu0 0.0
    %1226 = vmatprep.subr.mxu0 0.0
    %1227 = vmatpush2.msra.mxu0 0.0
    %1228 = vmatprep.subr.mxu0 0.0
    %1229 = vmatpush2.msra.mxu0 0.0
    %1230 = vmatprep.subr.mxu0 0.0
    %1231 = vmatpush2.msra.mxu0 0.0
    %1232 = vmatprep.mubr.f32.mxu0 0.0
    %1233 = vmatmul.mubr.f32.gmra.mxu0 %v1092
    %v1234 = vpop.f32.mrf.mxu0
    %v1235 = vadd.f32 0.0, %v1234
    %v1236 = vpop.f32.mrf.mxu0
    %v1237 = vadd.f32 0.0, %v1236
    %1238 = vdwg.mxu0
    %v1243 = vcombine.low %v1164, %v1166
    %v1244 = vcombine.low %v1235, %v1237
    %v1246 = vunpack.c.l.s4 1983009808
    %v1247 = vunpack.c.0.s8 %v1246
    %v1248 = vlaneseq
    %v1249 = vshrl.u32 %v1248, 7
    %v1250 = vsub.s32 %v1247, %v1249
    %v1251 = vrot.slane %v1243, %v1250
    %v1253 = vunpack.c.l.s4 1983009808
    %v1254 = vunpack.c.0.s8 %v1253
    %v1255 = vlaneseq
    %v1256 = vshrl.u32 %v1255, 7
    %v1257 = vsub.s32 %v1254, %v1256
    %v1258 = vrot.slane %v1244, %v1257
    %v1259 = vcombine.low %v1251, %v1258
    %v1261 = vadd.f32 %v1096, %v1259
    %v1262 = vxor.u32 %v1261, 2147483648
    %v1263 = vmul.f32 %v1262, 1.442695
    %v1264 = vpow.pop %v1263
    %v1265 = vadd.f32 %v1264, 1.0
    %v1266 = vrcp.pop %v1265
    %v1267 = vmul.f32 1.0, %v1266
    %v1269 = vrot.slane %v1261, 2
    %v1271 = vxor.u32 %v1269, 2147483648
    %v1272 = vmul.f32 %v1271, 1.442695
    %v1273 = vpow.pop %v1272
    %v1274 = vadd.f32 %v1273, 1.0
    %v1275 = vrcp.pop %v1274
    %v1276 = vmul.f32 1.0, %v1275
    %v1277 = vrot.slane %v1261, 4
    %v1279 = vtanh.pop %v1277
    %v1280 = vrot.slane %v1261, 6
    %v1282 = vxor.u32 %v1280, 2147483648
    %v1283 = vmul.f32 %v1282, 1.442695
    %v1284 = vpow.pop %v1283
    %v1285 = vadd.f32 %v1284, 1.0
    %v1286 = vrcp.pop %v1285
    %v1287 = vmul.f32 1.0, %v1286
    %v1288 = vmul.f32 %v1276, %v1090
    %v1289 = vmul.f32 %v1267, %v1279
    %v1290 = vadd.f32 %v1288, %v1289
    %v1291 = vtanh.pop %v1290
    %v1292 = vmul.f32 %v1287, %v1291
    %s1293 = scalar_lea.vmem %s2, 10
    %1294 = vst [vmem:[%s1293] sm:$0x3] %v1292
    %s1295 = scalar_lea.vmem %s0, 48
    %v1296 = vld [vmem:[%s1295] sm:$0xff]
    %1297 = vmatprep.subr.mxu0 %v92
    %1298 = vmatpush1.msra.mxu0 %v91
    %1299 = vmatprep.subr.mxu0 %v88
    %1300 = vmatpush1.msra.mxu0 %v87
    %1301 = vmatprep.subr.mxu0 %v84
    %1302 = vmatpush1.msra.mxu0 %v83
    %1303 = vmatprep.subr.mxu0 %v80
    %1304 = vmatpush1.msra.mxu0 %v79
    %1305 = vmatprep.subr.mxu0 %v76
    %1306 = vmatpush1.msra.mxu0 %v75
    %1307 = vmatprep.subr.mxu0 %v72
    %1308 = vmatpush1.msra.mxu0 %v71
    %1309 = vmatprep.subr.mxu0 %v68
    %1310 = vmatpush1.msra.mxu0 %v67
    %1311 = vmatprep.subr.mxu0 %v64
    %1312 = vmatpush1.msra.mxu0 %v63
    %1313 = vmatprep.subr.mxu0 %v60
    %1314 = vmatpush1.msra.mxu0 %v59
    %1315 = vmatprep.subr.mxu0 %v56
    %1316 = vmatpush1.msra.mxu0 %v55
    %1317 = vmatprep.subr.mxu0 %v52
    %1318 = vmatpush1.msra.mxu0 %v51
    %1319 = vmatprep.subr.mxu0 %v48
    %1320 = vmatpush1.msra.mxu0 %v47
    %1321 = vmatprep.subr.mxu0 %v44
    %1322 = vmatpush1.msra.mxu0 %v43
    %1323 = vmatprep.subr.mxu0 %v40
    %1324 = vmatpush1.msra.mxu0 %v39
    %1325 = vmatprep.subr.mxu0 %v36
    %1326 = vmatpush1.msra.mxu0 %v35
    %1327 = vmatprep.subr.mxu0 %v32
    %1328 = vmatpush1.msra.mxu0 %v31
    %1329 = vmatprep.subr.mxu0 0.0
    %1330 = vmatpush2.msra.mxu0 0.0
    %1331 = vmatprep.subr.mxu0 0.0
    %1332 = vmatpush2.msra.mxu0 0.0
    %1333 = vmatprep.subr.mxu0 0.0
    %1334 = vmatpush2.msra.mxu0 0.0
    %1335 = vmatprep.subr.mxu0 0.0
    %1336 = vmatpush2.msra.mxu0 0.0
    %1337 = vmatprep.subr.mxu0 0.0
    %1338 = vmatpush2.msra.mxu0 0.0
    %1339 = vmatprep.subr.mxu0 0.0
    %1340 = vmatpush2.msra.mxu0 0.0
    %1341 = vmatprep.subr.mxu0 0.0
    %1342 = vmatpush2.msra.mxu0 0.0
    %1343 = vmatprep.subr.mxu0 0.0
    %1344 = vmatpush2.msra.mxu0 0.0
    %1345 = vmatprep.subr.mxu0 0.0
    %1346 = vmatpush2.msra.mxu0 0.0
    %1347 = vmatprep.subr.mxu0 0.0
    %1348 = vmatpush2.msra.mxu0 0.0
    %1349 = vmatprep.subr.mxu0 0.0
    %1350 = vmatpush2.msra.mxu0 0.0
    %1351 = vmatprep.subr.mxu0 0.0
    %1352 = vmatpush2.msra.mxu0 0.0
    %1353 = vmatprep.subr.mxu0 0.0
    %1354 = vmatpush2.msra.mxu0 0.0
    %1355 = vmatprep.subr.mxu0 0.0
    %1356 = vmatpush2.msra.mxu0 0.0
    %1357 = vmatprep.subr.mxu0 0.0
    %1358 = vmatpush2.msra.mxu0 0.0
    %1359 = vmatprep.subr.mxu0 0.0
    %1360 = vmatpush2.msra.mxu0 0.0
    %1361 = vmatprep.mubr.f32.mxu0 0.0
    %1362 = vmatmul.mubr.f32.gmra.mxu0 %v1292
    %v1363 = vpop.f32.mrf.mxu0
    %v1364 = vadd.f32 0.0, %v1363
    %v1365 = vpop.f32.mrf.mxu0
    %v1366 = vadd.f32 0.0, %v1365
    %1367 = vdwg.mxu0
    %1368 = vmatprep.subr.mxu0 %v94
    %1369 = vmatpush1.msra.mxu0 %v93
    %1370 = vmatprep.subr.mxu0 %v90
    %1371 = vmatpush1.msra.mxu0 %v89
    %1372 = vmatprep.subr.mxu0 %v86
    %1373 = vmatpush1.msra.mxu0 %v85
    %1374 = vmatprep.subr.mxu0 %v82
    %1375 = vmatpush1.msra.mxu0 %v81
    %1376 = vmatprep.subr.mxu0 %v78
    %1377 = vmatpush1.msra.mxu0 %v77
    %1378 = vmatprep.subr.mxu0 %v74
    %1379 = vmatpush1.msra.mxu0 %v73
    %1380 = vmatprep.subr.mxu0 %v70
    %1381 = vmatpush1.msra.mxu0 %v69
    %1382 = vmatprep.subr.mxu0 %v66
    %1383 = vmatpush1.msra.mxu0 %v65
    %1384 = vmatprep.subr.mxu0 %v62
    %1385 = vmatpush1.msra.mxu0 %v61
    %1386 = vmatprep.subr.mxu0 %v58
    %1387 = vmatpush1.msra.mxu0 %v57
    %1388 = vmatprep.subr.mxu0 %v54
    %1389 = vmatpush1.msra.mxu0 %v53
    %1390 = vmatprep.subr.mxu0 %v50
    %1391 = vmatpush1.msra.mxu0 %v49
    %1392 = vmatprep.subr.mxu0 %v46
    %1393 = vmatpush1.msra.mxu0 %v45
    %1394 = vmatprep.subr.mxu0 %v42
    %1395 = vmatpush1.msra.mxu0 %v41
    %1396 = vmatprep.subr.mxu0 %v38
    %1397 = vmatpush1.msra.mxu0 %v37
    %1398 = vmatprep.subr.mxu0 %v34
    %1399 = vmatpush1.msra.mxu0 %v33
    %1400 = vmatprep.subr.mxu0 0.0
    %1401 = vmatpush2.msra.mxu0 0.0
    %1402 = vmatprep.subr.mxu0 0.0
    %1403 = vmatpush2.msra.mxu0 0.0
    %1404 = vmatprep.subr.mxu0 0.0
    %1405 = vmatpush2.msra.mxu0 0.0
    %1406 = vmatprep.subr.mxu0 0.0
    %1407 = vmatpush2.msra.mxu0 0.0
    %1408 = vmatprep.subr.mxu0 0.0
    %1409 = vmatpush2.msra.mxu0 0.0
    %1410 = vmatprep.subr.mxu0 0.0
    %1411 = vmatpush2.msra.mxu0 0.0
    %1412 = vmatprep.subr.mxu0 0.0
    %1413 = vmatpush2.msra.mxu0 0.0
    %1414 = vmatprep.subr.mxu0 0.0
    %1415 = vmatpush2.msra.mxu0 0.0
    %1416 = vmatprep.subr.mxu0 0.0
    %1417 = vmatpush2.msra.mxu0 0.0
    %1418 = vmatprep.subr.mxu0 0.0
    %1419 = vmatpush2.msra.mxu0 0.0
    %1420 = vmatprep.subr.mxu0 0.0
    %1421 = vmatpush2.msra.mxu0 0.0
    %1422 = vmatprep.subr.mxu0 0.0
    %1423 = vmatpush2.msra.mxu0 0.0
    %1424 = vmatprep.subr.mxu0 0.0
    %1425 = vmatpush2.msra.mxu0 0.0
    %1426 = vmatprep.subr.mxu0 0.0
    %1427 = vmatpush2.msra.mxu0 0.0
    %1428 = vmatprep.subr.mxu0 0.0
    %1429 = vmatpush2.msra.mxu0 0.0
    %1430 = vmatprep.subr.mxu0 0.0
    %1431 = vmatpush2.msra.mxu0 0.0
    %1432 = vmatprep.mubr.f32.mxu0 0.0
    %1433 = vmatmul.mubr.f32.gmra.mxu0 %v1292
    %v1434 = vpop.f32.mrf.mxu0
    %v1435 = vadd.f32 0.0, %v1434
    %v1436 = vpop.f32.mrf.mxu0
    %v1437 = vadd.f32 0.0, %v1436
    %1438 = vdwg.mxu0
    %v1443 = vcombine.low %v1364, %v1366
    %v1444 = vcombine.low %v1435, %v1437
    %v1446 = vunpack.c.l.s4 1983009808
    %v1447 = vunpack.c.0.s8 %v1446
    %v1448 = vlaneseq
    %v1449 = vshrl.u32 %v1448, 7
    %v1450 = vsub.s32 %v1447, %v1449
    %v1451 = vrot.slane %v1443, %v1450
    %v1453 = vunpack.c.l.s4 1983009808
    %v1454 = vunpack.c.0.s8 %v1453
    %v1455 = vlaneseq
    %v1456 = vshrl.u32 %v1455, 7
    %v1457 = vsub.s32 %v1454, %v1456
    %v1458 = vrot.slane %v1444, %v1457
    %v1459 = vcombine.low %v1451, %v1458
    %v1461 = vadd.f32 %v1296, %v1459
    %v1462 = vxor.u32 %v1461, 2147483648
    %v1463 = vmul.f32 %v1462, 1.442695
    %v1464 = vpow.pop %v1463
    %v1465 = vadd.f32 %v1464, 1.0
    %v1466 = vrcp.pop %v1465
    %v1467 = vmul.f32 1.0, %v1466
    %v1469 = vrot.slane %v1461, 2
    %v1471 = vxor.u32 %v1469, 2147483648
    %v1472 = vmul.f32 %v1471, 1.442695
    %v1473 = vpow.pop %v1472
    %v1474 = vadd.f32 %v1473, 1.0
    %v1475 = vrcp.pop %v1474
    %v1476 = vmul.f32 1.0, %v1475
    %v1477 = vrot.slane %v1461, 4
    %v1479 = vtanh.pop %v1477
    %v1480 = vrot.slane %v1461, 6
    %v1482 = vxor.u32 %v1480, 2147483648
    %v1483 = vmul.f32 %v1482, 1.442695
    %v1484 = vpow.pop %v1483
    %v1485 = vadd.f32 %v1484, 1.0
    %v1486 = vrcp.pop %v1485
    %v1487 = vmul.f32 1.0, %v1486
    %v1488 = vmul.f32 %v1476, %v1290
    %v1489 = vmul.f32 %v1467, %v1479
    %v1490 = vadd.f32 %v1488, %v1489
    %v1491 = vtanh.pop %v1490
    %v1492 = vmul.f32 %v1487, %v1491
    %s1493 = scalar_lea.vmem %s2, 12
    %1494 = vst [vmem:[%s1493] sm:$0x3] %v1492
    %s1495 = scalar_lea.vmem %s0, 56
    %v1496 = vld [vmem:[%s1495] sm:$0xff]
    %1497 = vmatprep.subr.mxu0 %v92
    %1498 = vmatpush1.msra.mxu0 %v91
    %1499 = vmatprep.subr.mxu0 %v88
    %1500 = vmatpush1.msra.mxu0 %v87
    %1501 = vmatprep.subr.mxu0 %v84
    %1502 = vmatpush1.msra.mxu0 %v83
    %1503 = vmatprep.subr.mxu0 %v80
    %1504 = vmatpush1.msra.mxu0 %v79
    %1505 = vmatprep.subr.mxu0 %v76
    %1506 = vmatpush1.msra.mxu0 %v75
    %1507 = vmatprep.subr.mxu0 %v72
    %1508 = vmatpush1.msra.mxu0 %v71
    %1509 = vmatprep.subr.mxu0 %v68
    %1510 = vmatpush1.msra.mxu0 %v67
    %1511 = vmatprep.subr.mxu0 %v64
    %1512 = vmatpush1.msra.mxu0 %v63
    %1513 = vmatprep.subr.mxu0 %v60
    %1514 = vmatpush1.msra.mxu0 %v59
    %1515 = vmatprep.subr.mxu0 %v56
    %1516 = vmatpush1.msra.mxu0 %v55
    %1517 = vmatprep.subr.mxu0 %v52
    %1518 = vmatpush1.msra.mxu0 %v51
    %1519 = vmatprep.subr.mxu0 %v48
    %1520 = vmatpush1.msra.mxu0 %v47
    %1521 = vmatprep.subr.mxu0 %v44
    %1522 = vmatpush1.msra.mxu0 %v43
    %1523 = vmatprep.subr.mxu0 %v40
    %1524 = vmatpush1.msra.mxu0 %v39
    %1525 = vmatprep.subr.mxu0 %v36
    %1526 = vmatpush1.msra.mxu0 %v35
    %1527 = vmatprep.subr.mxu0 %v32
    %1528 = vmatpush1.msra.mxu0 %v31
    %1529 = vmatprep.subr.mxu0 0.0
    %1530 = vmatpush2.msra.mxu0 0.0
    %1531 = vmatprep.subr.mxu0 0.0
    %1532 = vmatpush2.msra.mxu0 0.0
    %1533 = vmatprep.subr.mxu0 0.0
    %1534 = vmatpush2.msra.mxu0 0.0
    %1535 = vmatprep.subr.mxu0 0.0
    %1536 = vmatpush2.msra.mxu0 0.0
    %1537 = vmatprep.subr.mxu0 0.0
    %1538 = vmatpush2.msra.mxu0 0.0
    %1539 = vmatprep.subr.mxu0 0.0
    %1540 = vmatpush2.msra.mxu0 0.0
    %1541 = vmatprep.subr.mxu0 0.0
    %1542 = vmatpush2.msra.mxu0 0.0
    %1543 = vmatprep.subr.mxu0 0.0
    %1544 = vmatpush2.msra.mxu0 0.0
    %1545 = vmatprep.subr.mxu0 0.0
    %1546 = vmatpush2.msra.mxu0 0.0
    %1547 = vmatprep.subr.mxu0 0.0
    %1548 = vmatpush2.msra.mxu0 0.0
    %1549 = vmatprep.subr.mxu0 0.0
    %1550 = vmatpush2.msra.mxu0 0.0
    %1551 = vmatprep.subr.mxu0 0.0
    %1552 = vmatpush2.msra.mxu0 0.0
    %1553 = vmatprep.subr.mxu0 0.0
    %1554 = vmatpush2.msra.mxu0 0.0
    %1555 = vmatprep.subr.mxu0 0.0
    %1556 = vmatpush2.msra.mxu0 0.0
    %1557 = vmatprep.subr.mxu0 0.0
    %1558 = vmatpush2.msra.mxu0 0.0
    %1559 = vmatprep.subr.mxu0 0.0
    %1560 = vmatpush2.msra.mxu0 0.0
    %1561 = vmatprep.mubr.f32.mxu0 0.0
    %1562 = vmatmul.mubr.f32.gmra.mxu0 %v1492
    %v1563 = vpop.f32.mrf.mxu0
    %v1564 = vadd.f32 0.0, %v1563
    %v1565 = vpop.f32.mrf.mxu0
    %v1566 = vadd.f32 0.0, %v1565
    %1567 = vdwg.mxu0
    %1568 = vmatprep.subr.mxu0 %v94
    %1569 = vmatpush1.msra.mxu0 %v93
    %1570 = vmatprep.subr.mxu0 %v90
    %1571 = vmatpush1.msra.mxu0 %v89
    %1572 = vmatprep.subr.mxu0 %v86
    %1573 = vmatpush1.msra.mxu0 %v85
    %1574 = vmatprep.subr.mxu0 %v82
    %1575 = vmatpush1.msra.mxu0 %v81
    %1576 = vmatprep.subr.mxu0 %v78
    %1577 = vmatpush1.msra.mxu0 %v77
    %1578 = vmatprep.subr.mxu0 %v74
    %1579 = vmatpush1.msra.mxu0 %v73
    %1580 = vmatprep.subr.mxu0 %v70
    %1581 = vmatpush1.msra.mxu0 %v69
    %1582 = vmatprep.subr.mxu0 %v66
    %1583 = vmatpush1.msra.mxu0 %v65
    %1584 = vmatprep.subr.mxu0 %v62
    %1585 = vmatpush1.msra.mxu0 %v61
    %1586 = vmatprep.subr.mxu0 %v58
    %1587 = vmatpush1.msra.mxu0 %v57
    %1588 = vmatprep.subr.mxu0 %v54
    %1589 = vmatpush1.msra.mxu0 %v53
    %1590 = vmatprep.subr.mxu0 %v50
    %1591 = vmatpush1.msra.mxu0 %v49
    %1592 = vmatprep.subr.mxu0 %v46
    %1593 = vmatpush1.msra.mxu0 %v45
    %1594 = vmatprep.subr.mxu0 %v42
    %1595 = vmatpush1.msra.mxu0 %v41
    %1596 = vmatprep.subr.mxu0 %v38
    %1597 = vmatpush1.msra.mxu0 %v37
    %1598 = vmatprep.subr.mxu0 %v34
    %1599 = vmatpush1.msra.mxu0 %v33
    %1600 = vmatprep.subr.mxu0 0.0
    %1601 = vmatpush2.msra.mxu0 0.0
    %1602 = vmatprep.subr.mxu0 0.0
    %1603 = vmatpush2.msra.mxu0 0.0
    %1604 = vmatprep.subr.mxu0 0.0
    %1605 = vmatpush2.msra.mxu0 0.0
    %1606 = vmatprep.subr.mxu0 0.0
    %1607 = vmatpush2.msra.mxu0 0.0
    %1608 = vmatprep.subr.mxu0 0.0
    %1609 = vmatpush2.msra.mxu0 0.0
    %1610 = vmatprep.subr.mxu0 0.0
    %1611 = vmatpush2.msra.mxu0 0.0
    %1612 = vmatprep.subr.mxu0 0.0
    %1613 = vmatpush2.msra.mxu0 0.0
    %1614 = vmatprep.subr.mxu0 0.0
    %1615 = vmatpush2.msra.mxu0 0.0
    %1616 = vmatprep.subr.mxu0 0.0
    %1617 = vmatpush2.msra.mxu0 0.0
    %1618 = vmatprep.subr.mxu0 0.0
    %1619 = vmatpush2.msra.mxu0 0.0
    %1620 = vmatprep.subr.mxu0 0.0
    %1621 = vmatpush2.msra.mxu0 0.0
    %1622 = vmatprep.subr.mxu0 0.0
    %1623 = vmatpush2.msra.mxu0 0.0
    %1624 = vmatprep.subr.mxu0 0.0
    %1625 = vmatpush2.msra.mxu0 0.0
    %1626 = vmatprep.subr.mxu0 0.0
    %1627 = vmatpush2.msra.mxu0 0.0
    %1628 = vmatprep.subr.mxu0 0.0
    %1629 = vmatpush2.msra.mxu0 0.0
    %1630 = vmatprep.subr.mxu0 0.0
    %1631 = vmatpush2.msra.mxu0 0.0
    %1632 = vmatprep.mubr.f32.mxu0 0.0
    %1633 = vmatmul.mubr.f32.gmra.mxu0 %v1492
    %v1634 = vpop.f32.mrf.mxu0
    %v1635 = vadd.f32 0.0, %v1634
    %v1636 = vpop.f32.mrf.mxu0
    %v1637 = vadd.f32 0.0, %v1636
    %1638 = vdwg.mxu0
    %v1643 = vcombine.low %v1564, %v1566
    %v1644 = vcombine.low %v1635, %v1637
    %v1646 = vunpack.c.l.s4 1983009808
    %v1647 = vunpack.c.0.s8 %v1646
    %v1648 = vlaneseq
    %v1649 = vshrl.u32 %v1648, 7
    %v1650 = vsub.s32 %v1647, %v1649
    %v1651 = vrot.slane %v1643, %v1650
    %v1653 = vunpack.c.l.s4 1983009808
    %v1654 = vunpack.c.0.s8 %v1653
    %v1655 = vlaneseq
    %v1656 = vshrl.u32 %v1655, 7
    %v1657 = vsub.s32 %v1654, %v1656
    %v1658 = vrot.slane %v1644, %v1657
    %v1659 = vcombine.low %v1651, %v1658
    %v1661 = vadd.f32 %v1496, %v1659
    %v1662 = vxor.u32 %v1661, 2147483648
    %v1663 = vmul.f32 %v1662, 1.442695
    %v1664 = vpow.pop %v1663
    %v1665 = vadd.f32 %v1664, 1.0
    %v1666 = vrcp.pop %v1665
    %v1667 = vmul.f32 1.0, %v1666
    %v1669 = vrot.slane %v1661, 2
    %v1671 = vxor.u32 %v1669, 2147483648
    %v1672 = vmul.f32 %v1671, 1.442695
    %v1673 = vpow.pop %v1672
    %v1674 = vadd.f32 %v1673, 1.0
    %v1675 = vrcp.pop %v1674
    %v1676 = vmul.f32 1.0, %v1675
    %v1677 = vrot.slane %v1661, 4
    %v1679 = vtanh.pop %v1677
    %v1680 = vrot.slane %v1661, 6
    %v1682 = vxor.u32 %v1680, 2147483648
    %v1683 = vmul.f32 %v1682, 1.442695
    %v1684 = vpow.pop %v1683
    %v1685 = vadd.f32 %v1684, 1.0
    %v1686 = vrcp.pop %v1685
    %v1687 = vmul.f32 1.0, %v1686
    %v1688 = vmul.f32 %v1676, %v1490
    %v1689 = vmul.f32 %v1667, %v1679
    %v1690 = vadd.f32 %v1688, %v1689
    %v1691 = vtanh.pop %v1690
    %v1692 = vmul.f32 %v1687, %v1691
    %s1693 = scalar_lea.vmem %s2, 14
    %1694 = vst [vmem:[%s1693] sm:$0x3] %v1692
    %1695 = vst [vmem:[#allocation2] sm:$0x3] %v1692
    %1696 = vst [vmem:[#allocation3] sm:$0x3] %v1690
    // Predicated region
    $region18: #{rnn_forward.6} parent=1 // pred_check
      _
    $region19: #{rnn_forward.6} parent=1 // pred_check_branch
      %1698 = sbr.rel (0) target = $region21
    $region20: #{rnn_forward.6} parent=1 // pred_region
      _
    $region21: #{rnn_forward.6} parent=1 // pred_fallthru
      _
    // Predicated region
    $region22: #{rnn_forward.6} parent=1 // pred_check
      _
    $region23: #{rnn_forward.6} parent=1 // pred_check_branch
      %1700 = sbr.rel (0) target = $region25
    $region24: #{rnn_forward.6} parent=1 // pred_region
      _
    $region25: #{rnn_forward.6} parent=1 // pred_fallthru
      _
    %1701 = vsyncpa [#allocation5], 1

// kernel: rnn_forward.8
$region0: #{rnn_forward.8}
  #allocation0 [shape = 'u32[]', space=smem, size = 0x4, offset = 0x4, fixed_abs, tag = 'smem constant byte address 0x4 - core index']
  #allocation1 [shape = 'u32[144,128]{1,0:T(1,128)}', space=vmem, size = 0x12000, scoped, tag = 'internal scratch']
  #allocation2 [shape = 'f32[2,128]{1,0:T(2,128)}', space=vmem, size = 0x400, scoped, tag = 'scratch operand']
  #allocation3 [shape = 'f32[2,128]{1,0:T(2,128)}', space=vmem, size = 0x400, scoped, tag = 'scratch operand']
  %s0 = inlined_call_operand.vmem [shape: f32[8,2,512], index: 0, kind: input, shape index: {}]
  %s1 = inlined_call_operand.vmem [shape: f32[128,512], index: 1, kind: input, shape index: {}]
  %s2 = inlined_call_operand.vmem [shape: f32[8,2,128], index: 2, kind: output, shape index: {}]
  %s3 = sld [smem:[#allocation0]]
  $region22: #{rnn_forward.8} parent=0
    _
  %s5 = ssub.s32 1, %s3
  %s6 = scalar_select 0, %s5, %s3
  // Predicated region
  $region2: #{rnn_forward.8} parent=0 // pred_check
    _
  $region3: #{rnn_forward.8} parent=0 // pred_check_branch
    %8 = sbr.rel (0) target = $region5
  $region4: #{rnn_forward.8} parent=0 // pred_region
    _
  $region5: #{rnn_forward.8} parent=0 // pred_fallthru
    _
  // Predicated region
  $region6: #{rnn_forward.8} parent=0 // pred_check
    _
  $region7: #{rnn_forward.8} parent=0 // pred_check_branch
    %10 = sbr.rel (0) target = $region9
  $region8: #{rnn_forward.8} parent=0 // pred_region
    _
  $region9: #{rnn_forward.8} parent=0 // pred_fallthru
    _
  %p11 = scmp.eq.s32.totalorder 0, 0
  // Predicated region
  $region10: #{rnn_forward.8} parent=0 // pred_check
    %p12 = pneg %p11
  $region11: #{rnn_forward.8} parent=0 // pred_check_branch
    %14 = sbr.rel (%p12) target = $region13
  $region12: #{rnn_forward.8} parent=0 // pred_region
    %15 = vst [vmem:[#allocation2] sm:$0x3] 0.0
    %16 = vst [vmem:[#allocation3] sm:$0x3] 0.0
  $region13: #{rnn_forward.8} parent=0 // pred_fallthru
    _
  %v17 = vld [vmem:[%s1] sm:$0xff]
  %v18 = vld [vmem:[%s1 + $0x8] sm:$0xff]
  %v19 = vld [vmem:[%s1 + $0x10] sm:$0xff]
  %v20 = vld [vmem:[%s1 + $0x18] sm:$0xff]
  %v21 = vld [vmem:[%s1 + $0x20] sm:$0xff]
  %v22 = vld [vmem:[%s1 + $0x28] sm:$0xff]
  %v23 = vld [vmem:[%s1 + $0x30] sm:$0xff]
  %v24 = vld [vmem:[%s1 + $0x38] sm:$0xff]
  %v25 = vld [vmem:[%s1 + $0x40] sm:$0xff]
  %v26 = vld [vmem:[%s1 + $0x48] sm:$0xff]
  %v27 = vld [vmem:[%s1 + $0x50] sm:$0xff]
  %v28 = vld [vmem:[%s1 + $0x58] sm:$0xff]
  %v29 = vld [vmem:[%s1 + $0x60] sm:$0xff]
  %v30 = vld [vmem:[%s1 + $0x68] sm:$0xff]
  %v31 = vld [vmem:[%s1 + $0x70] sm:$0xff]
  %v32 = vld [vmem:[%s1 + $0x78] sm:$0xff]
  %v33 = vld [vmem:[%s1 + $0x80] sm:$0xff]
  %v34 = vld [vmem:[%s1 + $0x88] sm:$0xff]
  %v35 = vld [vmem:[%s1 + $0x90] sm:$0xff]
  %v36 = vld [vmem:[%s1 + $0x98] sm:$0xff]
  %v37 = vld [vmem:[%s1 + $0xa0] sm:$0xff]
  %v38 = vld [vmem:[%s1 + $0xa8] sm:$0xff]
  %v39 = vld [vmem:[%s1 + $0xb0] sm:$0xff]
  %v40 = vld [vmem:[%s1 + $0xb8] sm:$0xff]
  %v41 = vld [vmem:[%s1 + $0xc0] sm:$0xff]
  %v42 = vld [vmem:[%s1 + $0xc8] sm:$0xff]
  %v43 = vld [vmem:[%s1 + $0xd0] sm:$0xff]
  %v44 = vld [vmem:[%s1 + $0xd8] sm:$0xff]
  %v45 = vld [vmem:[%s1 + $0xe0] sm:$0xff]
  %v46 = vld [vmem:[%s1 + $0xe8] sm:$0xff]
  %v47 = vld [vmem:[%s1 + $0xf0] sm:$0xff]
  %v48 = vld [vmem:[%s1 + $0xf8] sm:$0xff]
  %v49 = vld [vmem:[%s1 + $0x100] sm:$0xff]
  %v50 = vld [vmem:[%s1 + $0x108] sm:$0xff]
  %v51 = vld [vmem:[%s1 + $0x110] sm:$0xff]
  %v52 = vld [vmem:[%s1 + $0x118] sm:$0xff]
  %v53 = vld [vmem:[%s1 + $0x120] sm:$0xff]
  %v54 = vld [vmem:[%s1 + $0x128] sm:$0xff]
  %v55 = vld [vmem:[%s1 + $0x130] sm:$0xff]
  %v56 = vld [vmem:[%s1 + $0x138] sm:$0xff]
  %v57 = vld [vmem:[%s1 + $0x140] sm:$0xff]
  %v58 = vld [vmem:[%s1 + $0x148] sm:$0xff]
  %v59 = vld [vmem:[%s1 + $0x150] sm:$0xff]
  %v60 = vld [vmem:[%s1 + $0x158] sm:$0xff]
  %v61 = vld [vmem:[%s1 + $0x160] sm:$0xff]
  %v62 = vld [vmem:[%s1 + $0x168] sm:$0xff]
  %v63 = vld [vmem:[%s1 + $0x170] sm:$0xff]
  %v64 = vld [vmem:[%s1 + $0x178] sm:$0xff]
  %v65 = vld [vmem:[%s1 + $0x180] sm:$0xff]
  %v66 = vld [vmem:[%s1 + $0x188] sm:$0xff]
  %v67 = vld [vmem:[%s1 + $0x190] sm:$0xff]
  %v68 = vld [vmem:[%s1 + $0x198] sm:$0xff]
  %v69 = vld [vmem:[%s1 + $0x1a0] sm:$0xff]
  %v70 = vld [vmem:[%s1 + $0x1a8] sm:$0xff]
  %v71 = vld [vmem:[%s1 + $0x1b0] sm:$0xff]
  %v72 = vld [vmem:[%s1 + $0x1b8] sm:$0xff]
  %v73 = vld [vmem:[%s1 + $0x1c0] sm:$0xff]
  %v74 = vld [vmem:[%s1 + $0x1c8] sm:$0xff]
  %v75 = vld [vmem:[%s1 + $0x1d0] sm:$0xff]
  %v76 = vld [vmem:[%s1 + $0x1d8] sm:$0xff]
  %v77 = vld [vmem:[%s1 + $0x1e0] sm:$0xff]
  %v78 = vld [vmem:[%s1 + $0x1e8] sm:$0xff]
  %v79 = vld [vmem:[%s1 + $0x1f0] sm:$0xff]
  %v80 = vld [vmem:[%s1 + $0x1f8] sm:$0xff]
  %v81 = vld [vmem:[#allocation2] sm:$0x3]
  %v82 = vld [vmem:[#allocation3] sm:$0x3]
  %v83 = vld [vmem:[%s0] sm:$0xff]
  %84 = vmatprep.subr.mxu0 %v78
  %85 = vmatpush1.msra.mxu0 %v77
  %86 = vmatprep.subr.mxu0 %v74
  %87 = vmatpush1.msra.mxu0 %v73
  %88 = vmatprep.subr.mxu0 %v70
  %89 = vmatpush1.msra.mxu0 %v69
  %90 = vmatprep.subr.mxu0 %v66
  %91 = vmatpush1.msra.mxu0 %v65
  %92 = vmatprep.subr.mxu0 %v62
  %93 = vmatpush1.msra.mxu0 %v61
  %94 = vmatprep.subr.mxu0 %v58
  %95 = vmatpush1.msra.mxu0 %v57
  %96 = vmatprep.subr.mxu0 %v54
  %97 = vmatpush1.msra.mxu0 %v53
  %98 = vmatprep.subr.mxu0 %v50
  %99 = vmatpush1.msra.mxu0 %v49
  %100 = vmatprep.subr.mxu0 %v46
  %101 = vmatpush1.msra.mxu0 %v45
  %102 = vmatprep.subr.mxu0 %v42
  %103 = vmatpush1.msra.mxu0 %v41
  %104 = vmatprep.subr.mxu0 %v38
  %105 = vmatpush1.msra.mxu0 %v37
  %106 = vmatprep.subr.mxu0 %v34
  %107 = vmatpush1.msra.mxu0 %v33
  %108 = vmatprep.subr.mxu0 %v30
  %109 = vmatpush1.msra.mxu0 %v29
  %110 = vmatprep.subr.mxu0 %v26
  %111 = vmatpush1.msra.mxu0 %v25
  %112 = vmatprep.subr.mxu0 %v22
  %113 = vmatpush1.msra.mxu0 %v21
  %114 = vmatprep.subr.mxu0 %v18
  %115 = vmatpush1.msra.mxu0 %v17
  %116 = vmatprep.subr.mxu0 0.0
  %117 = vmatpush2.msra.mxu0 0.0
  %118 = vmatprep.subr.mxu0 0.0
  %119 = vmatpush2.msra.mxu0 0.0
  %120 = vmatprep.subr.mxu0 0.0
  %121 = vmatpush2.msra.mxu0 0.0
  %122 = vmatprep.subr.mxu0 0.0
  %123 = vmatpush2.msra.mxu0 0.0
  %124 = vmatprep.subr.mxu0 0.0
  %125 = vmatpush2.msra.mxu0 0.0
  %126 = vmatprep.subr.mxu0 0.0
  %127 = vmatpush2.msra.mxu0 0.0
  %128 = vmatprep.subr.mxu0 0.0
  %129 = vmatpush2.msra.mxu0 0.0
  %130 = vmatprep.subr.mxu0 0.0
  %131 = vmatpush2.msra.mxu0 0.0
  %132 = vmatprep.subr.mxu0 0.0
  %133 = vmatpush2.msra.mxu0 0.0
  %134 = vmatprep.subr.mxu0 0.0
  %135 = vmatpush2.msra.mxu0 0.0
  %136 = vmatprep.subr.mxu0 0.0
  %137 = vmatpush2.msra.mxu0 0.0
  %138 = vmatprep.subr.mxu0 0.0
  %139 = vmatpush2.msra.mxu0 0.0
  %140 = vmatprep.subr.mxu0 0.0
  %141 = vmatpush2.msra.mxu0 0.0
  %142 = vmatprep.subr.mxu0 0.0
  %143 = vmatpush2.msra.mxu0 0.0
  %144 = vmatprep.subr.mxu0 0.0
  %145 = vmatpush2.msra.mxu0 0.0
  %146 = vmatprep.subr.mxu0 0.0
  %147 = vmatpush2.msra.mxu0 0.0
  %148 = vmatprep.mubr.f32.mxu0 0.0
  %149 = vmatmul.mubr.f32.gmra.mxu0 %v81
  %v150 = vpop.f32.mrf.mxu0
  %v151 = vadd.f32 0.0, %v150
  %v152 = vpop.f32.mrf.mxu0
  %v153 = vadd.f32 0.0, %v152
  %154 = vdwg.mxu0
  %155 = vmatprep.subr.mxu0 %v80
  %156 = vmatpush1.msra.mxu0 %v79
  %157 = vmatprep.subr.mxu0 %v76
  %158 = vmatpush1.msra.mxu0 %v75
  %159 = vmatprep.subr.mxu0 %v72
  %160 = vmatpush1.msra.mxu0 %v71
  %161 = vmatprep.subr.mxu0 %v68
  %162 = vmatpush1.msra.mxu0 %v67
  %163 = vmatprep.subr.mxu0 %v64
  %164 = vmatpush1.msra.mxu0 %v63
  %165 = vmatprep.subr.mxu0 %v60
  %166 = vmatpush1.msra.mxu0 %v59
  %167 = vmatprep.subr.mxu0 %v56
  %168 = vmatpush1.msra.mxu0 %v55
  %169 = vmatprep.subr.mxu0 %v52
  %170 = vmatpush1.msra.mxu0 %v51
  %171 = vmatprep.subr.mxu0 %v48
  %172 = vmatpush1.msra.mxu0 %v47
  %173 = vmatprep.subr.mxu0 %v44
  %174 = vmatpush1.msra.mxu0 %v43
  %175 = vmatprep.subr.mxu0 %v40
  %176 = vmatpush1.msra.mxu0 %v39
  %177 = vmatprep.subr.mxu0 %v36
  %178 = vmatpush1.msra.mxu0 %v35
  %179 = vmatprep.subr.mxu0 %v32
  %180 = vmatpush1.msra.mxu0 %v31
  %181 = vmatprep.subr.mxu0 %v28
  %182 = vmatpush1.msra.mxu0 %v27
  %183 = vmatprep.subr.mxu0 %v24
  %184 = vmatpush1.msra.mxu0 %v23
  %185 = vmatprep.subr.mxu0 %v20
  %186 = vmatpush1.msra.mxu0 %v19
  %187 = vmatprep.subr.mxu0 0.0
  %188 = vmatpush2.msra.mxu0 0.0
  %189 = vmatprep.subr.mxu0 0.0
  %190 = vmatpush2.msra.mxu0 0.0
  %191 = vmatprep.subr.mxu0 0.0
  %192 = vmatpush2.msra.mxu0 0.0
  %193 = vmatprep.subr.mxu0 0.0
  %194 = vmatpush2.msra.mxu0 0.0
  %195 = vmatprep.subr.mxu0 0.0
  %196 = vmatpush2.msra.mxu0 0.0
  %197 = vmatprep.subr.mxu0 0.0
  %198 = vmatpush2.msra.mxu0 0.0
  %199 = vmatprep.subr.mxu0 0.0
  %200 = vmatpush2.msra.mxu0 0.0
  %201 = vmatprep.subr.mxu0 0.0
  %202 = vmatpush2.msra.mxu0 0.0
  %203 = vmatprep.subr.mxu0 0.0
  %204 = vmatpush2.msra.mxu0 0.0
  %205 = vmatprep.subr.mxu0 0.0
  %206 = vmatpush2.msra.mxu0 0.0
  %207 = vmatprep.subr.mxu0 0.0
  %208 = vmatpush2.msra.mxu0 0.0
  %209 = vmatprep.subr.mxu0 0.0
  %210 = vmatpush2.msra.mxu0 0.0
  %211 = vmatprep.subr.mxu0 0.0
  %212 = vmatpush2.msra.mxu0 0.0
  %213 = vmatprep.subr.mxu0 0.0
  %214 = vmatpush2.msra.mxu0 0.0
  %215 = vmatprep.subr.mxu0 0.0
  %216 = vmatpush2.msra.mxu0 0.0
  %217 = vmatprep.subr.mxu0 0.0
  %218 = vmatpush2.msra.mxu0 0.0
  %219 = vmatprep.mubr.f32.mxu0 0.0
  %220 = vmatmul.mubr.f32.gmra.mxu0 %v81
  %v221 = vpop.f32.mrf.mxu0
  %v222 = vadd.f32 0.0, %v221
  %v223 = vpop.f32.mrf.mxu0
  %v224 = vadd.f32 0.0, %v223
  %225 = vdwg.mxu0
  %v230 = vcombine.low %v151, %v153
  %v231 = vcombine.low %v222, %v224
  %v233 = vunpack.c.l.s4 1983009808
  %v234 = vunpack.c.0.s8 %v233
  %v235 = vlaneseq
  %v236 = vshrl.u32 %v235, 7
  %v237 = vsub.s32 %v234, %v236
  %v238 = vrot.slane %v230, %v237
  %v240 = vunpack.c.l.s4 1983009808
  %v241 = vunpack.c.0.s8 %v240
  %v242 = vlaneseq
  %v243 = vshrl.u32 %v242, 7
  %v244 = vsub.s32 %v241, %v243
  %v245 = vrot.slane %v231, %v244
  %v246 = vcombine.low %v238, %v245
  %v248 = vadd.f32 %v83, %v246
  %v249 = vxor.u32 %v248, 2147483648
  %v250 = vmul.f32 %v249, 1.442695
  %v251 = vpow.pop %v250
  %v252 = vadd.f32 %v251, 1.0
  %v253 = vrcp.pop %v252
  %v254 = vmul.f32 1.0, %v253
  %v256 = vrot.slane %v248, 2
  %v258 = vxor.u32 %v256, 2147483648
  %v259 = vmul.f32 %v258, 1.442695
  %v260 = vpow.pop %v259
  %v261 = vadd.f32 %v260, 1.0
  %v262 = vrcp.pop %v261
  %v263 = vmul.f32 1.0, %v262
  %v264 = vrot.slane %v248, 4
  %v266 = vtanh.pop %v264
  %v267 = vrot.slane %v248, 6
  %v269 = vxor.u32 %v267, 2147483648
  %v270 = vmul.f32 %v269, 1.442695
  %v271 = vpow.pop %v270
  %v272 = vadd.f32 %v271, 1.0
  %v273 = vrcp.pop %v272
  %v274 = vmul.f32 1.0, %v273
  %v275 = vmul.f32 %v263, %v82
  %v276 = vmul.f32 %v254, %v266
  %v277 = vadd.f32 %v275, %v276
  %v278 = vtanh.pop %v277
  %v279 = vmul.f32 %v274, %v278
  %280 = vst [vmem:[%s2] sm:$0x3] %v279
  %s281 = scalar_lea.vmem %s0, 8
  %v282 = vld [vmem:[%s281] sm:$0xff]
  %283 = vmatprep.subr.mxu0 %v78
  %284 = vmatpush1.msra.mxu0 %v77
  %285 = vmatprep.subr.mxu0 %v74
  %286 = vmatpush1.msra.mxu0 %v73
  %287 = vmatprep.subr.mxu0 %v70
  %288 = vmatpush1.msra.mxu0 %v69
  %289 = vmatprep.subr.mxu0 %v66
  %290 = vmatpush1.msra.mxu0 %v65
  %291 = vmatprep.subr.mxu0 %v62
  %292 = vmatpush1.msra.mxu0 %v61
  %293 = vmatprep.subr.mxu0 %v58
  %294 = vmatpush1.msra.mxu0 %v57
  %295 = vmatprep.subr.mxu0 %v54
  %296 = vmatpush1.msra.mxu0 %v53
  %297 = vmatprep.subr.mxu0 %v50
  %298 = vmatpush1.msra.mxu0 %v49
  %299 = vmatprep.subr.mxu0 %v46
  %300 = vmatpush1.msra.mxu0 %v45
  %301 = vmatprep.subr.mxu0 %v42
  %302 = vmatpush1.msra.mxu0 %v41
  %303 = vmatprep.subr.mxu0 %v38
  %304 = vmatpush1.msra.mxu0 %v37
  %305 = vmatprep.subr.mxu0 %v34
  %306 = vmatpush1.msra.mxu0 %v33
  %307 = vmatprep.subr.mxu0 %v30
  %308 = vmatpush1.msra.mxu0 %v29
  %309 = vmatprep.subr.mxu0 %v26
  %310 = vmatpush1.msra.mxu0 %v25
  %311 = vmatprep.subr.mxu0 %v22
  %312 = vmatpush1.msra.mxu0 %v21
  %313 = vmatprep.subr.mxu0 %v18
  %314 = vmatpush1.msra.mxu0 %v17
  %315 = vmatprep.subr.mxu0 0.0
  %316 = vmatpush2.msra.mxu0 0.0
  %317 = vmatprep.subr.mxu0 0.0
  %318 = vmatpush2.msra.mxu0 0.0
  %319 = vmatprep.subr.mxu0 0.0
  %320 = vmatpush2.msra.mxu0 0.0
  %321 = vmatprep.subr.mxu0 0.0
  %322 = vmatpush2.msra.mxu0 0.0
  %323 = vmatprep.subr.mxu0 0.0
  %324 = vmatpush2.msra.mxu0 0.0
  %325 = vmatprep.subr.mxu0 0.0
  %326 = vmatpush2.msra.mxu0 0.0
  %327 = vmatprep.subr.mxu0 0.0
  %328 = vmatpush2.msra.mxu0 0.0
  %329 = vmatprep.subr.mxu0 0.0
  %330 = vmatpush2.msra.mxu0 0.0
  %331 = vmatprep.subr.mxu0 0.0
  %332 = vmatpush2.msra.mxu0 0.0
  %333 = vmatprep.subr.mxu0 0.0
  %334 = vmatpush2.msra.mxu0 0.0
  %335 = vmatprep.subr.mxu0 0.0
  %336 = vmatpush2.msra.mxu0 0.0
  %337 = vmatprep.subr.mxu0 0.0
  %338 = vmatpush2.msra.mxu0 0.0
  %339 = vmatprep.subr.mxu0 0.0
  %340 = vmatpush2.msra.mxu0 0.0
  %341 = vmatprep.subr.mxu0 0.0
  %342 = vmatpush2.msra.mxu0 0.0
  %343 = vmatprep.subr.mxu0 0.0
  %344 = vmatpush2.msra.mxu0 0.0
  %345 = vmatprep.subr.mxu0 0.0
  %346 = vmatpush2.msra.mxu0 0.0
  %347 = vmatprep.mubr.f32.mxu0 0.0
  %348 = vmatmul.mubr.f32.gmra.mxu0 %v279
  %v349 = vpop.f32.mrf.mxu0
  %v350 = vadd.f32 0.0, %v349
  %v351 = vpop.f32.mrf.mxu0
  %v352 = vadd.f32 0.0, %v351
  %353 = vdwg.mxu0
  %354 = vmatprep.subr.mxu0 %v80
  %355 = vmatpush1.msra.mxu0 %v79
  %356 = vmatprep.subr.mxu0 %v76
  %357 = vmatpush1.msra.mxu0 %v75
  %358 = vmatprep.subr.mxu0 %v72
  %359 = vmatpush1.msra.mxu0 %v71
  %360 = vmatprep.subr.mxu0 %v68
  %361 = vmatpush1.msra.mxu0 %v67
  %362 = vmatprep.subr.mxu0 %v64
  %363 = vmatpush1.msra.mxu0 %v63
  %364 = vmatprep.subr.mxu0 %v60
  %365 = vmatpush1.msra.mxu0 %v59
  %366 = vmatprep.subr.mxu0 %v56
  %367 = vmatpush1.msra.mxu0 %v55
  %368 = vmatprep.subr.mxu0 %v52
  %369 = vmatpush1.msra.mxu0 %v51
  %370 = vmatprep.subr.mxu0 %v48
  %371 = vmatpush1.msra.mxu0 %v47
  %372 = vmatprep.subr.mxu0 %v44
  %373 = vmatpush1.msra.mxu0 %v43
  %374 = vmatprep.subr.mxu0 %v40
  %375 = vmatpush1.msra.mxu0 %v39
  %376 = vmatprep.subr.mxu0 %v36
  %377 = vmatpush1.msra.mxu0 %v35
  %378 = vmatprep.subr.mxu0 %v32
  %379 = vmatpush1.msra.mxu0 %v31
  %380 = vmatprep.subr.mxu0 %v28
  %381 = vmatpush1.msra.mxu0 %v27
  %382 = vmatprep.subr.mxu0 %v24
  %383 = vmatpush1.msra.mxu0 %v23
  %384 = vmatprep.subr.mxu0 %v20
  %385 = vmatpush1.msra.mxu0 %v19
  %386 = vmatprep.subr.mxu0 0.0
  %387 = vmatpush2.msra.mxu0 0.0
  %388 = vmatprep.subr.mxu0 0.0
  %389 = vmatpush2.msra.mxu0 0.0
  %390 = vmatprep.subr.mxu0 0.0
  %391 = vmatpush2.msra.mxu0 0.0
  %392 = vmatprep.subr.mxu0 0.0
  %393 = vmatpush2.msra.mxu0 0.0
  %394 = vmatprep.subr.mxu0 0.0
  %395 = vmatpush2.msra.mxu0 0.0
  %396 = vmatprep.subr.mxu0 0.0
  %397 = vmatpush2.msra.mxu0 0.0
  %398 = vmatprep.subr.mxu0 0.0
  %399 = vmatpush2.msra.mxu0 0.0
  %400 = vmatprep.subr.mxu0 0.0
  %401 = vmatpush2.msra.mxu0 0.0
  %402 = vmatprep.subr.mxu0 0.0
  %403 = vmatpush2.msra.mxu0 0.0
  %404 = vmatprep.subr.mxu0 0.0
  %405 = vmatpush2.msra.mxu0 0.0
  %406 = vmatprep.subr.mxu0 0.0
  %407 = vmatpush2.msra.mxu0 0.0
  %408 = vmatprep.subr.mxu0 0.0
  %409 = vmatpush2.msra.mxu0 0.0
  %410 = vmatprep.subr.mxu0 0.0
  %411 = vmatpush2.msra.mxu0 0.0
  %412 = vmatprep.subr.mxu0 0.0
  %413 = vmatpush2.msra.mxu0 0.0
  %414 = vmatprep.subr.mxu0 0.0
  %415 = vmatpush2.msra.mxu0 0.0
  %416 = vmatprep.subr.mxu0 0.0
  %417 = vmatpush2.msra.mxu0 0.0
  %418 = vmatprep.mubr.f32.mxu0 0.0
  %419 = vmatmul.mubr.f32.gmra.mxu0 %v279
  %v420 = vpop.f32.mrf.mxu0
  %v421 = vadd.f32 0.0, %v420
  %v422 = vpop.f32.mrf.mxu0
  %v423 = vadd.f32 0.0, %v422
  %424 = vdwg.mxu0
  %v429 = vcombine.low %v350, %v352
  %v430 = vcombine.low %v421, %v423
  %v432 = vunpack.c.l.s4 1983009808
  %v433 = vunpack.c.0.s8 %v432
  %v434 = vlaneseq
  %v435 = vshrl.u32 %v434, 7
  %v436 = vsub.s32 %v433, %v435
  %v437 = vrot.slane %v429, %v436
  %v439 = vunpack.c.l.s4 1983009808
  %v440 = vunpack.c.0.s8 %v439
  %v441 = vlaneseq
  %v442 = vshrl.u32 %v441, 7
  %v443 = vsub.s32 %v440, %v442
  %v444 = vrot.slane %v430, %v443
  %v445 = vcombine.low %v437, %v444
  %v447 = vadd.f32 %v282, %v445
  %v448 = vxor.u32 %v447, 2147483648
  %v449 = vmul.f32 %v448, 1.442695
  %v450 = vpow.pop %v449
  %v451 = vadd.f32 %v450, 1.0
  %v452 = vrcp.pop %v451
  %v453 = vmul.f32 1.0, %v452
  %v455 = vrot.slane %v447, 2
  %v457 = vxor.u32 %v455, 2147483648
  %v458 = vmul.f32 %v457, 1.442695
  %v459 = vpow.pop %v458
  %v460 = vadd.f32 %v459, 1.0
  %v461 = vrcp.pop %v460
  %v462 = vmul.f32 1.0, %v461
  %v463 = vrot.slane %v447, 4
  %v465 = vtanh.pop %v463
  %v466 = vrot.slane %v447, 6
  %v468 = vxor.u32 %v466, 2147483648
  %v469 = vmul.f32 %v468, 1.442695
  %v470 = vpow.pop %v469
  %v471 = vadd.f32 %v470, 1.0
  %v472 = vrcp.pop %v471
  %v473 = vmul.f32 1.0, %v472
  %v474 = vmul.f32 %v462, %v277
  %v475 = vmul.f32 %v453, %v465
  %v476 = vadd.f32 %v474, %v475
  %v477 = vtanh.pop %v476
  %v478 = vmul.f32 %v473, %v477
  %s479 = scalar_lea.vmem %s2, 2
  %480 = vst [vmem:[%s479] sm:$0x3] %v478
  %s481 = scalar_lea.vmem %s0, 16
  %v482 = vld [vmem:[%s481] sm:$0xff]
  %483 = vmatprep.subr.mxu0 %v78
  %484 = vmatpush1.msra.mxu0 %v77
  %485 = vmatprep.subr.mxu0 %v74
  %486 = vmatpush1.msra.mxu0 %v73
  %487 = vmatprep.subr.mxu0 %v70
  %488 = vmatpush1.msra.mxu0 %v69
  %489 = vmatprep.subr.mxu0 %v66
  %490 = vmatpush1.msra.mxu0 %v65
  %491 = vmatprep.subr.mxu0 %v62
  %492 = vmatpush1.msra.mxu0 %v61
  %493 = vmatprep.subr.mxu0 %v58
  %494 = vmatpush1.msra.mxu0 %v57
  %495 = vmatprep.subr.mxu0 %v54
  %496 = vmatpush1.msra.mxu0 %v53
  %497 = vmatprep.subr.mxu0 %v50
  %498 = vmatpush1.msra.mxu0 %v49
  %499 = vmatprep.subr.mxu0 %v46
  %500 = vmatpush1.msra.mxu0 %v45
  %501 = vmatprep.subr.mxu0 %v42
  %502 = vmatpush1.msra.mxu0 %v41
  %503 = vmatprep.subr.mxu0 %v38
  %504 = vmatpush1.msra.mxu0 %v37
  %505 = vmatprep.subr.mxu0 %v34
  %506 = vmatpush1.msra.mxu0 %v33
  %507 = vmatprep.subr.mxu0 %v30
  %508 = vmatpush1.msra.mxu0 %v29
  %509 = vmatprep.subr.mxu0 %v26
  %510 = vmatpush1.msra.mxu0 %v25
  %511 = vmatprep.subr.mxu0 %v22
  %512 = vmatpush1.msra.mxu0 %v21
  %513 = vmatprep.subr.mxu0 %v18
  %514 = vmatpush1.msra.mxu0 %v17
  %515 = vmatprep.subr.mxu0 0.0
  %516 = vmatpush2.msra.mxu0 0.0
  %517 = vmatprep.subr.mxu0 0.0
  %518 = vmatpush2.msra.mxu0 0.0
  %519 = vmatprep.subr.mxu0 0.0
  %520 = vmatpush2.msra.mxu0 0.0
  %521 = vmatprep.subr.mxu0 0.0
  %522 = vmatpush2.msra.mxu0 0.0
  %523 = vmatprep.subr.mxu0 0.0
  %524 = vmatpush2.msra.mxu0 0.0
  %525 = vmatprep.subr.mxu0 0.0
  %526 = vmatpush2.msra.mxu0 0.0
  %527 = vmatprep.subr.mxu0 0.0
  %528 = vmatpush2.msra.mxu0 0.0
  %529 = vmatprep.subr.mxu0 0.0
  %530 = vmatpush2.msra.mxu0 0.0
  %531 = vmatprep.subr.mxu0 0.0
  %532 = vmatpush2.msra.mxu0 0.0
  %533 = vmatprep.subr.mxu0 0.0
  %534 = vmatpush2.msra.mxu0 0.0
  %535 = vmatprep.subr.mxu0 0.0
  %536 = vmatpush2.msra.mxu0 0.0
  %537 = vmatprep.subr.mxu0 0.0
  %538 = vmatpush2.msra.mxu0 0.0
  %539 = vmatprep.subr.mxu0 0.0
  %540 = vmatpush2.msra.mxu0 0.0
  %541 = vmatprep.subr.mxu0 0.0
  %542 = vmatpush2.msra.mxu0 0.0
  %543 = vmatprep.subr.mxu0 0.0
  %544 = vmatpush2.msra.mxu0 0.0
  %545 = vmatprep.subr.mxu0 0.0
  %546 = vmatpush2.msra.mxu0 0.0
  %547 = vmatprep.mubr.f32.mxu0 0.0
  %548 = vmatmul.mubr.f32.gmra.mxu0 %v478
  %v549 = vpop.f32.mrf.mxu0
  %v550 = vadd.f32 0.0, %v549
  %v551 = vpop.f32.mrf.mxu0
  %v552 = vadd.f32 0.0, %v551
  %553 = vdwg.mxu0
  %554 = vmatprep.subr.mxu0 %v80
  %555 = vmatpush1.msra.mxu0 %v79
  %556 = vmatprep.subr.mxu0 %v76
  %557 = vmatpush1.msra.mxu0 %v75
  %558 = vmatprep.subr.mxu0 %v72
  %559 = vmatpush1.msra.mxu0 %v71
  %560 = vmatprep.subr.mxu0 %v68
  %561 = vmatpush1.msra.mxu0 %v67
  %562 = vmatprep.subr.mxu0 %v64
  %563 = vmatpush1.msra.mxu0 %v63
  %564 = vmatprep.subr.mxu0 %v60
  %565 = vmatpush1.msra.mxu0 %v59
  %566 = vmatprep.subr.mxu0 %v56
  %567 = vmatpush1.msra.mxu0 %v55
  %568 = vmatprep.subr.mxu0 %v52
  %569 = vmatpush1.msra.mxu0 %v51
  %570 = vmatprep.subr.mxu0 %v48
  %571 = vmatpush1.msra.mxu0 %v47
  %572 = vmatprep.subr.mxu0 %v44
  %573 = vmatpush1.msra.mxu0 %v43
  %574 = vmatprep.subr.mxu0 %v40
  %575 = vmatpush1.msra.mxu0 %v39
  %576 = vmatprep.subr.mxu0 %v36
  %577 = vmatpush1.msra.mxu0 %v35
  %578 = vmatprep.subr.mxu0 %v32
  %579 = vmatpush1.msra.mxu0 %v31
  %580 = vmatprep.subr.mxu0 %v28
  %581 = vmatpush1.msra.mxu0 %v27
  %582 = vmatprep.subr.mxu0 %v24
  %583 = vmatpush1.msra.mxu0 %v23
  %584 = vmatprep.subr.mxu0 %v20
  %585 = vmatpush1.msra.mxu0 %v19
  %586 = vmatprep.subr.mxu0 0.0
  %587 = vmatpush2.msra.mxu0 0.0
  %588 = vmatprep.subr.mxu0 0.0
  %589 = vmatpush2.msra.mxu0 0.0
  %590 = vmatprep.subr.mxu0 0.0
  %591 = vmatpush2.msra.mxu0 0.0
  %592 = vmatprep.subr.mxu0 0.0
  %593 = vmatpush2.msra.mxu0 0.0
  %594 = vmatprep.subr.mxu0 0.0
  %595 = vmatpush2.msra.mxu0 0.0
  %596 = vmatprep.subr.mxu0 0.0
  %597 = vmatpush2.msra.mxu0 0.0
  %598 = vmatprep.subr.mxu0 0.0
  %599 = vmatpush2.msra.mxu0 0.0
  %600 = vmatprep.subr.mxu0 0.0
  %601 = vmatpush2.msra.mxu0 0.0
  %602 = vmatprep.subr.mxu0 0.0
  %603 = vmatpush2.msra.mxu0 0.0
  %604 = vmatprep.subr.mxu0 0.0
  %605 = vmatpush2.msra.mxu0 0.0
  %606 = vmatprep.subr.mxu0 0.0
  %607 = vmatpush2.msra.mxu0 0.0
  %608 = vmatprep.subr.mxu0 0.0
  %609 = vmatpush2.msra.mxu0 0.0
  %610 = vmatprep.subr.mxu0 0.0
  %611 = vmatpush2.msra.mxu0 0.0
  %612 = vmatprep.subr.mxu0 0.0
  %613 = vmatpush2.msra.mxu0 0.0
  %614 = vmatprep.subr.mxu0 0.0
  %615 = vmatpush2.msra.mxu0 0.0
  %616 = vmatprep.subr.mxu0 0.0
  %617 = vmatpush2.msra.mxu0 0.0
  %618 = vmatprep.mubr.f32.mxu0 0.0
  %619 = vmatmul.mubr.f32.gmra.mxu0 %v478
  %v620 = vpop.f32.mrf.mxu0
  %v621 = vadd.f32 0.0, %v620
  %v622 = vpop.f32.mrf.mxu0
  %v623 = vadd.f32 0.0, %v622
  %624 = vdwg.mxu0
  %v629 = vcombine.low %v550, %v552
  %v630 = vcombine.low %v621, %v623
  %v632 = vunpack.c.l.s4 1983009808
  %v633 = vunpack.c.0.s8 %v632
  %v634 = vlaneseq
  %v635 = vshrl.u32 %v634, 7
  %v636 = vsub.s32 %v633, %v635
  %v637 = vrot.slane %v629, %v636
  %v639 = vunpack.c.l.s4 1983009808
  %v640 = vunpack.c.0.s8 %v639
  %v641 = vlaneseq
  %v642 = vshrl.u32 %v641, 7
  %v643 = vsub.s32 %v640, %v642
  %v644 = vrot.slane %v630, %v643
  %v645 = vcombine.low %v637, %v644
  %v647 = vadd.f32 %v482, %v645
  %v648 = vxor.u32 %v647, 2147483648
  %v649 = vmul.f32 %v648, 1.442695
  %v650 = vpow.pop %v649
  %v651 = vadd.f32 %v650, 1.0
  %v652 = vrcp.pop %v651
  %v653 = vmul.f32 1.0, %v652
  %v655 = vrot.slane %v647, 2
  %v657 = vxor.u32 %v655, 2147483648
  %v658 = vmul.f32 %v657, 1.442695
  %v659 = vpow.pop %v658
  %v660 = vadd.f32 %v659, 1.0
  %v661 = vrcp.pop %v660
  %v662 = vmul.f32 1.0, %v661
  %v663 = vrot.slane %v647, 4
  %v665 = vtanh.pop %v663
  %v666 = vrot.slane %v647, 6
  %v668 = vxor.u32 %v666, 2147483648
  %v669 = vmul.f32 %v668, 1.442695
  %v670 = vpow.pop %v669
  %v671 = vadd.f32 %v670, 1.0
  %v672 = vrcp.pop %v671
  %v673 = vmul.f32 1.0, %v672
  %v674 = vmul.f32 %v662, %v476
  %v675 = vmul.f32 %v653, %v665
  %v676 = vadd.f32 %v674, %v675
  %v677 = vtanh.pop %v676
  %v678 = vmul.f32 %v673, %v677
  %s679 = scalar_lea.vmem %s2, 4
  %680 = vst [vmem:[%s679] sm:$0x3] %v678
  %s681 = scalar_lea.vmem %s0, 24
  %v682 = vld [vmem:[%s681] sm:$0xff]
  %683 = vmatprep.subr.mxu0 %v78
  %684 = vmatpush1.msra.mxu0 %v77
  %685 = vmatprep.subr.mxu0 %v74
  %686 = vmatpush1.msra.mxu0 %v73
  %687 = vmatprep.subr.mxu0 %v70
  %688 = vmatpush1.msra.mxu0 %v69
  %689 = vmatprep.subr.mxu0 %v66
  %690 = vmatpush1.msra.mxu0 %v65
  %691 = vmatprep.subr.mxu0 %v62
  %692 = vmatpush1.msra.mxu0 %v61
  %693 = vmatprep.subr.mxu0 %v58
  %694 = vmatpush1.msra.mxu0 %v57
  %695 = vmatprep.subr.mxu0 %v54
  %696 = vmatpush1.msra.mxu0 %v53
  %697 = vmatprep.subr.mxu0 %v50
  %698 = vmatpush1.msra.mxu0 %v49
  %699 = vmatprep.subr.mxu0 %v46
  %700 = vmatpush1.msra.mxu0 %v45
  %701 = vmatprep.subr.mxu0 %v42
  %702 = vmatpush1.msra.mxu0 %v41
  %703 = vmatprep.subr.mxu0 %v38
  %704 = vmatpush1.msra.mxu0 %v37
  %705 = vmatprep.subr.mxu0 %v34
  %706 = vmatpush1.msra.mxu0 %v33
  %707 = vmatprep.subr.mxu0 %v30
  %708 = vmatpush1.msra.mxu0 %v29
  %709 = vmatprep.subr.mxu0 %v26
  %710 = vmatpush1.msra.mxu0 %v25
  %711 = vmatprep.subr.mxu0 %v22
  %712 = vmatpush1.msra.mxu0 %v21
  %713 = vmatprep.subr.mxu0 %v18
  %714 = vmatpush1.msra.mxu0 %v17
  %715 = vmatprep.subr.mxu0 0.0
  %716 = vmatpush2.msra.mxu0 0.0
  %717 = vmatprep.subr.mxu0 0.0
  %718 = vmatpush2.msra.mxu0 0.0
  %719 = vmatprep.subr.mxu0 0.0
  %720 = vmatpush2.msra.mxu0 0.0
  %721 = vmatprep.subr.mxu0 0.0
  %722 = vmatpush2.msra.mxu0 0.0
  %723 = vmatprep.subr.mxu0 0.0
  %724 = vmatpush2.msra.mxu0 0.0
  %725 = vmatprep.subr.mxu0 0.0
  %726 = vmatpush2.msra.mxu0 0.0
  %727 = vmatprep.subr.mxu0 0.0
  %728 = vmatpush2.msra.mxu0 0.0
  %729 = vmatprep.subr.mxu0 0.0
  %730 = vmatpush2.msra.mxu0 0.0
  %731 = vmatprep.subr.mxu0 0.0
  %732 = vmatpush2.msra.mxu0 0.0
  %733 = vmatprep.subr.mxu0 0.0
  %734 = vmatpush2.msra.mxu0 0.0
  %735 = vmatprep.subr.mxu0 0.0
  %736 = vmatpush2.msra.mxu0 0.0
  %737 = vmatprep.subr.mxu0 0.0
  %738 = vmatpush2.msra.mxu0 0.0
  %739 = vmatprep.subr.mxu0 0.0
  %740 = vmatpush2.msra.mxu0 0.0
  %741 = vmatprep.subr.mxu0 0.0
  %742 = vmatpush2.msra.mxu0 0.0
  %743 = vmatprep.subr.mxu0 0.0
  %744 = vmatpush2.msra.mxu0 0.0
  %745 = vmatprep.subr.mxu0 0.0
  %746 = vmatpush2.msra.mxu0 0.0
  %747 = vmatprep.mubr.f32.mxu0 0.0
  %748 = vmatmul.mubr.f32.gmra.mxu0 %v678
  %v749 = vpop.f32.mrf.mxu0
  %v750 = vadd.f32 0.0, %v749
  %v751 = vpop.f32.mrf.mxu0
  %v752 = vadd.f32 0.0, %v751
  %753 = vdwg.mxu0
  %754 = vmatprep.subr.mxu0 %v80
  %755 = vmatpush1.msra.mxu0 %v79
  %756 = vmatprep.subr.mxu0 %v76
  %757 = vmatpush1.msra.mxu0 %v75
  %758 = vmatprep.subr.mxu0 %v72
  %759 = vmatpush1.msra.mxu0 %v71
  %760 = vmatprep.subr.mxu0 %v68
  %761 = vmatpush1.msra.mxu0 %v67
  %762 = vmatprep.subr.mxu0 %v64
  %763 = vmatpush1.msra.mxu0 %v63
  %764 = vmatprep.subr.mxu0 %v60
  %765 = vmatpush1.msra.mxu0 %v59
  %766 = vmatprep.subr.mxu0 %v56
  %767 = vmatpush1.msra.mxu0 %v55
  %768 = vmatprep.subr.mxu0 %v52
  %769 = vmatpush1.msra.mxu0 %v51
  %770 = vmatprep.subr.mxu0 %v48
  %771 = vmatpush1.msra.mxu0 %v47
  %772 = vmatprep.subr.mxu0 %v44
  %773 = vmatpush1.msra.mxu0 %v43
  %774 = vmatprep.subr.mxu0 %v40
  %775 = vmatpush1.msra.mxu0 %v39
  %776 = vmatprep.subr.mxu0 %v36
  %777 = vmatpush1.msra.mxu0 %v35
  %778 = vmatprep.subr.mxu0 %v32
  %779 = vmatpush1.msra.mxu0 %v31
  %780 = vmatprep.subr.mxu0 %v28
  %781 = vmatpush1.msra.mxu0 %v27
  %782 = vmatprep.subr.mxu0 %v24
  %783 = vmatpush1.msra.mxu0 %v23
  %784 = vmatprep.subr.mxu0 %v20
  %785 = vmatpush1.msra.mxu0 %v19
  %786 = vmatprep.subr.mxu0 0.0
  %787 = vmatpush2.msra.mxu0 0.0
  %788 = vmatprep.subr.mxu0 0.0
  %789 = vmatpush2.msra.mxu0 0.0
  %790 = vmatprep.subr.mxu0 0.0
  %791 = vmatpush2.msra.mxu0 0.0
  %792 = vmatprep.subr.mxu0 0.0
  %793 = vmatpush2.msra.mxu0 0.0
  %794 = vmatprep.subr.mxu0 0.0
  %795 = vmatpush2.msra.mxu0 0.0
  %796 = vmatprep.subr.mxu0 0.0
  %797 = vmatpush2.msra.mxu0 0.0
  %798 = vmatprep.subr.mxu0 0.0
  %799 = vmatpush2.msra.mxu0 0.0
  %800 = vmatprep.subr.mxu0 0.0
  %801 = vmatpush2.msra.mxu0 0.0
  %802 = vmatprep.subr.mxu0 0.0
  %803 = vmatpush2.msra.mxu0 0.0
  %804 = vmatprep.subr.mxu0 0.0
  %805 = vmatpush2.msra.mxu0 0.0
  %806 = vmatprep.subr.mxu0 0.0
  %807 = vmatpush2.msra.mxu0 0.0
  %808 = vmatprep.subr.mxu0 0.0
  %809 = vmatpush2.msra.mxu0 0.0
  %810 = vmatprep.subr.mxu0 0.0
  %811 = vmatpush2.msra.mxu0 0.0
  %812 = vmatprep.subr.mxu0 0.0
  %813 = vmatpush2.msra.mxu0 0.0
  %814 = vmatprep.subr.mxu0 0.0
  %815 = vmatpush2.msra.mxu0 0.0
  %816 = vmatprep.subr.mxu0 0.0
  %817 = vmatpush2.msra.mxu0 0.0
  %818 = vmatprep.mubr.f32.mxu0 0.0
  %819 = vmatmul.mubr.f32.gmra.mxu0 %v678
  %v820 = vpop.f32.mrf.mxu0
  %v821 = vadd.f32 0.0, %v820
  %v822 = vpop.f32.mrf.mxu0
  %v823 = vadd.f32 0.0, %v822
  %824 = vdwg.mxu0
  %v829 = vcombine.low %v750, %v752
  %v830 = vcombine.low %v821, %v823
  %v832 = vunpack.c.l.s4 1983009808
  %v833 = vunpack.c.0.s8 %v832
  %v834 = vlaneseq
  %v835 = vshrl.u32 %v834, 7
  %v836 = vsub.s32 %v833, %v835
  %v837 = vrot.slane %v829, %v836
  %v839 = vunpack.c.l.s4 1983009808
  %v840 = vunpack.c.0.s8 %v839
  %v841 = vlaneseq
  %v842 = vshrl.u32 %v841, 7
  %v843 = vsub.s32 %v840, %v842
  %v844 = vrot.slane %v830, %v843
  %v845 = vcombine.low %v837, %v844
  %v847 = vadd.f32 %v682, %v845
  %v848 = vxor.u32 %v847, 2147483648
  %v849 = vmul.f32 %v848, 1.442695
  %v850 = vpow.pop %v849
  %v851 = vadd.f32 %v850, 1.0
  %v852 = vrcp.pop %v851
  %v853 = vmul.f32 1.0, %v852
  %v855 = vrot.slane %v847, 2
  %v857 = vxor.u32 %v855, 2147483648
  %v858 = vmul.f32 %v857, 1.442695
  %v859 = vpow.pop %v858
  %v860 = vadd.f32 %v859, 1.0
  %v861 = vrcp.pop %v860
  %v862 = vmul.f32 1.0, %v861
  %v863 = vrot.slane %v847, 4
  %v865 = vtanh.pop %v863
  %v866 = vrot.slane %v847, 6
  %v868 = vxor.u32 %v866, 2147483648
  %v869 = vmul.f32 %v868, 1.442695
  %v870 = vpow.pop %v869
  %v871 = vadd.f32 %v870, 1.0
  %v872 = vrcp.pop %v871
  %v873 = vmul.f32 1.0, %v872
  %v874 = vmul.f32 %v862, %v676
  %v875 = vmul.f32 %v853, %v865
  %v876 = vadd.f32 %v874, %v875
  %v877 = vtanh.pop %v876
  %v878 = vmul.f32 %v873, %v877
  %s879 = scalar_lea.vmem %s2, 6
  %880 = vst [vmem:[%s879] sm:$0x3] %v878
  %s881 = scalar_lea.vmem %s0, 32
  %v882 = vld [vmem:[%s881] sm:$0xff]
  %883 = vmatprep.subr.mxu0 %v78
  %884 = vmatpush1.msra.mxu0 %v77
  %885 = vmatprep.subr.mxu0 %v74
  %886 = vmatpush1.msra.mxu0 %v73
  %887 = vmatprep.subr.mxu0 %v70
  %888 = vmatpush1.msra.mxu0 %v69
  %889 = vmatprep.subr.mxu0 %v66
  %890 = vmatpush1.msra.mxu0 %v65
  %891 = vmatprep.subr.mxu0 %v62
  %892 = vmatpush1.msra.mxu0 %v61
  %893 = vmatprep.subr.mxu0 %v58
  %894 = vmatpush1.msra.mxu0 %v57
  %895 = vmatprep.subr.mxu0 %v54
  %896 = vmatpush1.msra.mxu0 %v53
  %897 = vmatprep.subr.mxu0 %v50
  %898 = vmatpush1.msra.mxu0 %v49
  %899 = vmatprep.subr.mxu0 %v46
  %900 = vmatpush1.msra.mxu0 %v45
  %901 = vmatprep.subr.mxu0 %v42
  %902 = vmatpush1.msra.mxu0 %v41
  %903 = vmatprep.subr.mxu0 %v38
  %904 = vmatpush1.msra.mxu0 %v37
  %905 = vmatprep.subr.mxu0 %v34
  %906 = vmatpush1.msra.mxu0 %v33
  %907 = vmatprep.subr.mxu0 %v30
  %908 = vmatpush1.msra.mxu0 %v29
  %909 = vmatprep.subr.mxu0 %v26
  %910 = vmatpush1.msra.mxu0 %v25
  %911 = vmatprep.subr.mxu0 %v22
  %912 = vmatpush1.msra.mxu0 %v21
  %913 = vmatprep.subr.mxu0 %v18
  %914 = vmatpush1.msra.mxu0 %v17
  %915 = vmatprep.subr.mxu0 0.0
  %916 = vmatpush2.msra.mxu0 0.0
  %917 = vmatprep.subr.mxu0 0.0
  %918 = vmatpush2.msra.mxu0 0.0
  %919 = vmatprep.subr.mxu0 0.0
  %920 = vmatpush2.msra.mxu0 0.0
  %921 = vmatprep.subr.mxu0 0.0
  %922 = vmatpush2.msra.mxu0 0.0
  %923 = vmatprep.subr.mxu0 0.0
  %924 = vmatpush2.msra.mxu0 0.0
  %925 = vmatprep.subr.mxu0 0.0
  %926 = vmatpush2.msra.mxu0 0.0
  %927 = vmatprep.subr.mxu0 0.0
  %928 = vmatpush2.msra.mxu0 0.0
  %929 = vmatprep.subr.mxu0 0.0
  %930 = vmatpush2.msra.mxu0 0.0
  %931 = vmatprep.subr.mxu0 0.0
  %932 = vmatpush2.msra.mxu0 0.0
  %933 = vmatprep.subr.mxu0 0.0
  %934 = vmatpush2.msra.mxu0 0.0
  %935 = vmatprep.subr.mxu0 0.0
  %936 = vmatpush2.msra.mxu0 0.0
  %937 = vmatprep.subr.mxu0 0.0
  %938 = vmatpush2.msra.mxu0 0.0
  %939 = vmatprep.subr.mxu0 0.0
  %940 = vmatpush2.msra.mxu0 0.0
  %941 = vmatprep.subr.mxu0 0.0
  %942 = vmatpush2.msra.mxu0 0.0
  %943 = vmatprep.subr.mxu0 0.0
  %944 = vmatpush2.msra.mxu0 0.0
  %945 = vmatprep.subr.mxu0 0.0
  %946 = vmatpush2.msra.mxu0 0.0
  %947 = vmatprep.mubr.f32.mxu0 0.0
  %948 = vmatmul.mubr.f32.gmra.mxu0 %v878
  %v949 = vpop.f32.mrf.mxu0
  %v950 = vadd.f32 0.0, %v949
  %v951 = vpop.f32.mrf.mxu0
  %v952 = vadd.f32 0.0, %v951
  %953 = vdwg.mxu0
  %954 = vmatprep.subr.mxu0 %v80
  %955 = vmatpush1.msra.mxu0 %v79
  %956 = vmatprep.subr.mxu0 %v76
  %957 = vmatpush1.msra.mxu0 %v75
  %958 = vmatprep.subr.mxu0 %v72
  %959 = vmatpush1.msra.mxu0 %v71
  %960 = vmatprep.subr.mxu0 %v68
  %961 = vmatpush1.msra.mxu0 %v67
  %962 = vmatprep.subr.mxu0 %v64
  %963 = vmatpush1.msra.mxu0 %v63
  %964 = vmatprep.subr.mxu0 %v60
  %965 = vmatpush1.msra.mxu0 %v59
  %966 = vmatprep.subr.mxu0 %v56
  %967 = vmatpush1.msra.mxu0 %v55
  %968 = vmatprep.subr.mxu0 %v52
  %969 = vmatpush1.msra.mxu0 %v51
  %970 = vmatprep.subr.mxu0 %v48
  %971 = vmatpush1.msra.mxu0 %v47
  %972 = vmatprep.subr.mxu0 %v44
  %973 = vmatpush1.msra.mxu0 %v43
  %974 = vmatprep.subr.mxu0 %v40
  %975 = vmatpush1.msra.mxu0 %v39
  %976 = vmatprep.subr.mxu0 %v36
  %977 = vmatpush1.msra.mxu0 %v35
  %978 = vmatprep.subr.mxu0 %v32
  %979 = vmatpush1.msra.mxu0 %v31
  %980 = vmatprep.subr.mxu0 %v28
  %981 = vmatpush1.msra.mxu0 %v27
  %982 = vmatprep.subr.mxu0 %v24
  %983 = vmatpush1.msra.mxu0 %v23
  %984 = vmatprep.subr.mxu0 %v20
  %985 = vmatpush1.msra.mxu0 %v19
  %986 = vmatprep.subr.mxu0 0.0
  %987 = vmatpush2.msra.mxu0 0.0
  %988 = vmatprep.subr.mxu0 0.0
  %989 = vmatpush2.msra.mxu0 0.0
  %990 = vmatprep.subr.mxu0 0.0
  %991 = vmatpush2.msra.mxu0 0.0
  %992 = vmatprep.subr.mxu0 0.0
  %993 = vmatpush2.msra.mxu0 0.0
  %994 = vmatprep.subr.mxu0 0.0
  %995 = vmatpush2.msra.mxu0 0.0
  %996 = vmatprep.subr.mxu0 0.0
  %997 = vmatpush2.msra.mxu0 0.0
  %998 = vmatprep.subr.mxu0 0.0
  %999 = vmatpush2.msra.mxu0 0.0
  %1000 = vmatprep.subr.mxu0 0.0
  %1001 = vmatpush2.msra.mxu0 0.0
  %1002 = vmatprep.subr.mxu0 0.0
  %1003 = vmatpush2.msra.mxu0 0.0
  %1004 = vmatprep.subr.mxu0 0.0
  %1005 = vmatpush2.msra.mxu0 0.0
  %1006 = vmatprep.subr.mxu0 0.0
  %1007 = vmatpush2.msra.mxu0 0.0
  %1008 = vmatprep.subr.mxu0 0.0
  %1009 = vmatpush2.msra.mxu0 0.0
  %1010 = vmatprep.subr.mxu0 0.0
  %1011 = vmatpush2.msra.mxu0 0.0
  %1012 = vmatprep.subr.mxu0 0.0
  %1013 = vmatpush2.msra.mxu0 0.0
  %1014 = vmatprep.subr.mxu0 0.0
  %1015 = vmatpush2.msra.mxu0 0.0
  %1016 = vmatprep.subr.mxu0 0.0
  %1017 = vmatpush2.msra.mxu0 0.0
  %1018 = vmatprep.mubr.f32.mxu0 0.0
  %1019 = vmatmul.mubr.f32.gmra.mxu0 %v878
  %v1020 = vpop.f32.mrf.mxu0
  %v1021 = vadd.f32 0.0, %v1020
  %v1022 = vpop.f32.mrf.mxu0
  %v1023 = vadd.f32 0.0, %v1022
  %1024 = vdwg.mxu0
  %v1029 = vcombine.low %v950, %v952
  %v1030 = vcombine.low %v1021, %v1023
  %v1032 = vunpack.c.l.s4 1983009808
  %v1033 = vunpack.c.0.s8 %v1032
  %v1034 = vlaneseq
  %v1035 = vshrl.u32 %v1034, 7
  %v1036 = vsub.s32 %v1033, %v1035
  %v1037 = vrot.slane %v1029, %v1036
  %v1039 = vunpack.c.l.s4 1983009808
  %v1040 = vunpack.c.0.s8 %v1039
  %v1041 = vlaneseq
  %v1042 = vshrl.u32 %v1041, 7
  %v1043 = vsub.s32 %v1040, %v1042
  %v1044 = vrot.slane %v1030, %v1043
  %v1045 = vcombine.low %v1037, %v1044
  %v1047 = vadd.f32 %v882, %v1045
  %v1048 = vxor.u32 %v1047, 2147483648
  %v1049 = vmul.f32 %v1048, 1.442695
  %v1050 = vpow.pop %v1049
  %v1051 = vadd.f32 %v1050, 1.0
  %v1052 = vrcp.pop %v1051
  %v1053 = vmul.f32 1.0, %v1052
  %v1055 = vrot.slane %v1047, 2
  %v1057 = vxor.u32 %v1055, 2147483648
  %v1058 = vmul.f32 %v1057, 1.442695
  %v1059 = vpow.pop %v1058
  %v1060 = vadd.f32 %v1059, 1.0
  %v1061 = vrcp.pop %v1060
  %v1062 = vmul.f32 1.0, %v1061
  %v1063 = vrot.slane %v1047, 4
  %v1065 = vtanh.pop %v1063
  %v1066 = vrot.slane %v1047, 6
  %v1068 = vxor.u32 %v1066, 2147483648
  %v1069 = vmul.f32 %v1068, 1.442695
  %v1070 = vpow.pop %v1069
  %v1071 = vadd.f32 %v1070, 1.0
  %v1072 = vrcp.pop %v1071
  %v1073 = vmul.f32 1.0, %v1072
  %v1074 = vmul.f32 %v1062, %v876
  %v1075 = vmul.f32 %v1053, %v1065
  %v1076 = vadd.f32 %v1074, %v1075
  %v1077 = vtanh.pop %v1076
  %v1078 = vmul.f32 %v1073, %v1077
  %s1079 = scalar_lea.vmem %s2, 8
  %1080 = vst [vmem:[%s1079] sm:$0x3] %v1078
  %s1081 = scalar_lea.vmem %s0, 40
  %v1082 = vld [vmem:[%s1081] sm:$0xff]
  %1083 = vmatprep.subr.mxu0 %v78
  %1084 = vmatpush1.msra.mxu0 %v77
  %1085 = vmatprep.subr.mxu0 %v74
  %1086 = vmatpush1.msra.mxu0 %v73
  %1087 = vmatprep.subr.mxu0 %v70
  %1088 = vmatpush1.msra.mxu0 %v69
  %1089 = vmatprep.subr.mxu0 %v66
  %1090 = vmatpush1.msra.mxu0 %v65
  %1091 = vmatprep.subr.mxu0 %v62
  %1092 = vmatpush1.msra.mxu0 %v61
  %1093 = vmatprep.subr.mxu0 %v58
  %1094 = vmatpush1.msra.mxu0 %v57
  %1095 = vmatprep.subr.mxu0 %v54
  %1096 = vmatpush1.msra.mxu0 %v53
  %1097 = vmatprep.subr.mxu0 %v50
  %1098 = vmatpush1.msra.mxu0 %v49
  %1099 = vmatprep.subr.mxu0 %v46
  %1100 = vmatpush1.msra.mxu0 %v45
  %1101 = vmatprep.subr.mxu0 %v42
  %1102 = vmatpush1.msra.mxu0 %v41
  %1103 = vmatprep.subr.mxu0 %v38
  %1104 = vmatpush1.msra.mxu0 %v37
  %1105 = vmatprep.subr.mxu0 %v34
  %1106 = vmatpush1.msra.mxu0 %v33
  %1107 = vmatprep.subr.mxu0 %v30
  %1108 = vmatpush1.msra.mxu0 %v29
  %1109 = vmatprep.subr.mxu0 %v26
  %1110 = vmatpush1.msra.mxu0 %v25
  %1111 = vmatprep.subr.mxu0 %v22
  %1112 = vmatpush1.msra.mxu0 %v21
  %1113 = vmatprep.subr.mxu0 %v18
  %1114 = vmatpush1.msra.mxu0 %v17
  %1115 = vmatprep.subr.mxu0 0.0
  %1116 = vmatpush2.msra.mxu0 0.0
  %1117 = vmatprep.subr.mxu0 0.0
  %1118 = vmatpush2.msra.mxu0 0.0
  %1119 = vmatprep.subr.mxu0 0.0
  %1120 = vmatpush2.msra.mxu0 0.0
  %1121 = vmatprep.subr.mxu0 0.0
  %1122 = vmatpush2.msra.mxu0 0.0
  %1123 = vmatprep.subr.mxu0 0.0
  %1124 = vmatpush2.msra.mxu0 0.0
  %1125 = vmatprep.subr.mxu0 0.0
  %1126 = vmatpush2.msra.mxu0 0.0
  %1127 = vmatprep.subr.mxu0 0.0
  %1128 = vmatpush2.msra.mxu0 0.0
  %1129 = vmatprep.subr.mxu0 0.0
  %1130 = vmatpush2.msra.mxu0 0.0
  %1131 = vmatprep.subr.mxu0 0.0
  %1132 = vmatpush2.msra.mxu0 0.0
  %1133 = vmatprep.subr.mxu0 0.0
  %1134 = vmatpush2.msra.mxu0 0.0
  %1135 = vmatprep.subr.mxu0 0.0
  %1136 = vmatpush2.msra.mxu0 0.0
  %1137 = vmatprep.subr.mxu0 0.0
  %1138 = vmatpush2.msra.mxu0 0.0
  %1139 = vmatprep.subr.mxu0 0.0
  %1140 = vmatpush2.msra.mxu0 0.0
  %1141 = vmatprep.subr.mxu0 0.0
  %1142 = vmatpush2.msra.mxu0 0.0
  %1143 = vmatprep.subr.mxu0 0.0
  %1144 = vmatpush2.msra.mxu0 0.0
  %1145 = vmatprep.subr.mxu0 0.0
  %1146 = vmatpush2.msra.mxu0 0.0
  %1147 = vmatprep.mubr.f32.mxu0 0.0
  %1148 = vmatmul.mubr.f32.gmra.mxu0 %v1078
  %v1149 = vpop.f32.mrf.mxu0
  %v1150 = vadd.f32 0.0, %v1149
  %v1151 = vpop.f32.mrf.mxu0
  %v1152 = vadd.f32 0.0, %v1151
  %1153 = vdwg.mxu0
  %1154 = vmatprep.subr.mxu0 %v80
  %1155 = vmatpush1.msra.mxu0 %v79
  %1156 = vmatprep.subr.mxu0 %v76
  %1157 = vmatpush1.msra.mxu0 %v75
  %1158 = vmatprep.subr.mxu0 %v72
  %1159 = vmatpush1.msra.mxu0 %v71
  %1160 = vmatprep.subr.mxu0 %v68
  %1161 = vmatpush1.msra.mxu0 %v67
  %1162 = vmatprep.subr.mxu0 %v64
  %1163 = vmatpush1.msra.mxu0 %v63
  %1164 = vmatprep.subr.mxu0 %v60
  %1165 = vmatpush1.msra.mxu0 %v59
  %1166 = vmatprep.subr.mxu0 %v56
  %1167 = vmatpush1.msra.mxu0 %v55
  %1168 = vmatprep.subr.mxu0 %v52
  %1169 = vmatpush1.msra.mxu0 %v51
  %1170 = vmatprep.subr.mxu0 %v48
  %1171 = vmatpush1.msra.mxu0 %v47
  %1172 = vmatprep.subr.mxu0 %v44
  %1173 = vmatpush1.msra.mxu0 %v43
  %1174 = vmatprep.subr.mxu0 %v40
  %1175 = vmatpush1.msra.mxu0 %v39
  %1176 = vmatprep.subr.mxu0 %v36
  %1177 = vmatpush1.msra.mxu0 %v35
  %1178 = vmatprep.subr.mxu0 %v32
  %1179 = vmatpush1.msra.mxu0 %v31
  %1180 = vmatprep.subr.mxu0 %v28
  %1181 = vmatpush1.msra.mxu0 %v27
  %1182 = vmatprep.subr.mxu0 %v24
  %1183 = vmatpush1.msra.mxu0 %v23
  %1184 = vmatprep.subr.mxu0 %v20
  %1185 = vmatpush1.msra.mxu0 %v19
  %1186 = vmatprep.subr.mxu0 0.0
  %1187 = vmatpush2.msra.mxu0 0.0
  %1188 = vmatprep.subr.mxu0 0.0
  %1189 = vmatpush2.msra.mxu0 0.0
  %1190 = vmatprep.subr.mxu0 0.0
  %1191 = vmatpush2.msra.mxu0 0.0
  %1192 = vmatprep.subr.mxu0 0.0
  %1193 = vmatpush2.msra.mxu0 0.0
  %1194 = vmatprep.subr.mxu0 0.0
  %1195 = vmatpush2.msra.mxu0 0.0
  %1196 = vmatprep.subr.mxu0 0.0
  %1197 = vmatpush2.msra.mxu0 0.0
  %1198 = vmatprep.subr.mxu0 0.0
  %1199 = vmatpush2.msra.mxu0 0.0
  %1200 = vmatprep.subr.mxu0 0.0
  %1201 = vmatpush2.msra.mxu0 0.0
  %1202 = vmatprep.subr.mxu0 0.0
  %1203 = vmatpush2.msra.mxu0 0.0
  %1204 = vmatprep.subr.mxu0 0.0
  %1205 = vmatpush2.msra.mxu0 0.0
  %1206 = vmatprep.subr.mxu0 0.0
  %1207 = vmatpush2.msra.mxu0 0.0
  %1208 = vmatprep.subr.mxu0 0.0
  %1209 = vmatpush2.msra.mxu0 0.0
  %1210 = vmatprep.subr.mxu0 0.0
  %1211 = vmatpush2.msra.mxu0 0.0
  %1212 = vmatprep.subr.mxu0 0.0
  %1213 = vmatpush2.msra.mxu0 0.0
  %1214 = vmatprep.subr.mxu0 0.0
  %1215 = vmatpush2.msra.mxu0 0.0
  %1216 = vmatprep.subr.mxu0 0.0
  %1217 = vmatpush2.msra.mxu0 0.0
  %1218 = vmatprep.mubr.f32.mxu0 0.0
  %1219 = vmatmul.mubr.f32.gmra.mxu0 %v1078
  %v1220 = vpop.f32.mrf.mxu0
  %v1221 = vadd.f32 0.0, %v1220
  %v1222 = vpop.f32.mrf.mxu0
  %v1223 = vadd.f32 0.0, %v1222
  %1224 = vdwg.mxu0
  %v1229 = vcombine.low %v1150, %v1152
  %v1230 = vcombine.low %v1221, %v1223
  %v1232 = vunpack.c.l.s4 1983009808
  %v1233 = vunpack.c.0.s8 %v1232
  %v1234 = vlaneseq
  %v1235 = vshrl.u32 %v1234, 7
  %v1236 = vsub.s32 %v1233, %v1235
  %v1237 = vrot.slane %v1229, %v1236
  %v1239 = vunpack.c.l.s4 1983009808
  %v1240 = vunpack.c.0.s8 %v1239
  %v1241 = vlaneseq
  %v1242 = vshrl.u32 %v1241, 7
  %v1243 = vsub.s32 %v1240, %v1242
  %v1244 = vrot.slane %v1230, %v1243
  %v1245 = vcombine.low %v1237, %v1244
  %v1247 = vadd.f32 %v1082, %v1245
  %v1248 = vxor.u32 %v1247, 2147483648
  %v1249 = vmul.f32 %v1248, 1.442695
  %v1250 = vpow.pop %v1249
  %v1251 = vadd.f32 %v1250, 1.0
  %v1252 = vrcp.pop %v1251
  %v1253 = vmul.f32 1.0, %v1252
  %v1255 = vrot.slane %v1247, 2
  %v1257 = vxor.u32 %v1255, 2147483648
  %v1258 = vmul.f32 %v1257, 1.442695
  %v1259 = vpow.pop %v1258
  %v1260 = vadd.f32 %v1259, 1.0
  %v1261 = vrcp.pop %v1260
  %v1262 = vmul.f32 1.0, %v1261
  %v1263 = vrot.slane %v1247, 4
  %v1265 = vtanh.pop %v1263
  %v1266 = vrot.slane %v1247, 6
  %v1268 = vxor.u32 %v1266, 2147483648
  %v1269 = vmul.f32 %v1268, 1.442695
  %v1270 = vpow.pop %v1269
  %v1271 = vadd.f32 %v1270, 1.0
  %v1272 = vrcp.pop %v1271
  %v1273 = vmul.f32 1.0, %v1272
  %v1274 = vmul.f32 %v1262, %v1076
  %v1275 = vmul.f32 %v1253, %v1265
  %v1276 = vadd.f32 %v1274, %v1275
  %v1277 = vtanh.pop %v1276
  %v1278 = vmul.f32 %v1273, %v1277
  %s1279 = scalar_lea.vmem %s2, 10
  %1280 = vst [vmem:[%s1279] sm:$0x3] %v1278
  %s1281 = scalar_lea.vmem %s0, 48
  %v1282 = vld [vmem:[%s1281] sm:$0xff]
  %1283 = vmatprep.subr.mxu0 %v78
  %1284 = vmatpush1.msra.mxu0 %v77
  %1285 = vmatprep.subr.mxu0 %v74
  %1286 = vmatpush1.msra.mxu0 %v73
  %1287 = vmatprep.subr.mxu0 %v70
  %1288 = vmatpush1.msra.mxu0 %v69
  %1289 = vmatprep.subr.mxu0 %v66
  %1290 = vmatpush1.msra.mxu0 %v65
  %1291 = vmatprep.subr.mxu0 %v62
  %1292 = vmatpush1.msra.mxu0 %v61
  %1293 = vmatprep.subr.mxu0 %v58
  %1294 = vmatpush1.msra.mxu0 %v57
  %1295 = vmatprep.subr.mxu0 %v54
  %1296 = vmatpush1.msra.mxu0 %v53
  %1297 = vmatprep.subr.mxu0 %v50
  %1298 = vmatpush1.msra.mxu0 %v49
  %1299 = vmatprep.subr.mxu0 %v46
  %1300 = vmatpush1.msra.mxu0 %v45
  %1301 = vmatprep.subr.mxu0 %v42
  %1302 = vmatpush1.msra.mxu0 %v41
  %1303 = vmatprep.subr.mxu0 %v38
  %1304 = vmatpush1.msra.mxu0 %v37
  %1305 = vmatprep.subr.mxu0 %v34
  %1306 = vmatpush1.msra.mxu0 %v33
  %1307 = vmatprep.subr.mxu0 %v30
  %1308 = vmatpush1.msra.mxu0 %v29
  %1309 = vmatprep.subr.mxu0 %v26
  %1310 = vmatpush1.msra.mxu0 %v25
  %1311 = vmatprep.subr.mxu0 %v22
  %1312 = vmatpush1.msra.mxu0 %v21
  %1313 = vmatprep.subr.mxu0 %v18
  %1314 = vmatpush1.msra.mxu0 %v17
  %1315 = vmatprep.subr.mxu0 0.0
  %1316 = vmatpush2.msra.mxu0 0.0
  %1317 = vmatprep.subr.mxu0 0.0
  %1318 = vmatpush2.msra.mxu0 0.0
  %1319 = vmatprep.subr.mxu0 0.0
  %1320 = vmatpush2.msra.mxu0 0.0
  %1321 = vmatprep.subr.mxu0 0.0
  %1322 = vmatpush2.msra.mxu0 0.0
  %1323 = vmatprep.subr.mxu0 0.0
  %1324 = vmatpush2.msra.mxu0 0.0
  %1325 = vmatprep.subr.mxu0 0.0
  %1326 = vmatpush2.msra.mxu0 0.0
  %1327 = vmatprep.subr.mxu0 0.0
  %1328 = vmatpush2.msra.mxu0 0.0
  %1329 = vmatprep.subr.mxu0 0.0
  %1330 = vmatpush2.msra.mxu0 0.0
  %1331 = vmatprep.subr.mxu0 0.0
  %1332 = vmatpush2.msra.mxu0 0.0
  %1333 = vmatprep.subr.mxu0 0.0
  %1334 = vmatpush2.msra.mxu0 0.0
  %1335 = vmatprep.subr.mxu0 0.0
  %1336 = vmatpush2.msra.mxu0 0.0
  %1337 = vmatprep.subr.mxu0 0.0
  %1338 = vmatpush2.msra.mxu0 0.0
  %1339 = vmatprep.subr.mxu0 0.0
  %1340 = vmatpush2.msra.mxu0 0.0
  %1341 = vmatprep.subr.mxu0 0.0
  %1342 = vmatpush2.msra.mxu0 0.0
  %1343 = vmatprep.subr.mxu0 0.0
  %1344 = vmatpush2.msra.mxu0 0.0
  %1345 = vmatprep.subr.mxu0 0.0
  %1346 = vmatpush2.msra.mxu0 0.0
  %1347 = vmatprep.mubr.f32.mxu0 0.0
  %1348 = vmatmul.mubr.f32.gmra.mxu0 %v1278
  %v1349 = vpop.f32.mrf.mxu0
  %v1350 = vadd.f32 0.0, %v1349
  %v1351 = vpop.f32.mrf.mxu0
  %v1352 = vadd.f32 0.0, %v1351
  %1353 = vdwg.mxu0
  %1354 = vmatprep.subr.mxu0 %v80
  %1355 = vmatpush1.msra.mxu0 %v79
  %1356 = vmatprep.subr.mxu0 %v76
  %1357 = vmatpush1.msra.mxu0 %v75
  %1358 = vmatprep.subr.mxu0 %v72
  %1359 = vmatpush1.msra.mxu0 %v71
  %1360 = vmatprep.subr.mxu0 %v68
  %1361 = vmatpush1.msra.mxu0 %v67
  %1362 = vmatprep.subr.mxu0 %v64
  %1363 = vmatpush1.msra.mxu0 %v63
  %1364 = vmatprep.subr.mxu0 %v60
  %1365 = vmatpush1.msra.mxu0 %v59
  %1366 = vmatprep.subr.mxu0 %v56
  %1367 = vmatpush1.msra.mxu0 %v55
  %1368 = vmatprep.subr.mxu0 %v52
  %1369 = vmatpush1.msra.mxu0 %v51
  %1370 = vmatprep.subr.mxu0 %v48
  %1371 = vmatpush1.msra.mxu0 %v47
  %1372 = vmatprep.subr.mxu0 %v44
  %1373 = vmatpush1.msra.mxu0 %v43
  %1374 = vmatprep.subr.mxu0 %v40
  %1375 = vmatpush1.msra.mxu0 %v39
  %1376 = vmatprep.subr.mxu0 %v36
  %1377 = vmatpush1.msra.mxu0 %v35
  %1378 = vmatprep.subr.mxu0 %v32
  %1379 = vmatpush1.msra.mxu0 %v31
  %1380 = vmatprep.subr.mxu0 %v28
  %1381 = vmatpush1.msra.mxu0 %v27
  %1382 = vmatprep.subr.mxu0 %v24
  %1383 = vmatpush1.msra.mxu0 %v23
  %1384 = vmatprep.subr.mxu0 %v20
  %1385 = vmatpush1.msra.mxu0 %v19
  %1386 = vmatprep.subr.mxu0 0.0
  %1387 = vmatpush2.msra.mxu0 0.0
  %1388 = vmatprep.subr.mxu0 0.0
  %1389 = vmatpush2.msra.mxu0 0.0
  %1390 = vmatprep.subr.mxu0 0.0
  %1391 = vmatpush2.msra.mxu0 0.0
  %1392 = vmatprep.subr.mxu0 0.0
  %1393 = vmatpush2.msra.mxu0 0.0
  %1394 = vmatprep.subr.mxu0 0.0
  %1395 = vmatpush2.msra.mxu0 0.0
  %1396 = vmatprep.subr.mxu0 0.0
  %1397 = vmatpush2.msra.mxu0 0.0
  %1398 = vmatprep.subr.mxu0 0.0
  %1399 = vmatpush2.msra.mxu0 0.0
  %1400 = vmatprep.subr.mxu0 0.0
  %1401 = vmatpush2.msra.mxu0 0.0
  %1402 = vmatprep.subr.mxu0 0.0
  %1403 = vmatpush2.msra.mxu0 0.0
  %1404 = vmatprep.subr.mxu0 0.0
  %1405 = vmatpush2.msra.mxu0 0.0
  %1406 = vmatprep.subr.mxu0 0.0
  %1407 = vmatpush2.msra.mxu0 0.0
  %1408 = vmatprep.subr.mxu0 0.0
  %1409 = vmatpush2.msra.mxu0 0.0
  %1410 = vmatprep.subr.mxu0 0.0
  %1411 = vmatpush2.msra.mxu0 0.0
  %1412 = vmatprep.subr.mxu0 0.0
  %1413 = vmatpush2.msra.mxu0 0.0
  %1414 = vmatprep.subr.mxu0 0.0
  %1415 = vmatpush2.msra.mxu0 0.0
  %1416 = vmatprep.subr.mxu0 0.0
  %1417 = vmatpush2.msra.mxu0 0.0
  %1418 = vmatprep.mubr.f32.mxu0 0.0
  %1419 = vmatmul.mubr.f32.gmra.mxu0 %v1278
  %v1420 = vpop.f32.mrf.mxu0
  %v1421 = vadd.f32 0.0, %v1420
  %v1422 = vpop.f32.mrf.mxu0
  %v1423 = vadd.f32 0.0, %v1422
  %1424 = vdwg.mxu0
  %v1429 = vcombine.low %v1350, %v1352
  %v1430 = vcombine.low %v1421, %v1423
  %v1432 = vunpack.c.l.s4 1983009808
  %v1433 = vunpack.c.0.s8 %v1432
  %v1434 = vlaneseq
  %v1435 = vshrl.u32 %v1434, 7
  %v1436 = vsub.s32 %v1433, %v1435
  %v1437 = vrot.slane %v1429, %v1436
  %v1439 = vunpack.c.l.s4 1983009808
  %v1440 = vunpack.c.0.s8 %v1439
  %v1441 = vlaneseq
  %v1442 = vshrl.u32 %v1441, 7
  %v1443 = vsub.s32 %v1440, %v1442
  %v1444 = vrot.slane %v1430, %v1443
  %v1445 = vcombine.low %v1437, %v1444
  %v1447 = vadd.f32 %v1282, %v1445
  %v1448 = vxor.u32 %v1447, 2147483648
  %v1449 = vmul.f32 %v1448, 1.442695
  %v1450 = vpow.pop %v1449
  %v1451 = vadd.f32 %v1450, 1.0
  %v1452 = vrcp.pop %v1451
  %v1453 = vmul.f32 1.0, %v1452
  %v1455 = vrot.slane %v1447, 2
  %v1457 = vxor.u32 %v1455, 2147483648
  %v1458 = vmul.f32 %v1457, 1.442695
  %v1459 = vpow.pop %v1458
  %v1460 = vadd.f32 %v1459, 1.0
  %v1461 = vrcp.pop %v1460
  %v1462 = vmul.f32 1.0, %v1461
  %v1463 = vrot.slane %v1447, 4
  %v1465 = vtanh.pop %v1463
  %v1466 = vrot.slane %v1447, 6
  %v1468 = vxor.u32 %v1466, 2147483648
  %v1469 = vmul.f32 %v1468, 1.442695
  %v1470 = vpow.pop %v1469
  %v1471 = vadd.f32 %v1470, 1.0
  %v1472 = vrcp.pop %v1471
  %v1473 = vmul.f32 1.0, %v1472
  %v1474 = vmul.f32 %v1462, %v1276
  %v1475 = vmul.f32 %v1453, %v1465
  %v1476 = vadd.f32 %v1474, %v1475
  %v1477 = vtanh.pop %v1476
  %v1478 = vmul.f32 %v1473, %v1477
  %s1479 = scalar_lea.vmem %s2, 12
  %1480 = vst [vmem:[%s1479] sm:$0x3] %v1478
  %s1481 = scalar_lea.vmem %s0, 56
  %v1482 = vld [vmem:[%s1481] sm:$0xff]
  %1483 = vmatprep.subr.mxu0 %v78
  %1484 = vmatpush1.msra.mxu0 %v77
  %1485 = vmatprep.subr.mxu0 %v74
  %1486 = vmatpush1.msra.mxu0 %v73
  %1487 = vmatprep.subr.mxu0 %v70
  %1488 = vmatpush1.msra.mxu0 %v69
  %1489 = vmatprep.subr.mxu0 %v66
  %1490 = vmatpush1.msra.mxu0 %v65
  %1491 = vmatprep.subr.mxu0 %v62
  %1492 = vmatpush1.msra.mxu0 %v61
  %1493 = vmatprep.subr.mxu0 %v58
  %1494 = vmatpush1.msra.mxu0 %v57
  %1495 = vmatprep.subr.mxu0 %v54
  %1496 = vmatpush1.msra.mxu0 %v53
  %1497 = vmatprep.subr.mxu0 %v50
  %1498 = vmatpush1.msra.mxu0 %v49
  %1499 = vmatprep.subr.mxu0 %v46
  %1500 = vmatpush1.msra.mxu0 %v45
  %1501 = vmatprep.subr.mxu0 %v42
  %1502 = vmatpush1.msra.mxu0 %v41
  %1503 = vmatprep.subr.mxu0 %v38
  %1504 = vmatpush1.msra.mxu0 %v37
  %1505 = vmatprep.subr.mxu0 %v34
  %1506 = vmatpush1.msra.mxu0 %v33
  %1507 = vmatprep.subr.mxu0 %v30
  %1508 = vmatpush1.msra.mxu0 %v29
  %1509 = vmatprep.subr.mxu0 %v26
  %1510 = vmatpush1.msra.mxu0 %v25
  %1511 = vmatprep.subr.mxu0 %v22
  %1512 = vmatpush1.msra.mxu0 %v21
  %1513 = vmatprep.subr.mxu0 %v18
  %1514 = vmatpush1.msra.mxu0 %v17
  %1515 = vmatprep.subr.mxu0 0.0
  %1516 = vmatpush2.msra.mxu0 0.0
  %1517 = vmatprep.subr.mxu0 0.0
  %1518 = vmatpush2.msra.mxu0 0.0
  %1519 = vmatprep.subr.mxu0 0.0
  %1520 = vmatpush2.msra.mxu0 0.0
  %1521 = vmatprep.subr.mxu0 0.0
  %1522 = vmatpush2.msra.mxu0 0.0
  %1523 = vmatprep.subr.mxu0 0.0
  %1524 = vmatpush2.msra.mxu0 0.0
  %1525 = vmatprep.subr.mxu0 0.0
  %1526 = vmatpush2.msra.mxu0 0.0
  %1527 = vmatprep.subr.mxu0 0.0
  %1528 = vmatpush2.msra.mxu0 0.0
  %1529 = vmatprep.subr.mxu0 0.0
  %1530 = vmatpush2.msra.mxu0 0.0
  %1531 = vmatprep.subr.mxu0 0.0
  %1532 = vmatpush2.msra.mxu0 0.0
  %1533 = vmatprep.subr.mxu0 0.0
  %1534 = vmatpush2.msra.mxu0 0.0
  %1535 = vmatprep.subr.mxu0 0.0
  %1536 = vmatpush2.msra.mxu0 0.0
  %1537 = vmatprep.subr.mxu0 0.0
  %1538 = vmatpush2.msra.mxu0 0.0
  %1539 = vmatprep.subr.mxu0 0.0
  %1540 = vmatpush2.msra.mxu0 0.0
  %1541 = vmatprep.subr.mxu0 0.0
  %1542 = vmatpush2.msra.mxu0 0.0
  %1543 = vmatprep.subr.mxu0 0.0
  %1544 = vmatpush2.msra.mxu0 0.0
  %1545 = vmatprep.subr.mxu0 0.0
  %1546 = vmatpush2.msra.mxu0 0.0
  %1547 = vmatprep.mubr.f32.mxu0 0.0
  %1548 = vmatmul.mubr.f32.gmra.mxu0 %v1478
  %v1549 = vpop.f32.mrf.mxu0
  %v1550 = vadd.f32 0.0, %v1549
  %v1551 = vpop.f32.mrf.mxu0
  %v1552 = vadd.f32 0.0, %v1551
  %1553 = vdwg.mxu0
  %1554 = vmatprep.subr.mxu0 %v80
  %1555 = vmatpush1.msra.mxu0 %v79
  %1556 = vmatprep.subr.mxu0 %v76
  %1557 = vmatpush1.msra.mxu0 %v75
  %1558 = vmatprep.subr.mxu0 %v72
  %1559 = vmatpush1.msra.mxu0 %v71
  %1560 = vmatprep.subr.mxu0 %v68
  %1561 = vmatpush1.msra.mxu0 %v67
  %1562 = vmatprep.subr.mxu0 %v64
  %1563 = vmatpush1.msra.mxu0 %v63
  %1564 = vmatprep.subr.mxu0 %v60
  %1565 = vmatpush1.msra.mxu0 %v59
  %1566 = vmatprep.subr.mxu0 %v56
  %1567 = vmatpush1.msra.mxu0 %v55
  %1568 = vmatprep.subr.mxu0 %v52
  %1569 = vmatpush1.msra.mxu0 %v51
  %1570 = vmatprep.subr.mxu0 %v48
  %1571 = vmatpush1.msra.mxu0 %v47
  %1572 = vmatprep.subr.mxu0 %v44
  %1573 = vmatpush1.msra.mxu0 %v43
  %1574 = vmatprep.subr.mxu0 %v40
  %1575 = vmatpush1.msra.mxu0 %v39
  %1576 = vmatprep.subr.mxu0 %v36
  %1577 = vmatpush1.msra.mxu0 %v35
  %1578 = vmatprep.subr.mxu0 %v32
  %1579 = vmatpush1.msra.mxu0 %v31
  %1580 = vmatprep.subr.mxu0 %v28
  %1581 = vmatpush1.msra.mxu0 %v27
  %1582 = vmatprep.subr.mxu0 %v24
  %1583 = vmatpush1.msra.mxu0 %v23
  %1584 = vmatprep.subr.mxu0 %v20
  %1585 = vmatpush1.msra.mxu0 %v19
  %1586 = vmatprep.subr.mxu0 0.0
  %1587 = vmatpush2.msra.mxu0 0.0
  %1588 = vmatprep.subr.mxu0 0.0
  %1589 = vmatpush2.msra.mxu0 0.0
  %1590 = vmatprep.subr.mxu0 0.0
  %1591 = vmatpush2.msra.mxu0 0.0
  %1592 = vmatprep.subr.mxu0 0.0
  %1593 = vmatpush2.msra.mxu0 0.0
  %1594 = vmatprep.subr.mxu0 0.0
  %1595 = vmatpush2.msra.mxu0 0.0
  %1596 = vmatprep.subr.mxu0 0.0
  %1597 = vmatpush2.msra.mxu0 0.0
  %1598 = vmatprep.subr.mxu0 0.0
  %1599 = vmatpush2.msra.mxu0 0.0
  %1600 = vmatprep.subr.mxu0 0.0
  %1601 = vmatpush2.msra.mxu0 0.0
  %1602 = vmatprep.subr.mxu0 0.0
  %1603 = vmatpush2.msra.mxu0 0.0
  %1604 = vmatprep.subr.mxu0 0.0
  %1605 = vmatpush2.msra.mxu0 0.0
  %1606 = vmatprep.subr.mxu0 0.0
  %1607 = vmatpush2.msra.mxu0 0.0
  %1608 = vmatprep.subr.mxu0 0.0
  %1609 = vmatpush2.msra.mxu0 0.0
  %1610 = vmatprep.subr.mxu0 0.0
  %1611 = vmatpush2.msra.mxu0 0.0
  %1612 = vmatprep.subr.mxu0 0.0
  %1613 = vmatpush2.msra.mxu0 0.0
  %1614 = vmatprep.subr.mxu0 0.0
  %1615 = vmatpush2.msra.mxu0 0.0
  %1616 = vmatprep.subr.mxu0 0.0
  %1617 = vmatpush2.msra.mxu0 0.0
  %1618 = vmatprep.mubr.f32.mxu0 0.0
  %1619 = vmatmul.mubr.f32.gmra.mxu0 %v1478
  %v1620 = vpop.f32.mrf.mxu0
  %v1621 = vadd.f32 0.0, %v1620
  %v1622 = vpop.f32.mrf.mxu0
  %v1623 = vadd.f32 0.0, %v1622
  %1624 = vdwg.mxu0
  %v1629 = vcombine.low %v1550, %v1552
  %v1630 = vcombine.low %v1621, %v1623
  %v1632 = vunpack.c.l.s4 1983009808
  %v1633 = vunpack.c.0.s8 %v1632
  %v1634 = vlaneseq
  %v1635 = vshrl.u32 %v1634, 7
  %v1636 = vsub.s32 %v1633, %v1635
  %v1637 = vrot.slane %v1629, %v1636
  %v1639 = vunpack.c.l.s4 1983009808
  %v1640 = vunpack.c.0.s8 %v1639
  %v1641 = vlaneseq
  %v1642 = vshrl.u32 %v1641, 7
  %v1643 = vsub.s32 %v1640, %v1642
  %v1644 = vrot.slane %v1630, %v1643
  %v1645 = vcombine.low %v1637, %v1644
  %v1647 = vadd.f32 %v1482, %v1645
  %v1648 = vxor.u32 %v1647, 2147483648
  %v1649 = vmul.f32 %v1648, 1.442695
  %v1650 = vpow.pop %v1649
  %v1651 = vadd.f32 %v1650, 1.0
  %v1652 = vrcp.pop %v1651
  %v1653 = vmul.f32 1.0, %v1652
  %v1655 = vrot.slane %v1647, 2
  %v1657 = vxor.u32 %v1655, 2147483648
  %v1658 = vmul.f32 %v1657, 1.442695
  %v1659 = vpow.pop %v1658
  %v1660 = vadd.f32 %v1659, 1.0
  %v1661 = vrcp.pop %v1660
  %v1662 = vmul.f32 1.0, %v1661
  %v1663 = vrot.slane %v1647, 4
  %v1665 = vtanh.pop %v1663
  %v1666 = vrot.slane %v1647, 6
  %v1668 = vxor.u32 %v1666, 2147483648
  %v1669 = vmul.f32 %v1668, 1.442695
  %v1670 = vpow.pop %v1669
  %v1671 = vadd.f32 %v1670, 1.0
  %v1672 = vrcp.pop %v1671
  %v1673 = vmul.f32 1.0, %v1672
  %v1674 = vmul.f32 %v1662, %v1476
  %v1675 = vmul.f32 %v1653, %v1665
  %v1676 = vadd.f32 %v1674, %v1675
  %v1677 = vtanh.pop %v1676
  %v1678 = vmul.f32 %v1673, %v1677
  %s1679 = scalar_lea.vmem %s2, 14
  %1680 = vst [vmem:[%s1679] sm:$0x3] %v1678
  %1681 = vst [vmem:[#allocation2] sm:$0x3] %v1678
  %1682 = vst [vmem:[#allocation3] sm:$0x3] %v1676
  // Predicated region
  $region14: #{rnn_forward.8} parent=0 // pred_check
    _
  $region15: #{rnn_forward.8} parent=0 // pred_check_branch
    %1684 = sbr.rel (0) target = $region17
  $region16: #{rnn_forward.8} parent=0 // pred_region
    _
  $region17: #{rnn_forward.8} parent=0 // pred_fallthru
    _
  // Predicated region
  $region18: #{rnn_forward.8} parent=0 // pred_check
    _
  $region19: #{rnn_forward.8} parent=0 // pred_check_branch
    %1686 = sbr.rel (0) target = $region21
  $region20: #{rnn_forward.8} parent=0 // pred_region
    _
  $region21: #{rnn_forward.8} parent=0 // pred_fallthru
    _

// kernel: rnn_forward.9
$region0: #{rnn_forward.9}
  #allocation0 [shape = 'u32[]', space=smem, size = 0x4, offset = 0x4, fixed_abs, tag = 'smem constant byte address 0x4 - core index']
  #allocation1 [shape = 'u32[144,128]{1,0:T(1,128)}', space=vmem, size = 0x12000, scoped, tag = 'internal scratch']
  %s0 = inlined_call_operand.vmem [shape: f32[16,128], index: 0, kind: input, shape index: {}]
  %s1 = inlined_call_operand.vmem [shape: f32[128,128], index: 1, kind: input, shape index: {}]
  %s2 = inlined_call_operand.vmem [shape: f32[1,128], index: 2, kind: input, shape index: {}]
  %s3 = inlined_call_operand.vmem [shape: f32[16,128], index: 3, kind: output, shape index: {}]
  %s4 = sld [smem:[#allocation0]]
  $region22: #{rnn_forward.9} parent=0
    _
  %s6 = ssub.s32 1, %s4
  %s7 = scalar_select 0, %s6, %s4
  // Predicated region
  $region2: #{rnn_forward.9} parent=0 // pred_check
    _
  $region3: #{rnn_forward.9} parent=0 // pred_check_branch
    %9 = sbr.rel (0) target = $region5
  $region4: #{rnn_forward.9} parent=0 // pred_region
    _
  $region5: #{rnn_forward.9} parent=0 // pred_fallthru
    _
  // Predicated region
  $region6: #{rnn_forward.9} parent=0 // pred_check
    _
  $region7: #{rnn_forward.9} parent=0 // pred_check_branch
    %11 = sbr.rel (0) target = $region9
  $region8: #{rnn_forward.9} parent=0 // pred_region
    _
  $region9: #{rnn_forward.9} parent=0 // pred_fallthru
    _
  // Predicated region
  $region10: #{rnn_forward.9} parent=0 // pred_check
    _
  $region11: #{rnn_forward.9} parent=0 // pred_check_branch
    %13 = sbr.rel (0) target = $region13
  $region12: #{rnn_forward.9} parent=0 // pred_region
    _
  $region13: #{rnn_forward.9} parent=0 // pred_fallthru
    _
  %v14 = vld [vmem:[%s0] sm:$0xff]
  %v15 = vld [vmem:[%s0 + $0x8] sm:$0xff]
  %v16 = vld [vmem:[%s1] sm:$0xff]
  %v17 = vld [vmem:[%s1 + $0x8] sm:$0xff]
  %v18 = vld [vmem:[%s1 + $0x10] sm:$0xff]
  %v19 = vld [vmem:[%s1 + $0x18] sm:$0xff]
  %v20 = vld [vmem:[%s1 + $0x20] sm:$0xff]
  %v21 = vld [vmem:[%s1 + $0x28] sm:$0xff]
  %v22 = vld [vmem:[%s1 + $0x30] sm:$0xff]
  %v23 = vld [vmem:[%s1 + $0x38] sm:$0xff]
  %v24 = vld [vmem:[%s1 + $0x40] sm:$0xff]
  %v25 = vld [vmem:[%s1 + $0x48] sm:$0xff]
  %v26 = vld [vmem:[%s1 + $0x50] sm:$0xff]
  %v27 = vld [vmem:[%s1 + $0x58] sm:$0xff]
  %v28 = vld [vmem:[%s1 + $0x60] sm:$0xff]
  %v29 = vld [vmem:[%s1 + $0x68] sm:$0xff]
  %v30 = vld [vmem:[%s1 + $0x70] sm:$0xff]
  %v31 = vld [vmem:[%s1 + $0x78] sm:$0xff]
  %v32 = vld [vmem:[%s2] sm:$0x1]
  %v34 = vlaneseq
  %v35 = vshrl.u32 %v34, 7
  %v36 = vsub.s32 0, %v35
  %v37 = vrot.slane %v32, %v36
  %39 = vmatprep.subr.mxu0 0.0
  %40 = vmatpush1.msra.mxu0 %v31
  %41 = vmatprep.subr.mxu0 0.0
  %42 = vmatpush1.msra.mxu0 %v30
  %43 = vmatprep.subr.mxu0 0.0
  %44 = vmatpush1.msra.mxu0 %v29
  %45 = vmatprep.subr.mxu0 0.0
  %46 = vmatpush1.msra.mxu0 %v28
  %47 = vmatprep.subr.mxu0 0.0
  %48 = vmatpush1.msra.mxu0 %v27
  %49 = vmatprep.subr.mxu0 0.0
  %50 = vmatpush1.msra.mxu0 %v26
  %51 = vmatprep.subr.mxu0 0.0
  %52 = vmatpush1.msra.mxu0 %v25
  %53 = vmatprep.subr.mxu0 0.0
  %54 = vmatpush1.msra.mxu0 %v24
  %55 = vmatprep.subr.mxu0 0.0
  %56 = vmatpush1.msra.mxu0 %v23
  %57 = vmatprep.subr.mxu0 0.0
  %58 = vmatpush1.msra.mxu0 %v22
  %59 = vmatprep.subr.mxu0 0.0
  %60 = vmatpush1.msra.mxu0 %v21
  %61 = vmatprep.subr.mxu0 0.0
  %62 = vmatpush1.msra.mxu0 %v20
  %63 = vmatprep.subr.mxu0 0.0
  %64 = vmatpush1.msra.mxu0 %v19
  %65 = vmatprep.subr.mxu0 0.0
  %66 = vmatpush1.msra.mxu0 %v18
  %67 = vmatprep.subr.mxu0 0.0
  %68 = vmatpush1.msra.mxu0 %v17
  %69 = vmatprep.subr.mxu0 0.0
  %70 = vmatpush1.msra.mxu0 %v16
  %71 = vmatprep.subr.mxu0 0.0
  %72 = vmatpush2.msra.mxu0 0.0
  %73 = vmatprep.subr.mxu0 0.0
  %74 = vmatpush2.msra.mxu0 0.0
  %75 = vmatprep.subr.mxu0 0.0
  %76 = vmatpush2.msra.mxu0 0.0
  %77 = vmatprep.subr.mxu0 0.0
  %78 = vmatpush2.msra.mxu0 0.0
  %79 = vmatprep.subr.mxu0 0.0
  %80 = vmatpush2.msra.mxu0 0.0
  %81 = vmatprep.subr.mxu0 0.0
  %82 = vmatpush2.msra.mxu0 0.0
  %83 = vmatprep.subr.mxu0 0.0
  %84 = vmatpush2.msra.mxu0 0.0
  %85 = vmatprep.subr.mxu0 0.0
  %86 = vmatpush2.msra.mxu0 0.0
  %87 = vmatprep.subr.mxu0 0.0
  %88 = vmatpush2.msra.mxu0 0.0
  %89 = vmatprep.subr.mxu0 0.0
  %90 = vmatpush2.msra.mxu0 0.0
  %91 = vmatprep.subr.mxu0 0.0
  %92 = vmatpush2.msra.mxu0 0.0
  %93 = vmatprep.subr.mxu0 0.0
  %94 = vmatpush2.msra.mxu0 0.0
  %95 = vmatprep.subr.mxu0 0.0
  %96 = vmatpush2.msra.mxu0 0.0
  %97 = vmatprep.subr.mxu0 0.0
  %98 = vmatpush2.msra.mxu0 0.0
  %99 = vmatprep.subr.mxu0 0.0
  %100 = vmatpush2.msra.mxu0 0.0
  %101 = vmatprep.subr.mxu0 0.0
  %102 = vmatpush2.msra.mxu0 0.0
  %103 = vmatprep.mubr.f32.mxu0 0.0
  %104 = vmatmul.mubr.f32.gmra.mxu0 %v14
  %v105 = vpop.f32.mrf.mxu0
  %v106 = vadd.f32 %v37, %v105
  %v107 = vpop.f32.mrf.mxu0
  %108 = vmatprep.mubr.f32.mxu0 0.0
  %109 = vmatmul.mubr.f32.gmra.mxu0 %v15
  %v110 = vpop.f32.mrf.mxu0
  %v111 = vadd.f32 %v37, %v110
  %v112 = vpop.f32.mrf.mxu0
  %113 = vdwg.mxu0
  %114 = vst [vmem:[%s3] sm:$0xff] %v106
  %115 = vst [vmem:[%s3 + $0x8] sm:$0xff] %v111
  // Predicated region
  $region14: #{rnn_forward.9} parent=0 // pred_check
    _
  $region15: #{rnn_forward.9} parent=0 // pred_check_branch
    %117 = sbr.rel (0) target = $region17
  $region16: #{rnn_forward.9} parent=0 // pred_region
    _
  $region17: #{rnn_forward.9} parent=0 // pred_fallthru
    _
  // Predicated region
  $region18: #{rnn_forward.9} parent=0 // pred_check
    _
  $region19: #{rnn_forward.9} parent=0 // pred_check_branch
    %119 = sbr.rel (0) target = $region21
  $region20: #{rnn_forward.9} parent=0 // pred_region
    _
  $region21: #{rnn_forward.9} parent=0 // pred_fallthru
    _

</llo_original>
